<compile_context>
chip_gen: v7x
topology: tpu7x:2x2x1
jax: 0.10.0
libtpu: 0.0.40
codegen_flags: <defaults>
</compile_context>

<pallas_src>
import numpy as np
import jax
import jax.numpy as jnp
from jax.experimental import pallas as pl
from jax.experimental.pallas import tpu as pltpu


# ----------------------------------------------------------------------------
# Pallas kernel: fused 3-layer MLP + line construction
# ----------------------------------------------------------------------------
def afn_kernel(pts_ref, nrm_ref, feat_ref,
               w0p_ref, w0n_ref, w0f_ref, b0_ref,
               w1_ref, b1_ref, w2_ref, b2_ref,
               out_ref):
    pts = pts_ref[...]
    nrm = nrm_ref[...]
    feat = feat_ref[...]

    # Layer 0: split-K matmul equivalent to concat([pts, nrm, feat]) @ W0 + b0.
    # Dominant (widest-K) stream first so the MXU pipeline starts on it.
    h = jnp.dot(feat, w0f_ref[...], preferred_element_type=jnp.float32)
    h = h + jnp.dot(pts, w0p_ref[...], preferred_element_type=jnp.float32)
    h = h + jnp.dot(nrm, w0n_ref[...], preferred_element_type=jnp.float32)
    h = jnp.maximum(h + b0_ref[...], 0.0)

    # Layer 1: Linear + ReLU.
    h = jnp.dot(h, w1_ref[...], preferred_element_type=jnp.float32) + b1_ref[...]
    h = jnp.maximum(h, 0.0)

    # Layer 2 (final): Linear, no activation.  Weights pre-sliced to the 6 live
    # output channels, so no dead work and the matmul width == store width.
    y = jnp.dot(h, w2_ref[...], preferred_element_type=jnp.float32) + b2_ref[...]

    # lines[:, j, :] = points + offsets[:, j, :] -> two direct slice stores
    # (no lane concatenate / XLU shuffle).  Upcast points for the add
    # (no bf16 VPU on v5e).
    pts_f32 = pts.astype(jnp.float32)
    out_ref[:, 0:3] = (pts_f32 + y[:, 0:3]).astype(out_ref.dtype)
    out_ref[:, 3:6] = (pts_f32 + y[:, 3:6]).astype(out_ref.dtype)


# ----------------------------------------------------------------------------
# Wrapper
# ----------------------------------------------------------------------------
def attraction_field_forward(points, normals, feature_vectors, params, *,
                             tm=1024, input_dtype=jnp.float32,
                             vmem_limit_bytes=None):
    """points (N,3), normals (N,3), feature_vectors (N,F) -> lines (N,2,3)."""
    w0, b0, w1, b1, w2, b2 = params
    n = points.shape[0]
    f = feature_vectors.shape[1]
    d_in = 3 + 3 + f
    assert w0.shape[0] == d_in, "layer-0 weight does not match input width"
    h0 = w0.shape[1]
    h1 = w1.shape[1]
    d_out = w2.shape[1]
    assert d_out >= 6, "final layer must produce at least 6 channels (2x3 offsets)"

    # One-time parameter preprocessing (outside the kernel, outside the grid):
    # split the layer-0 weight for the split-K matmul, prune dead channels.
    w0p, w0n, w0f = w0[0:3], w0[3:6], w0[6:]
    w2s, b2s = w2[:, :6], b2[:, :6]

    # Row tile: multiple of 8 sublanes, no larger than the (rounded-up) row count.
    tm = max(8, min(int(tm), -(-n // 8) * 8))
    tm = -(-tm // 8) * 8
    # Keep at least 2 grid steps (when there are enough rows) so the "parallel"
    # row axis can shard across both v7x TensorCores.
    if n > 16 and -(-n // tm) < 2:
        tm = -(-(-(-n // 2)) // 8) * 8  # ceil(ceil(n/2) / 8) * 8
    n_pad = -(-n // tm) * tm

    # Pad rows to a multiple of tm; padded rows compute garbage sliced off below.
    if n_pad != n:
        pad = ((0, n_pad - n), (0, 0))
        points_k = jnp.pad(points, pad)
        normals_k = jnp.pad(normals, pad)
        feats_k = jnp.pad(feature_vectors, pad)
    else:
        points_k, normals_k, feats_k = points, normals, feature_vectors

    # Optional bf16 activation/weight stream (f32 MXU accumulation regardless).
    points_k = points_k.astype(input_dtype)
    normals_k = normals_k.astype(input_dtype)
    feats_k = feats_k.astype(input_dtype)
    w0p, w0n, w0f = (w.astype(input_dtype) for w in (w0p, w0n, w0f))
    w1c = w1.astype(input_dtype)
    w2c = w2s.astype(input_dtype)
    b0c = b0.astype(jnp.float32)
    b1c = b1.astype(jnp.float32)
    b2c = b2s.astype(jnp.float32)

    grid = (pl.cdiv(n_pad, tm),)
    const = lambda shape: pl.BlockSpec(shape, lambda i: (0, 0))  # grid-constant block

    # Advisory cost hint: this kernel is HBM-bound (feature stream dominates).
    in_bytes = (points_k.size * points_k.dtype.itemsize
                + normals_k.size * normals_k.dtype.itemsize
                + feats_k.size * feats_k.dtype.itemsize)
    w_bytes = sum(int(a.size) * a.dtype.itemsize
                  for a in (w0p, w0n, w0f, b0c, w1c, b1c, w2c, b2c))
    out_bytes = n_pad * 6 * 4
    flops = 2 * n_pad * (d_in * h0 + h0 * h1 + h1 * 6)
    cost = pl.CostEstimate(flops=flops, transcendentals=0,
                           bytes_accessed=in_bytes + w_bytes + out_bytes)

    compiler_params = pltpu.CompilerParams(
        dimension_semantics=("parallel",),
        vmem_limit_bytes=vmem_limit_bytes,  # set explicitly for very large tm/F on v5e
    )

    out_flat = pl.pallas_call(
        afn_kernel,
        out_shape=jax.ShapeDtypeStruct((n_pad, 6), jnp.float32),
        grid_spec=pltpu.PrefetchScalarGridSpec(
            num_scalar_prefetch=0,
            grid=grid,
            in_specs=[
                pl.BlockSpec((tm, 3), lambda i: (i, 0)),   # points tile (reused in epilogue)
                pl.BlockSpec((tm, 3), lambda i: (i, 0)),   # normals tile
                pl.BlockSpec((tm, f), lambda i: (i, 0)),   # feature tile (dominant stream)
                const((3, h0)), const((3, h0)), const((f, h0)), const((1, h0)),  # layer 0
                const((h0, h1)), const((1, h1)),                                  # layer 1
                const((h1, 6)), const((1, 6)),                                    # layer 2
            ],
            out_specs=pl.BlockSpec((tm, 6), lambda i: (i, 0)),
        ),
        compiler_params=compiler_params,
        cost_estimate=cost,
    )(points_k, normals_k, feats_k,
      w0p, w0n, w0f, b0c, w1c, b1c, w2c, b2c)

    return out_flat[:n].reshape(-1, 2, 3)


# ----------------------------------------------------------------------------
# weight_norm folding (for trained PyTorch checkpoints)
# ----------------------------------------------------------------------------
def fold_weight_norm(v, g):
    """Fold PyTorch nn.utils.weight_norm into a plain weight.

    `v` is the direction weight in transposed (in_dim, out_dim) layout and `g`
    is the per-output-unit gain of shape (1, out_dim) (PyTorch dim=0 over the
    (out, in) weight == per column here).  Returns g * v / ||v||_col.
    """
    norm = jnp.sqrt(jnp.sum(v * v, axis=0, keepdims=True))
    return v * (g / norm)


# ----------------------------------------------------------------------------
# Deterministic parameter construction (geometric_init=True, bias=1.0)
# ----------------------------------------------------------------------------
def init_params(key, feature_vector_size, d_in, d_out, dims, bias=1.0):
    dims = [d_in + feature_vector_size] + list(dims) + [d_out]
    num_layers = len(dims)
    params = []
    keys = jax.random.split(key, num_layers - 1)
    for l in range(num_layers - 1):
        in_dim, out_dim = dims[l], dims[l + 1]
        if l == num_layers - 2:
            # last layer: normal(mean=sqrt(pi)/sqrt(in_dim), std=1e-4), bias=-bias
            w = (np.sqrt(np.pi) / np.sqrt(in_dim)
                 + 1e-4 * jax.random.normal(keys[l], (in_dim, out_dim), jnp.float32))
            b = jnp.full((1, out_dim), -bias, jnp.float32)
        else:
            # hidden layers: normal(0, sqrt(2)/sqrt(out_dim)), bias=0
            w = (np.sqrt(2.0) / np.sqrt(out_dim)
                 * jax.random.normal(keys[l], (in_dim, out_dim), jnp.float32))
            b = jnp.zeros((1, out_dim), jnp.float32)
        params.extend([w, b])
    return tuple(params)


def reference_forward(points, normals, feature_vectors, params):
    """Pure-JAX reference of the PyTorch forward."""
    w0, b0, w1, b1, w2, b2 = params
    x = jnp.concatenate([points, normals, feature_vectors], axis=-1)
    x = jnp.maximum(x @ w0 + b0, 0.0)
    x = jnp.maximum(x @ w1 + b1, 0.0)
    x = x @ w2 + b2
    offsets = x[:, :6].reshape(-1, 2, 3)
    return points[:, None, :] + offsets


if __name__ == "__main__":
    # Small shapes consistent with the module:
    # points (N,3), normals (N,3), feature_vectors (N, F).
    # N deliberately not a multiple of 8 to exercise the pad path; the wrapper
    # auto-splits the row axis into >= 2 grid steps (both v7x TensorCores busy).
    N = 1000
    feature_vector_size = 32
    d_in = 6                 # 3 (points) + 3 (normals)
    d_out = 7                # >= 6 (first 6 channels become 2x3 offsets)
    hidden_dims = [64, 64]

    key = jax.random.PRNGKey(0)
    kp, kn, kf, kw = jax.random.split(key, 4)
    points = jax.random.normal(kp, (N, 3), jnp.float32)
    normals = jax.random.normal(kn, (N, 3), jnp.float32)
    feature_vectors = jax.random.normal(kf, (N, feature_vector_size), jnp.float32)

    params = init_params(kw, feature_vector_size, d_in, d_out, hidden_dims, bias=1.0)
    # TODO(synk): for trained weight_norm checkpoints, replace each weight with
    # fold_weight_norm(v, g) before calling attraction_field_forward.

    lines = attraction_field_forward(points, normals, feature_vectors, params)
    lines = jax.block_until_ready(lines)

    ref = reference_forward(points, normals, feature_vectors, params)
    np.testing.assert_allclose(np.asarray(lines), np.asarray(ref), rtol=1e-5, atol=1e-5)

    assert lines.shape == (N, 2, 3)
    print("KERNEL_OK")
</pallas_src>

<mosaic_0001>
module attributes {stable_mosaic.version = 11 : i64} {
  func.func @afn_kernel(%arg0: i32, %arg1: memref<504x3xf32, #tpu.memory_space<vmem>>, %arg2: memref<504x3xf32, #tpu.memory_space<vmem>>, %arg3: memref<504x32xf32, #tpu.memory_space<vmem>>, %arg4: memref<3x64xf32, #tpu.memory_space<vmem>>, %arg5: memref<3x64xf32, #tpu.memory_space<vmem>>, %arg6: memref<32x64xf32, #tpu.memory_space<vmem>>, %arg7: memref<1x64xf32, #tpu.memory_space<vmem>>, %arg8: memref<64x64xf32, #tpu.memory_space<vmem>>, %arg9: memref<1x64xf32, #tpu.memory_space<vmem>>, %arg10: memref<64x6xf32, #tpu.memory_space<vmem>>, %arg11: memref<1x6xf32, #tpu.memory_space<vmem>>, %arg12: memref<504x6xf32, #tpu.memory_space<vmem>>) attributes {dimension_semantics = [#tpu.dimension_semantics<parallel>], iteration_bounds = array<i64: 2>, scalar_prefetch = 0 : i64, scratch_operands = 0 : i64, tpu.core_type = #tpu.core_type<tc>, window_params = [{transform_indices = @transform_0, window_bounds = array<i64: 504, 3>}, {transform_indices = @transform_1, window_bounds = array<i64: 504, 3>}, {transform_indices = @transform_2, window_bounds = array<i64: 504, 32>}, {pipeline_mode = #tpu.pipeline_mode<synchronous>, transform_indices = @transform_3, window_bounds = array<i64: 3, 64>}, {pipeline_mode = #tpu.pipeline_mode<synchronous>, transform_indices = @transform_4, window_bounds = array<i64: 3, 64>}, {pipeline_mode = #tpu.pipeline_mode<synchronous>, transform_indices = @transform_5, window_bounds = array<i64: 32, 64>}, {pipeline_mode = #tpu.pipeline_mode<synchronous>, transform_indices = @transform_6, window_bounds = array<i64: 1, 64>}, {pipeline_mode = #tpu.pipeline_mode<synchronous>, transform_indices = @transform_7, window_bounds = array<i64: 64, 64>}, {pipeline_mode = #tpu.pipeline_mode<synchronous>, transform_indices = @transform_8, window_bounds = array<i64: 1, 64>}, {pipeline_mode = #tpu.pipeline_mode<synchronous>, transform_indices = @transform_9, window_bounds = array<i64: 64, 6>}, {pipeline_mode = #tpu.pipeline_mode<synchronous>, transform_indices = @transform_10, window_bounds = array<i64: 1, 6>}, {transform_indices = @transform_11, window_bounds = array<i64: 504, 6>}]} {
    %c0 = arith.constant 0 : index
    %c0_0 = arith.constant 0 : index
    %0 = vector.load %arg1[%c0, %c0_0] : memref<504x3xf32, #tpu.memory_space<vmem>>, vector<504x3xf32>
    %c0_1 = arith.constant 0 : index
    %c0_2 = arith.constant 0 : index
    %1 = vector.load %arg2[%c0_1, %c0_2] : memref<504x3xf32, #tpu.memory_space<vmem>>, vector<504x3xf32>
    %c0_3 = arith.constant 0 : index
    %c0_4 = arith.constant 0 : index
    %2 = vector.load %arg3[%c0_3, %c0_4] : memref<504x32xf32, #tpu.memory_space<vmem>>, vector<504x32xf32>
    %c0_5 = arith.constant 0 : index
    %c0_6 = arith.constant 0 : index
    %3 = vector.load %arg6[%c0_5, %c0_6] : memref<32x64xf32, #tpu.memory_space<vmem>>, vector<32x64xf32>
    %cst = arith.constant dense<0.000000e+00> : vector<504x64xf32>
    %4 = tpu.matmul %2, %3, %cst {dimension_numbers = #tpu.dot_dimension_numbers<[1], [0], [0], [1], [0, 0, 1, 1], [], []>} : vector<504x32xf32>, vector<32x64xf32>, vector<504x64xf32> -> vector<504x64xf32>
    %c0_7 = arith.constant 0 : index
    %c0_8 = arith.constant 0 : index
    %5 = vector.load %arg4[%c0_7, %c0_8] : memref<3x64xf32, #tpu.memory_space<vmem>>, vector<3x64xf32>
    %cst_9 = arith.constant dense<0.000000e+00> : vector<504x64xf32>
    %6 = tpu.matmul %0, %5, %cst_9 {dimension_numbers = #tpu.dot_dimension_numbers<[1], [0], [0], [1], [0, 0, 1, 1], [], []>} : vector<504x3xf32>, vector<3x64xf32>, vector<504x64xf32> -> vector<504x64xf32>
    %7 = arith.addf %4, %6 : vector<504x64xf32>
    %c0_10 = arith.constant 0 : index
    %c0_11 = arith.constant 0 : index
    %8 = vector.load %arg5[%c0_10, %c0_11] : memref<3x64xf32, #tpu.memory_space<vmem>>, vector<3x64xf32>
    %cst_12 = arith.constant dense<0.000000e+00> : vector<504x64xf32>
    %9 = tpu.matmul %1, %8, %cst_12 {dimension_numbers = #tpu.dot_dimension_numbers<[1], [0], [0], [1], [0, 0, 1, 1], [], []>} : vector<504x3xf32>, vector<3x64xf32>, vector<504x64xf32> -> vector<504x64xf32>
    %10 = arith.addf %7, %9 : vector<504x64xf32>
    %c0_13 = arith.constant 0 : index
    %c0_14 = arith.constant 0 : index
    %11 = vector.load %arg7[%c0_13, %c0_14] : memref<1x64xf32, #tpu.memory_space<vmem>>, vector<1x64xf32>
    %12 = vector.broadcast %11 : vector<1x64xf32> to vector<504x64xf32>
    %13 = arith.addf %10, %12 : vector<504x64xf32>
    %cst_15 = arith.constant 0.000000e+00 : f32
    %14 = vector.broadcast %cst_15 : f32 to vector<504x64xf32>
    %15 = arith.maximumf %13, %14 : vector<504x64xf32>
    %c0_16 = arith.constant 0 : index
    %c0_17 = arith.constant 0 : index
    %16 = vector.load %arg8[%c0_16, %c0_17] : memref<64x64xf32, #tpu.memory_space<vmem>>, vector<64x64xf32>
    %cst_18 = arith.constant dense<0.000000e+00> : vector<504x64xf32>
    %17 = tpu.matmul %15, %16, %cst_18 {dimension_numbers = #tpu.dot_dimension_numbers<[1], [0], [0], [1], [0, 0, 1, 1], [], []>} : vector<504x64xf32>, vector<64x64xf32>, vector<504x64xf32> -> vector<504x64xf32>
    %c0_19 = arith.constant 0 : index
    %c0_20 = arith.constant 0 : index
    %18 = vector.load %arg9[%c0_19, %c0_20] : memref<1x64xf32, #tpu.memory_space<vmem>>, vector<1x64xf32>
    %19 = vector.broadcast %18 : vector<1x64xf32> to vector<504x64xf32>
    %20 = arith.addf %17, %19 : vector<504x64xf32>
    %cst_21 = arith.constant 0.000000e+00 : f32
    %21 = vector.broadcast %cst_21 : f32 to vector<504x64xf32>
    %22 = arith.maximumf %20, %21 : vector<504x64xf32>
    %c0_22 = arith.constant 0 : index
    %c0_23 = arith.constant 0 : index
    %23 = vector.load %arg10[%c0_22, %c0_23] : memref<64x6xf32, #tpu.memory_space<vmem>>, vector<64x6xf32>
    %cst_24 = arith.constant dense<0.000000e+00> : vector<504x6xf32>
    %24 = tpu.matmul %22, %23, %cst_24 {dimension_numbers = #tpu.dot_dimension_numbers<[1], [0], [0], [1], [0, 0, 1, 1], [], []>} : vector<504x64xf32>, vector<64x6xf32>, vector<504x6xf32> -> vector<504x6xf32>
    %c0_25 = arith.constant 0 : index
    %c0_26 = arith.constant 0 : index
    %25 = vector.load %arg11[%c0_25, %c0_26] : memref<1x6xf32, #tpu.memory_space<vmem>>, vector<1x6xf32>
    %26 = vector.broadcast %25 : vector<1x6xf32> to vector<504x6xf32>
    %27 = arith.addf %24, %26 : vector<504x6xf32>
    %28 = vector.extract_strided_slice %27 {offsets = [0, 0], sizes = [504, 3], strides = [1, 1]} : vector<504x6xf32> to vector<504x3xf32>
    %29 = arith.addf %0, %28 : vector<504x3xf32>
    %c0_27 = arith.constant 0 : index
    %c0_28 = arith.constant 0 : index
    %30 = vector.load %arg12[%c0_27, %c0_28] : memref<504x6xf32, #tpu.memory_space<vmem>>, vector<504x3xf32>
    tpu.vector_store %arg12[%c0_27, %c0_28], %29 {strides = array<i32>} : memref<504x6xf32, #tpu.memory_space<vmem>>, vector<504x3xf32>,
    %31 = vector.extract_strided_slice %27 {offsets = [0, 3], sizes = [504, 3], strides = [1, 1]} : vector<504x6xf32> to vector<504x3xf32>
    %32 = arith.addf %0, %31 : vector<504x3xf32>
    %c0_29 = arith.constant 0 : index
    %c3 = arith.constant 3 : index
    %33 = vector.load %arg12[%c0_29, %c3] : memref<504x6xf32, #tpu.memory_space<vmem>>, vector<504x3xf32>
    tpu.vector_store %arg12[%c0_29, %c3], %32 {strides = array<i32>} : memref<504x6xf32, #tpu.memory_space<vmem>>, vector<504x3xf32>,
    return
  }
  func.func @transform_0(%arg0: i32) -> (i32, i32) {
    %c0_i32 = arith.constant 0 : i32
    %c0_i32_0 = arith.constant 0 : i32
    return %arg0, %c0_i32 : i32, i32
  }
  func.func @transform_1(%arg0: i32) -> (i32, i32) {
    %c0_i32 = arith.constant 0 : i32
    %c0_i32_0 = arith.constant 0 : i32
    return %arg0, %c0_i32 : i32, i32
  }
  func.func @transform_2(%arg0: i32) -> (i32, i32) {
    %c0_i32 = arith.constant 0 : i32
    %c0_i32_0 = arith.constant 0 : i32
    return %arg0, %c0_i32 : i32, i32
  }
  func.func @transform_3(%arg0: i32) -> (i32, i32) {
    %c0_i32 = arith.constant 0 : i32
    %c0_i32_0 = arith.constant 0 : i32
    %c0_i32_1 = arith.constant 0 : i32
    return %c0_i32, %c0_i32_0 : i32, i32
  }
  func.func @transform_4(%arg0: i32) -> (i32, i32) {
    %c0_i32 = arith.constant 0 : i32
    %c0_i32_0 = arith.constant 0 : i32
    %c0_i32_1 = arith.constant 0 : i32
    return %c0_i32, %c0_i32_0 : i32, i32
  }
  func.func @transform_5(%arg0: i32) -> (i32, i32) {
    %c0_i32 = arith.constant 0 : i32
    %c0_i32_0 = arith.constant 0 : i32
    %c0_i32_1 = arith.constant 0 : i32
    return %c0_i32, %c0_i32_0 : i32, i32
  }
  func.func @transform_6(%arg0: i32) -> (i32, i32) {
    %c0_i32 = arith.constant 0 : i32
    %c0_i32_0 = arith.constant 0 : i32
    %c0_i32_1 = arith.constant 0 : i32
    return %c0_i32, %c0_i32_0 : i32, i32
  }
  func.func @transform_7(%arg0: i32) -> (i32, i32) {
    %c0_i32 = arith.constant 0 : i32
    %c0_i32_0 = arith.constant 0 : i32
    %c0_i32_1 = arith.constant 0 : i32
    return %c0_i32, %c0_i32_0 : i32, i32
  }
  func.func @transform_8(%arg0: i32) -> (i32, i32) {
    %c0_i32 = arith.constant 0 : i32
    %c0_i32_0 = arith.constant 0 : i32
    %c0_i32_1 = arith.constant 0 : i32
    return %c0_i32, %c0_i32_0 : i32, i32
  }
  func.func @transform_9(%arg0: i32) -> (i32, i32) {
    %c0_i32 = arith.constant 0 : i32
    %c0_i32_0 = arith.constant 0 : i32
    %c0_i32_1 = arith.constant 0 : i32
    return %c0_i32, %c0_i32_0 : i32, i32
  }
  func.func @transform_10(%arg0: i32) -> (i32, i32) {
    %c0_i32 = arith.constant 0 : i32
    %c0_i32_0 = arith.constant 0 : i32
    %c0_i32_1 = arith.constant 0 : i32
    return %c0_i32, %c0_i32_0 : i32, i32
  }
  func.func @transform_11(%arg0: i32) -> (i32, i32) {
    %c0_i32 = arith.constant 0 : i32
    %c0_i32_0 = arith.constant 0 : i32
    return %arg0, %c0_i32 : i32, i32
  }
}

</mosaic_0001>

<llo_original>
// kernel: tpu_custom_call.1
$region0: #{tpu_custom_call.1}
  #allocation0 [shape = 'u32[]', space=smem, size = 0x4, offset = 0x4, fixed_abs, tag = 'smem constant byte address 0x4 - core index']
  #allocation1 [shape = 'u32[144,128]{1,0:T(1,128)}', space=vmem, size = 0x12000, scoped, tag = 'internal scratch']
  %s0 = inlined_call_operand.vmem [shape: f32[1008,3], index: 0, kind: input, shape index: {}]
  %s1 = inlined_call_operand.vmem [shape: f32[1008,3], index: 1, kind: input, shape index: {}]
  %s2 = inlined_call_operand.vmem [shape: f32[1008,32], index: 2, kind: input, shape index: {}]
  %s3 = inlined_call_operand.vmem [shape: f32[3,64], index: 3, kind: input, shape index: {}]
  %s4 = inlined_call_operand.vmem [shape: f32[3,64], index: 4, kind: input, shape index: {}]
  %s5 = inlined_call_operand.vmem [shape: f32[32,64], index: 5, kind: input, shape index: {}]
  %s6 = inlined_call_operand.vmem [shape: f32[1,64], index: 6, kind: input, shape index: {}]
  %s7 = inlined_call_operand.vmem [shape: f32[64,64], index: 7, kind: input, shape index: {}]
  %s8 = inlined_call_operand.vmem [shape: f32[1,64], index: 8, kind: input, shape index: {}]
  %s9 = inlined_call_operand.vmem [shape: f32[64,6], index: 9, kind: input, shape index: {}]
  %s10 = inlined_call_operand.vmem [shape: f32[1,6], index: 10, kind: input, shape index: {}]
  %s11 = inlined_call_operand.vmem [shape: f32[1008,6], index: 11, kind: output, shape index: {}]
  %s12 = sld [smem:[#allocation0]]
  $region77: #{tpu_custom_call.1} parent=0
    _
  %s14 = ssub.s32 1, %s12
  %s15 = scalar_select 0, %s14, %s12
  loop: start=0, step=1, limit=4
  $region2: #{tpu_custom_call.1} parent=0 // loop_pre_header
    _
  $region3: #{tpu_custom_call.1} parent=0 // loop_header
    %s17 = sphi 0, %s21
    %p18 = scmp.ge.s32.totalorder %s17, 4
    %s27 = sphi 0, %s29
    %s30 = sphi 0, %s27
    %s31 = sphi 0, %s30
    %s47 = sphi 0, %s31
    %s53 = sphi 0, %s55
    %s56 = sphi 0, %s53
    %s57 = sphi 0, %s56
    %s73 = sphi 0, %s57
    %s79 = sphi 0, %s81
    %s82 = sphi 0, %s79
    %s83 = sphi 0, %s82
    %s99 = sphi 0, %s83
    %s103 = sphi 0, %s103
    %s105 = sphi 0, %s103
    %s106 = sphi 0, %s105
    %s120 = sphi 0, %s106
    %s124 = sphi 0, %s124
    %s126 = sphi 0, %s124
    %s127 = sphi 0, %s126
    %s141 = sphi 0, %s127
    %s145 = sphi 0, %s145
    %s147 = sphi 0, %s145
    %s148 = sphi 0, %s147
    %s162 = sphi 0, %s148
    %s166 = sphi 0, %s166
    %s168 = sphi 0, %s166
    %s169 = sphi 0, %s168
    %s183 = sphi 0, %s169
    %s187 = sphi 0, %s187
    %s189 = sphi 0, %s187
    %s190 = sphi 0, %s189
    %s204 = sphi 0, %s190
    %s208 = sphi 0, %s208
    %s210 = sphi 0, %s208
    %s211 = sphi 0, %s210
    %s225 = sphi 0, %s211
    %s229 = sphi 0, %s229
    %s231 = sphi 0, %s229
    %s232 = sphi 0, %s231
    %s246 = sphi 0, %s232
    %s250 = sphi 0, %s250
    %s252 = sphi 0, %s250
    %s253 = sphi 0, %s252
    %s267 = sphi 0, %s253
    %s273 = sphi 0, %s275
    %s276 = sphi 0, %s273
    %s277 = sphi 0, %s276
    %s293 = sphi 0, %s277
  $region4: #{tpu_custom_call.1} parent=0 // loop_header_branch
    %20 = sbr.rel (%p18) target = $region8
  $region5: #{tpu_custom_call.1} parent=0 // loop_body
    %s22 = ssub.s32 %s17, 1
    %s23 = ssub.s32 %s17, 2
    %s24 = sadd.s32 %s17, 1
    %s25 = ssub.s32 %s17, %s24
    %p26 = scmp.eq.s32.totalorder %s25, 0
    %s28 = sadd.s32 %s27, 1
    %s29 = scalar_select %p26, %s27, %s28
    %p32 = pneg %p26
    %p33 = scmp.eq.s32.totalorder %s17, 1
    %p34 = por %p32, %p33
    %p35 = scmp.ne.s32.totalorder %s27, %s30
    %p36 = scmp.eq.s32.totalorder %s17, 0
    %p37 = por %p35, %p36
    %p38 = scmp.ne.s32.totalorder %s27, %s30
    %p39 = scmp.eq.s32.totalorder %s22, 1
    %p40 = por %p38, %p39
    %p41 = scmp.ne.s32.totalorder %s30, %s31
    %p42 = scmp.eq.s32.totalorder %s22, 0
    %p43 = por %p41, %p42
    %p44 = scmp.ne.s32.totalorder %s30, %s31
    %p45 = scmp.eq.s32.totalorder %s23, 1
    %p46 = por %p44, %p45
    %p48 = scmp.ne.s32.totalorder %s31, %s47
    %p49 = scmp.eq.s32.totalorder %s23, 0
    %p50 = por %p48, %p49
    %s51 = ssub.s32 %s17, %s24
    %p52 = scmp.eq.s32.totalorder %s51, 0
    %s54 = sadd.s32 %s53, 1
    %s55 = scalar_select %p52, %s53, %s54
    %p58 = pneg %p52
    %p59 = scmp.eq.s32.totalorder %s17, 1
    %p60 = por %p58, %p59
    %p61 = scmp.ne.s32.totalorder %s53, %s56
    %p62 = scmp.eq.s32.totalorder %s17, 0
    %p63 = por %p61, %p62
    %p64 = scmp.ne.s32.totalorder %s53, %s56
    %p65 = scmp.eq.s32.totalorder %s22, 1
    %p66 = por %p64, %p65
    %p67 = scmp.ne.s32.totalorder %s56, %s57
    %p68 = scmp.eq.s32.totalorder %s22, 0
    %p69 = por %p67, %p68
    %p70 = scmp.ne.s32.totalorder %s56, %s57
    %p71 = scmp.eq.s32.totalorder %s23, 1
    %p72 = por %p70, %p71
    %p74 = scmp.ne.s32.totalorder %s57, %s73
    %p75 = scmp.eq.s32.totalorder %s23, 0
    %p76 = por %p74, %p75
    %s77 = ssub.s32 %s17, %s24
    %p78 = scmp.eq.s32.totalorder %s77, 0
    %s80 = sadd.s32 %s79, 1
    %s81 = scalar_select %p78, %s79, %s80
    %p84 = pneg %p78
    %p85 = scmp.eq.s32.totalorder %s17, 1
    %p86 = por %p84, %p85
    %p87 = scmp.ne.s32.totalorder %s79, %s82
    %p88 = scmp.eq.s32.totalorder %s17, 0
    %p89 = por %p87, %p88
    %p90 = scmp.ne.s32.totalorder %s79, %s82
    %p91 = scmp.eq.s32.totalorder %s22, 1
    %p92 = por %p90, %p91
    %p93 = scmp.ne.s32.totalorder %s82, %s83
    %p94 = scmp.eq.s32.totalorder %s22, 0
    %p95 = por %p93, %p94
    %p96 = scmp.ne.s32.totalorder %s82, %s83
    %p97 = scmp.eq.s32.totalorder %s23, 1
    %p98 = por %p96, %p97
    %p100 = scmp.ne.s32.totalorder %s83, %s99
    %p101 = scmp.eq.s32.totalorder %s23, 0
    %p102 = por %p100, %p101
    %s104 = sadd.s32 %s103, 1
    %p107 = scmp.eq.s32.totalorder %s17, 1
    %p108 = scmp.ne.s32.totalorder %s103, %s105
    %p109 = scmp.eq.s32.totalorder %s17, 0
    %p110 = por %p108, %p109
    %p111 = scmp.ne.s32.totalorder %s103, %s105
    %p112 = scmp.eq.s32.totalorder %s22, 1
    %p113 = por %p111, %p112
    %p114 = scmp.ne.s32.totalorder %s105, %s106
    %p115 = scmp.eq.s32.totalorder %s22, 0
    %p116 = por %p114, %p115
    %p117 = scmp.ne.s32.totalorder %s105, %s106
    %p118 = scmp.eq.s32.totalorder %s23, 1
    %p119 = por %p117, %p118
    %p121 = scmp.ne.s32.totalorder %s106, %s120
    %p122 = scmp.eq.s32.totalorder %s23, 0
    %p123 = por %p121, %p122
    %s125 = sadd.s32 %s124, 1
    %p128 = scmp.eq.s32.totalorder %s17, 1
    %p129 = scmp.ne.s32.totalorder %s124, %s126
    %p130 = scmp.eq.s32.totalorder %s17, 0
    %p131 = por %p129, %p130
    %p132 = scmp.ne.s32.totalorder %s124, %s126
    %p133 = scmp.eq.s32.totalorder %s22, 1
    %p134 = por %p132, %p133
    %p135 = scmp.ne.s32.totalorder %s126, %s127
    %p136 = scmp.eq.s32.totalorder %s22, 0
    %p137 = por %p135, %p136
    %p138 = scmp.ne.s32.totalorder %s126, %s127
    %p139 = scmp.eq.s32.totalorder %s23, 1
    %p140 = por %p138, %p139
    %p142 = scmp.ne.s32.totalorder %s127, %s141
    %p143 = scmp.eq.s32.totalorder %s23, 0
    %p144 = por %p142, %p143
    %s146 = sadd.s32 %s145, 1
    %p149 = scmp.eq.s32.totalorder %s17, 1
    %p150 = scmp.ne.s32.totalorder %s145, %s147
    %p151 = scmp.eq.s32.totalorder %s17, 0
    %p152 = por %p150, %p151
    %p153 = scmp.ne.s32.totalorder %s145, %s147
    %p154 = scmp.eq.s32.totalorder %s22, 1
    %p155 = por %p153, %p154
    %p156 = scmp.ne.s32.totalorder %s147, %s148
    %p157 = scmp.eq.s32.totalorder %s22, 0
    %p158 = por %p156, %p157
    %p159 = scmp.ne.s32.totalorder %s147, %s148
    %p160 = scmp.eq.s32.totalorder %s23, 1
    %p161 = por %p159, %p160
    %p163 = scmp.ne.s32.totalorder %s148, %s162
    %p164 = scmp.eq.s32.totalorder %s23, 0
    %p165 = por %p163, %p164
    %s167 = sadd.s32 %s166, 1
    %p170 = scmp.eq.s32.totalorder %s17, 1
    %p171 = scmp.ne.s32.totalorder %s166, %s168
    %p172 = scmp.eq.s32.totalorder %s17, 0
    %p173 = por %p171, %p172
    %p174 = scmp.ne.s32.totalorder %s166, %s168
    %p175 = scmp.eq.s32.totalorder %s22, 1
    %p176 = por %p174, %p175
    %p177 = scmp.ne.s32.totalorder %s168, %s169
    %p178 = scmp.eq.s32.totalorder %s22, 0
    %p179 = por %p177, %p178
    %p180 = scmp.ne.s32.totalorder %s168, %s169
    %p181 = scmp.eq.s32.totalorder %s23, 1
    %p182 = por %p180, %p181
    %p184 = scmp.ne.s32.totalorder %s169, %s183
    %p185 = scmp.eq.s32.totalorder %s23, 0
    %p186 = por %p184, %p185
    %s188 = sadd.s32 %s187, 1
    %p191 = scmp.eq.s32.totalorder %s17, 1
    %p192 = scmp.ne.s32.totalorder %s187, %s189
    %p193 = scmp.eq.s32.totalorder %s17, 0
    %p194 = por %p192, %p193
    %p195 = scmp.ne.s32.totalorder %s187, %s189
    %p196 = scmp.eq.s32.totalorder %s22, 1
    %p197 = por %p195, %p196
    %p198 = scmp.ne.s32.totalorder %s189, %s190
    %p199 = scmp.eq.s32.totalorder %s22, 0
    %p200 = por %p198, %p199
    %p201 = scmp.ne.s32.totalorder %s189, %s190
    %p202 = scmp.eq.s32.totalorder %s23, 1
    %p203 = por %p201, %p202
    %p205 = scmp.ne.s32.totalorder %s190, %s204
    %p206 = scmp.eq.s32.totalorder %s23, 0
    %p207 = por %p205, %p206
    %s209 = sadd.s32 %s208, 1
    %p212 = scmp.eq.s32.totalorder %s17, 1
    %p213 = scmp.ne.s32.totalorder %s208, %s210
    %p214 = scmp.eq.s32.totalorder %s17, 0
    %p215 = por %p213, %p214
    %p216 = scmp.ne.s32.totalorder %s208, %s210
    %p217 = scmp.eq.s32.totalorder %s22, 1
    %p218 = por %p216, %p217
    %p219 = scmp.ne.s32.totalorder %s210, %s211
    %p220 = scmp.eq.s32.totalorder %s22, 0
    %p221 = por %p219, %p220
    %p222 = scmp.ne.s32.totalorder %s210, %s211
    %p223 = scmp.eq.s32.totalorder %s23, 1
    %p224 = por %p222, %p223
    %p226 = scmp.ne.s32.totalorder %s211, %s225
    %p227 = scmp.eq.s32.totalorder %s23, 0
    %p228 = por %p226, %p227
    %s230 = sadd.s32 %s229, 1
    %p233 = scmp.eq.s32.totalorder %s17, 1
    %p234 = scmp.ne.s32.totalorder %s229, %s231
    %p235 = scmp.eq.s32.totalorder %s17, 0
    %p236 = por %p234, %p235
    %p237 = scmp.ne.s32.totalorder %s229, %s231
    %p238 = scmp.eq.s32.totalorder %s22, 1
    %p239 = por %p237, %p238
    %p240 = scmp.ne.s32.totalorder %s231, %s232
    %p241 = scmp.eq.s32.totalorder %s22, 0
    %p242 = por %p240, %p241
    %p243 = scmp.ne.s32.totalorder %s231, %s232
    %p244 = scmp.eq.s32.totalorder %s23, 1
    %p245 = por %p243, %p244
    %p247 = scmp.ne.s32.totalorder %s232, %s246
    %p248 = scmp.eq.s32.totalorder %s23, 0
    %p249 = por %p247, %p248
    %s251 = sadd.s32 %s250, 1
    %p254 = scmp.eq.s32.totalorder %s17, 1
    %p255 = scmp.ne.s32.totalorder %s250, %s252
    %p256 = scmp.eq.s32.totalorder %s17, 0
    %p257 = por %p255, %p256
    %p258 = scmp.ne.s32.totalorder %s250, %s252
    %p259 = scmp.eq.s32.totalorder %s22, 1
    %p260 = por %p258, %p259
    %p261 = scmp.ne.s32.totalorder %s252, %s253
    %p262 = scmp.eq.s32.totalorder %s22, 0
    %p263 = por %p261, %p262
    %p264 = scmp.ne.s32.totalorder %s252, %s253
    %p265 = scmp.eq.s32.totalorder %s23, 1
    %p266 = por %p264, %p265
    %p268 = scmp.ne.s32.totalorder %s253, %s267
    %p269 = scmp.eq.s32.totalorder %s23, 0
    %p270 = por %p268, %p269
    %s271 = ssub.s32 %s17, %s24
    %p272 = scmp.eq.s32.totalorder %s271, 0
    %s274 = sadd.s32 %s273, 1
    %s275 = scalar_select %p272, %s273, %s274
    %p278 = pneg %p272
    %p279 = scmp.eq.s32.totalorder %s17, 1
    %p280 = por %p278, %p279
    %p281 = scmp.ne.s32.totalorder %s273, %s276
    %p282 = scmp.eq.s32.totalorder %s17, 0
    %p283 = por %p281, %p282
    %p284 = scmp.ne.s32.totalorder %s273, %s276
    %p285 = scmp.eq.s32.totalorder %s22, 1
    %p286 = por %p284, %p285
    %p287 = scmp.ne.s32.totalorder %s276, %s277
    %p288 = scmp.eq.s32.totalorder %s22, 0
    %p289 = por %p287, %p288
    %p290 = scmp.ne.s32.totalorder %s276, %s277
    %p291 = scmp.eq.s32.totalorder %s23, 1
    %p292 = por %p290, %p291
    %p294 = scmp.ne.s32.totalorder %s277, %s293
    %p295 = scmp.eq.s32.totalorder %s23, 0
    %p296 = por %p294, %p295
    %p297 = scmp.le.s32.totalorder 1, %s17
    %p298 = scmp.lt.s32.totalorder %s17, 3
    %p299 = pnand %p297, %p298
    %p300 = pneg %p299
    // Predicated region
    $region9: #{tpu_custom_call.1} parent=5 // pred_check
      _
    $region10: #{tpu_custom_call.1} parent=5 // pred_check_branch
      %302 = sbr.rel (%p299) target = $region12
    $region11: #{tpu_custom_call.1} parent=5 // pred_region
      %s303 = ssub.s32 %s17, 1
      // Predicated region
      $region13: #{tpu_custom_call.1} parent=11 // pred_check
        %p304 = pneg %p116
      $region14: #{tpu_custom_call.1} parent=11 // pred_check_branch
        %306 = sbr.rel (%p304) target = $region16
      $region15: #{tpu_custom_call.1} parent=11 // pred_region
        _
      $region16: #{tpu_custom_call.1} parent=11 // pred_fallthru
        _
      // Predicated region
      $region17: #{tpu_custom_call.1} parent=11 // pred_check
        %p307 = pneg %p137
      $region18: #{tpu_custom_call.1} parent=11 // pred_check_branch
        %309 = sbr.rel (%p307) target = $region20
      $region19: #{tpu_custom_call.1} parent=11 // pred_region
        _
      $region20: #{tpu_custom_call.1} parent=11 // pred_fallthru
        _
      // Predicated region
      $region21: #{tpu_custom_call.1} parent=11 // pred_check
        %p310 = pneg %p158
      $region22: #{tpu_custom_call.1} parent=11 // pred_check_branch
        %312 = sbr.rel (%p310) target = $region24
      $region23: #{tpu_custom_call.1} parent=11 // pred_region
        _
      $region24: #{tpu_custom_call.1} parent=11 // pred_fallthru
        _
      // Predicated region
      $region25: #{tpu_custom_call.1} parent=11 // pred_check
        %p313 = pneg %p179
      $region26: #{tpu_custom_call.1} parent=11 // pred_check_branch
        %315 = sbr.rel (%p313) target = $region28
      $region27: #{tpu_custom_call.1} parent=11 // pred_region
        _
      $region28: #{tpu_custom_call.1} parent=11 // pred_fallthru
        _
      // Predicated region
      $region29: #{tpu_custom_call.1} parent=11 // pred_check
        %p316 = pneg %p200
      $region30: #{tpu_custom_call.1} parent=11 // pred_check_branch
        %318 = sbr.rel (%p316) target = $region32
      $region31: #{tpu_custom_call.1} parent=11 // pred_region
        _
      $region32: #{tpu_custom_call.1} parent=11 // pred_fallthru
        _
      // Predicated region
      $region33: #{tpu_custom_call.1} parent=11 // pred_check
        %p319 = pneg %p221
      $region34: #{tpu_custom_call.1} parent=11 // pred_check_branch
        %321 = sbr.rel (%p319) target = $region36
      $region35: #{tpu_custom_call.1} parent=11 // pred_region
        _
      $region36: #{tpu_custom_call.1} parent=11 // pred_fallthru
        _
      // Predicated region
      $region37: #{tpu_custom_call.1} parent=11 // pred_check
        %p322 = pneg %p242
      $region38: #{tpu_custom_call.1} parent=11 // pred_check_branch
        %324 = sbr.rel (%p322) target = $region40
      $region39: #{tpu_custom_call.1} parent=11 // pred_region
        _
      $region40: #{tpu_custom_call.1} parent=11 // pred_fallthru
        _
      // Predicated region
      $region41: #{tpu_custom_call.1} parent=11 // pred_check
        %p325 = pneg %p263
      $region42: #{tpu_custom_call.1} parent=11 // pred_check_branch
        %327 = sbr.rel (%p325) target = $region44
      $region43: #{tpu_custom_call.1} parent=11 // pred_region
        _
      $region44: #{tpu_custom_call.1} parent=11 // pred_fallthru
        _
    $region12: #{tpu_custom_call.1} parent=5 // pred_fallthru
      _
    %p328 = scmp.lt.s32.totalorder %s17, 2
    // Predicated region
    $region45: #{tpu_custom_call.1} parent=5 // pred_check
      %p329 = pneg %p328
    $region46: #{tpu_custom_call.1} parent=5 // pred_check_branch
      %331 = sbr.rel (%p329) target = $region48
    $region47: #{tpu_custom_call.1} parent=5 // pred_region
      // Predicated region
      $region49: #{tpu_custom_call.1} parent=47 // pred_check
        %p332 = pneg %p37
      $region50: #{tpu_custom_call.1} parent=47 // pred_check_branch
        %334 = sbr.rel (%p332) target = $region52
      $region51: #{tpu_custom_call.1} parent=47 // pred_region
        %s335 = smul.u32 63, %s17
        %p336 = scmp.lt.s32.totalorder %s335, 125
        %s337 = scalar_select %p336, %s335, 125
        %s338 = smul.addr %s337, 8
        %s339 = scalar_lea.vmem %s0, %s338
        %s340 = smul.u32 63, %s17
      $region52: #{tpu_custom_call.1} parent=47 // pred_fallthru
        _
      // Predicated region
      $region53: #{tpu_custom_call.1} parent=47 // pred_check
        %p341 = pneg %p63
      $region54: #{tpu_custom_call.1} parent=47 // pred_check_branch
        %343 = sbr.rel (%p341) target = $region56
      $region55: #{tpu_custom_call.1} parent=47 // pred_region
        %s344 = smul.u32 63, %s17
        %p345 = scmp.lt.s32.totalorder %s344, 125
        %s346 = scalar_select %p345, %s344, 125
        %s347 = smul.addr %s346, 8
        %s348 = scalar_lea.vmem %s1, %s347
        %s349 = smul.u32 63, %s17
      $region56: #{tpu_custom_call.1} parent=47 // pred_fallthru
        _
      // Predicated region
      $region57: #{tpu_custom_call.1} parent=47 // pred_check
        %p350 = pneg %p89
      $region58: #{tpu_custom_call.1} parent=47 // pred_check_branch
        %352 = sbr.rel (%p350) target = $region60
      $region59: #{tpu_custom_call.1} parent=47 // pred_region
        %s353 = smul.u32 63, %s17
        %p354 = scmp.lt.s32.totalorder %s353, 125
        %s355 = scalar_select %p354, %s353, 125
        %s356 = smul.addr %s355, 8
        %s357 = scalar_lea.vmem %s2, %s356
        %s358 = smul.u32 63, %s17
      $region60: #{tpu_custom_call.1} parent=47 // pred_fallthru
        _
    $region48: #{tpu_custom_call.1} parent=5 // pred_fallthru
      _
    %p359 = scmp.le.s32.totalorder 1, %s17
    %p360 = scmp.lt.s32.totalorder %s17, 3
    %p361 = pnand %p359, %p360
    %p362 = pneg %p361
    // Predicated region
    $region61: #{tpu_custom_call.1} parent=5 // pred_check
      _
    $region62: #{tpu_custom_call.1} parent=5 // pred_check_branch
      %364 = sbr.rel (%p361) target = $region64
    $region63: #{tpu_custom_call.1} parent=5 // pred_region
      %s365 = ssub.s32 %s17, 1
      %s366 = smul.u32 63, %s22
      %p367 = scmp.lt.s32.totalorder %s366, 125
      %s368 = scalar_select %p367, %s366, 125
      %s369 = smul.addr %s368, 8
      %s370 = scalar_lea.vmem %s0, %s369
      %p371 = pneg %p43
      %p372 = pneg %p40
      %s373 = smul.u32 63, %s22
      %p374 = scmp.lt.s32.totalorder %s373, 125
      %s375 = scalar_select %p374, %s373, 125
      %s376 = smul.addr %s375, 8
      %s377 = scalar_lea.vmem %s1, %s376
      %p378 = pneg %p69
      %p379 = pneg %p66
      %s380 = smul.u32 63, %s22
      %p381 = scmp.lt.s32.totalorder %s380, 125
      %s382 = scalar_select %p381, %s380, 125
      %s383 = smul.addr %s382, 8
      %s384 = scalar_lea.vmem %s2, %s383
      %p385 = pneg %p95
      %p386 = pneg %p92
      %p387 = pneg %p116
      %p388 = pneg %p113
      %p389 = pneg %p137
      %p390 = pneg %p134
      %p391 = pneg %p158
      %p392 = pneg %p155
      %p393 = pneg %p179
      %p394 = pneg %p176
      %p395 = pneg %p200
      %p396 = pneg %p197
      %p397 = pneg %p221
      %p398 = pneg %p218
      %p399 = pneg %p242
      %p400 = pneg %p239
      %p401 = pneg %p263
      %p402 = pneg %p260
      %p403 = pneg %p289
      %p404 = pneg %p286
      %s405 = smul.u32 63, %s22
      %p406 = scmp.lt.s32.totalorder %s405, 125
      %s407 = scalar_select %p406, %s405, 125
      %s408 = smul.addr %s407, 8
      %s409 = scalar_lea.vmem %s11, %s408
      %s410 = smul.u32 63, %s22
      %p411 = scmp.lt.s32.totalorder %s410, 125
      %s412 = scalar_select %p411, %s410, 125
      %s413 = smul.addr %s412, 8
      %s414 = scalar_lea.vmem %s0, %s413
      %s415 = smul.u32 63, %s22
      %s416 = smul.u32 63, %s22
      %p417 = scmp.lt.s32.totalorder %s416, 125
      %s418 = scalar_select %p417, %s416, 125
      %s419 = smul.addr %s418, 8
      %s420 = scalar_lea.vmem %s1, %s419
      %s421 = smul.u32 63, %s22
      %s422 = smul.u32 63, %s22
      %p423 = scmp.lt.s32.totalorder %s422, 125
      %s424 = scalar_select %p423, %s422, 125
      %s425 = smul.addr %s424, 8
      %s426 = scalar_lea.vmem %s2, %s425
      %s427 = smul.u32 63, %s22
      %s428 = smul.u32 63, %s22
      %p429 = scmp.lt.s32.totalorder %s428, 125
      %s430 = scalar_select %p429, %s428, 125
      %s431 = smul.addr %s430, 8
      %s432 = scalar_lea.vmem %s11, %s431
      %s433 = smul.u32 63, %s22
      %v434 = vld [vmem:[%s414] sm:$0xff]
      %v435 = vld [vmem:[%s414 + $0x8] sm:$0xff]
      %v436 = vld [vmem:[%s414 + $0x10] sm:$0xff]
      %v437 = vld [vmem:[%s414 + $0x18] sm:$0xff]
      %v438 = vld [vmem:[%s414 + $0x20] sm:$0xff]
      %v439 = vld [vmem:[%s414 + $0x28] sm:$0xff]
      %v440 = vld [vmem:[%s414 + $0x30] sm:$0xff]
      %v441 = vld [vmem:[%s414 + $0x38] sm:$0xff]
      %v442 = vld [vmem:[%s414 + $0x40] sm:$0xff]
      %v443 = vld [vmem:[%s414 + $0x48] sm:$0xff]
      %v444 = vld [vmem:[%s414 + $0x50] sm:$0xff]
      %v445 = vld [vmem:[%s414 + $0x58] sm:$0xff]
      %v446 = vld [vmem:[%s414 + $0x60] sm:$0xff]
      %v447 = vld [vmem:[%s414 + $0x68] sm:$0xff]
      %v448 = vld [vmem:[%s414 + $0x70] sm:$0xff]
      %v449 = vld [vmem:[%s414 + $0x78] sm:$0xff]
      %v450 = vld [vmem:[%s414 + $0x80] sm:$0xff]
      %v451 = vld [vmem:[%s414 + $0x88] sm:$0xff]
      %v452 = vld [vmem:[%s414 + $0x90] sm:$0xff]
      %v453 = vld [vmem:[%s414 + $0x98] sm:$0xff]
      %v454 = vld [vmem:[%s414 + $0xa0] sm:$0xff]
      %v455 = vld [vmem:[%s414 + $0xa8] sm:$0xff]
      %v456 = vld [vmem:[%s414 + $0xb0] sm:$0xff]
      %v457 = vld [vmem:[%s414 + $0xb8] sm:$0xff]
      %v458 = vld [vmem:[%s414 + $0xc0] sm:$0xff]
      %v459 = vld [vmem:[%s414 + $0xc8] sm:$0xff]
      %v460 = vld [vmem:[%s414 + $0xd0] sm:$0xff]
      %v461 = vld [vmem:[%s414 + $0xd8] sm:$0xff]
      %v462 = vld [vmem:[%s414 + $0xe0] sm:$0xff]
      %v463 = vld [vmem:[%s414 + $0xe8] sm:$0xff]
      %v464 = vld [vmem:[%s414 + $0xf0] sm:$0xff]
      %v465 = vld [vmem:[%s414 + $0xf8] sm:$0xff]
      %v466 = vld [vmem:[%s414 + $0x100] sm:$0xff]
      %v467 = vld [vmem:[%s414 + $0x108] sm:$0xff]
      %v468 = vld [vmem:[%s414 + $0x110] sm:$0xff]
      %v469 = vld [vmem:[%s414 + $0x118] sm:$0xff]
      %v470 = vld [vmem:[%s414 + $0x120] sm:$0xff]
      %v471 = vld [vmem:[%s414 + $0x128] sm:$0xff]
      %v472 = vld [vmem:[%s414 + $0x130] sm:$0xff]
      %v473 = vld [vmem:[%s414 + $0x138] sm:$0xff]
      %v474 = vld [vmem:[%s414 + $0x140] sm:$0xff]
      %v475 = vld [vmem:[%s414 + $0x148] sm:$0xff]
      %v476 = vld [vmem:[%s414 + $0x150] sm:$0xff]
      %v477 = vld [vmem:[%s414 + $0x158] sm:$0xff]
      %v478 = vld [vmem:[%s414 + $0x160] sm:$0xff]
      %v479 = vld [vmem:[%s414 + $0x168] sm:$0xff]
      %v480 = vld [vmem:[%s414 + $0x170] sm:$0xff]
      %v481 = vld [vmem:[%s414 + $0x178] sm:$0xff]
      %v482 = vld [vmem:[%s414 + $0x180] sm:$0xff]
      %v483 = vld [vmem:[%s414 + $0x188] sm:$0xff]
      %v484 = vld [vmem:[%s414 + $0x190] sm:$0xff]
      %v485 = vld [vmem:[%s414 + $0x198] sm:$0xff]
      %v486 = vld [vmem:[%s414 + $0x1a0] sm:$0xff]
      %v487 = vld [vmem:[%s414 + $0x1a8] sm:$0xff]
      %v488 = vld [vmem:[%s414 + $0x1b0] sm:$0xff]
      %v489 = vld [vmem:[%s414 + $0x1b8] sm:$0xff]
      %v490 = vld [vmem:[%s414 + $0x1c0] sm:$0xff]
      %v491 = vld [vmem:[%s414 + $0x1c8] sm:$0xff]
      %v492 = vld [vmem:[%s414 + $0x1d0] sm:$0xff]
      %v493 = vld [vmem:[%s414 + $0x1d8] sm:$0xff]
      %v494 = vld [vmem:[%s414 + $0x1e0] sm:$0xff]
      %v495 = vld [vmem:[%s414 + $0x1e8] sm:$0xff]
      %v496 = vld [vmem:[%s414 + $0x1f0] sm:$0xff]
      %v497 = vld [vmem:[%s420] sm:$0xff]
      %v498 = vld [vmem:[%s420 + $0x8] sm:$0xff]
      %v499 = vld [vmem:[%s420 + $0x10] sm:$0xff]
      %v500 = vld [vmem:[%s420 + $0x18] sm:$0xff]
      %v501 = vld [vmem:[%s420 + $0x20] sm:$0xff]
      %v502 = vld [vmem:[%s420 + $0x28] sm:$0xff]
      %v503 = vld [vmem:[%s420 + $0x30] sm:$0xff]
      %v504 = vld [vmem:[%s420 + $0x38] sm:$0xff]
      %v505 = vld [vmem:[%s420 + $0x40] sm:$0xff]
      %v506 = vld [vmem:[%s420 + $0x48] sm:$0xff]
      %v507 = vld [vmem:[%s420 + $0x50] sm:$0xff]
      %v508 = vld [vmem:[%s420 + $0x58] sm:$0xff]
      %v509 = vld [vmem:[%s420 + $0x60] sm:$0xff]
      %v510 = vld [vmem:[%s420 + $0x68] sm:$0xff]
      %v511 = vld [vmem:[%s420 + $0x70] sm:$0xff]
      %v512 = vld [vmem:[%s420 + $0x78] sm:$0xff]
      %v513 = vld [vmem:[%s420 + $0x80] sm:$0xff]
      %v514 = vld [vmem:[%s420 + $0x88] sm:$0xff]
      %v515 = vld [vmem:[%s420 + $0x90] sm:$0xff]
      %v516 = vld [vmem:[%s420 + $0x98] sm:$0xff]
      %v517 = vld [vmem:[%s420 + $0xa0] sm:$0xff]
      %v518 = vld [vmem:[%s420 + $0xa8] sm:$0xff]
      %v519 = vld [vmem:[%s420 + $0xb0] sm:$0xff]
      %v520 = vld [vmem:[%s420 + $0xb8] sm:$0xff]
      %v521 = vld [vmem:[%s420 + $0xc0] sm:$0xff]
      %v522 = vld [vmem:[%s420 + $0xc8] sm:$0xff]
      %v523 = vld [vmem:[%s420 + $0xd0] sm:$0xff]
      %v524 = vld [vmem:[%s420 + $0xd8] sm:$0xff]
      %v525 = vld [vmem:[%s420 + $0xe0] sm:$0xff]
      %v526 = vld [vmem:[%s420 + $0xe8] sm:$0xff]
      %v527 = vld [vmem:[%s420 + $0xf0] sm:$0xff]
      %v528 = vld [vmem:[%s420 + $0xf8] sm:$0xff]
      %v529 = vld [vmem:[%s420 + $0x100] sm:$0xff]
      %v530 = vld [vmem:[%s420 + $0x108] sm:$0xff]
      %v531 = vld [vmem:[%s420 + $0x110] sm:$0xff]
      %v532 = vld [vmem:[%s420 + $0x118] sm:$0xff]
      %v533 = vld [vmem:[%s420 + $0x120] sm:$0xff]
      %v534 = vld [vmem:[%s420 + $0x128] sm:$0xff]
      %v535 = vld [vmem:[%s420 + $0x130] sm:$0xff]
      %v536 = vld [vmem:[%s420 + $0x138] sm:$0xff]
      %v537 = vld [vmem:[%s420 + $0x140] sm:$0xff]
      %v538 = vld [vmem:[%s420 + $0x148] sm:$0xff]
      %v539 = vld [vmem:[%s420 + $0x150] sm:$0xff]
      %v540 = vld [vmem:[%s420 + $0x158] sm:$0xff]
      %v541 = vld [vmem:[%s420 + $0x160] sm:$0xff]
      %v542 = vld [vmem:[%s420 + $0x168] sm:$0xff]
      %v543 = vld [vmem:[%s420 + $0x170] sm:$0xff]
      %v544 = vld [vmem:[%s420 + $0x178] sm:$0xff]
      %v545 = vld [vmem:[%s420 + $0x180] sm:$0xff]
      %v546 = vld [vmem:[%s420 + $0x188] sm:$0xff]
      %v547 = vld [vmem:[%s420 + $0x190] sm:$0xff]
      %v548 = vld [vmem:[%s420 + $0x198] sm:$0xff]
      %v549 = vld [vmem:[%s420 + $0x1a0] sm:$0xff]
      %v550 = vld [vmem:[%s420 + $0x1a8] sm:$0xff]
      %v551 = vld [vmem:[%s420 + $0x1b0] sm:$0xff]
      %v552 = vld [vmem:[%s420 + $0x1b8] sm:$0xff]
      %v553 = vld [vmem:[%s420 + $0x1c0] sm:$0xff]
      %v554 = vld [vmem:[%s420 + $0x1c8] sm:$0xff]
      %v555 = vld [vmem:[%s420 + $0x1d0] sm:$0xff]
      %v556 = vld [vmem:[%s420 + $0x1d8] sm:$0xff]
      %v557 = vld [vmem:[%s420 + $0x1e0] sm:$0xff]
      %v558 = vld [vmem:[%s420 + $0x1e8] sm:$0xff]
      %v559 = vld [vmem:[%s420 + $0x1f0] sm:$0xff]
      %v560 = vld [vmem:[%s426] sm:$0xff]
      %v561 = vld [vmem:[%s426 + $0x8] sm:$0xff]
      %v562 = vld [vmem:[%s426 + $0x10] sm:$0xff]
      %v563 = vld [vmem:[%s426 + $0x18] sm:$0xff]
      %v564 = vld [vmem:[%s426 + $0x20] sm:$0xff]
      %v565 = vld [vmem:[%s426 + $0x28] sm:$0xff]
      %v566 = vld [vmem:[%s426 + $0x30] sm:$0xff]
      %v567 = vld [vmem:[%s426 + $0x38] sm:$0xff]
      %v568 = vld [vmem:[%s426 + $0x40] sm:$0xff]
      %v569 = vld [vmem:[%s426 + $0x48] sm:$0xff]
      %v570 = vld [vmem:[%s426 + $0x50] sm:$0xff]
      %v571 = vld [vmem:[%s426 + $0x58] sm:$0xff]
      %v572 = vld [vmem:[%s426 + $0x60] sm:$0xff]
      %v573 = vld [vmem:[%s426 + $0x68] sm:$0xff]
      %v574 = vld [vmem:[%s426 + $0x70] sm:$0xff]
      %v575 = vld [vmem:[%s426 + $0x78] sm:$0xff]
      %v576 = vld [vmem:[%s426 + $0x80] sm:$0xff]
      %v577 = vld [vmem:[%s426 + $0x88] sm:$0xff]
      %v578 = vld [vmem:[%s426 + $0x90] sm:$0xff]
      %v579 = vld [vmem:[%s426 + $0x98] sm:$0xff]
      %v580 = vld [vmem:[%s426 + $0xa0] sm:$0xff]
      %v581 = vld [vmem:[%s426 + $0xa8] sm:$0xff]
      %v582 = vld [vmem:[%s426 + $0xb0] sm:$0xff]
      %v583 = vld [vmem:[%s426 + $0xb8] sm:$0xff]
      %v584 = vld [vmem:[%s426 + $0xc0] sm:$0xff]
      %v585 = vld [vmem:[%s426 + $0xc8] sm:$0xff]
      %v586 = vld [vmem:[%s426 + $0xd0] sm:$0xff]
      %v587 = vld [vmem:[%s426 + $0xd8] sm:$0xff]
      %v588 = vld [vmem:[%s426 + $0xe0] sm:$0xff]
      %v589 = vld [vmem:[%s426 + $0xe8] sm:$0xff]
      %v590 = vld [vmem:[%s426 + $0xf0] sm:$0xff]
      %v591 = vld [vmem:[%s426 + $0xf8] sm:$0xff]
      %v592 = vld [vmem:[%s426 + $0x100] sm:$0xff]
      %v593 = vld [vmem:[%s426 + $0x108] sm:$0xff]
      %v594 = vld [vmem:[%s426 + $0x110] sm:$0xff]
      %v595 = vld [vmem:[%s426 + $0x118] sm:$0xff]
      %v596 = vld [vmem:[%s426 + $0x120] sm:$0xff]
      %v597 = vld [vmem:[%s426 + $0x128] sm:$0xff]
      %v598 = vld [vmem:[%s426 + $0x130] sm:$0xff]
      %v599 = vld [vmem:[%s426 + $0x138] sm:$0xff]
      %v600 = vld [vmem:[%s426 + $0x140] sm:$0xff]
      %v601 = vld [vmem:[%s426 + $0x148] sm:$0xff]
      %v602 = vld [vmem:[%s426 + $0x150] sm:$0xff]
      %v603 = vld [vmem:[%s426 + $0x158] sm:$0xff]
      %v604 = vld [vmem:[%s426 + $0x160] sm:$0xff]
      %v605 = vld [vmem:[%s426 + $0x168] sm:$0xff]
      %v606 = vld [vmem:[%s426 + $0x170] sm:$0xff]
      %v607 = vld [vmem:[%s426 + $0x178] sm:$0xff]
      %v608 = vld [vmem:[%s426 + $0x180] sm:$0xff]
      %v609 = vld [vmem:[%s426 + $0x188] sm:$0xff]
      %v610 = vld [vmem:[%s426 + $0x190] sm:$0xff]
      %v611 = vld [vmem:[%s426 + $0x198] sm:$0xff]
      %v612 = vld [vmem:[%s426 + $0x1a0] sm:$0xff]
      %v613 = vld [vmem:[%s426 + $0x1a8] sm:$0xff]
      %v614 = vld [vmem:[%s426 + $0x1b0] sm:$0xff]
      %v615 = vld [vmem:[%s426 + $0x1b8] sm:$0xff]
      %v616 = vld [vmem:[%s426 + $0x1c0] sm:$0xff]
      %v617 = vld [vmem:[%s426 + $0x1c8] sm:$0xff]
      %v618 = vld [vmem:[%s426 + $0x1d0] sm:$0xff]
      %v619 = vld [vmem:[%s426 + $0x1d8] sm:$0xff]
      %v620 = vld [vmem:[%s426 + $0x1e0] sm:$0xff]
      %v621 = vld [vmem:[%s426 + $0x1e8] sm:$0xff]
      %v622 = vld [vmem:[%s426 + $0x1f0] sm:$0xff]
      %v623 = vld [vmem:[%s5] sm:$0xff]
      %v624 = vld [vmem:[%s5 + $0x8] sm:$0xff]
      %v625 = vld [vmem:[%s5 + $0x10] sm:$0xff]
      %v626 = vld [vmem:[%s5 + $0x18] sm:$0xff]
      %v627 = vld [vmem:[%s3] sm:$0x7]
      %vm628 = vcmask 23552
      %v630 = vsel %vm628, %v434, 0
      %v633 = vsel %vm628, %v435, 0
      %v636 = vsel %vm628, %v436, 0
      %v639 = vsel %vm628, %v437, 0
      %v642 = vsel %vm628, %v438, 0
      %v645 = vsel %vm628, %v439, 0
      %v648 = vsel %vm628, %v440, 0
      %v651 = vsel %vm628, %v441, 0
      %v654 = vsel %vm628, %v442, 0
      %v657 = vsel %vm628, %v443, 0
      %v660 = vsel %vm628, %v444, 0
      %v663 = vsel %vm628, %v445, 0
      %v666 = vsel %vm628, %v446, 0
      %v669 = vsel %vm628, %v447, 0
      %v672 = vsel %vm628, %v448, 0
      %v675 = vsel %vm628, %v449, 0
      %v678 = vsel %vm628, %v450, 0
      %v681 = vsel %vm628, %v451, 0
      %v684 = vsel %vm628, %v452, 0
      %v687 = vsel %vm628, %v453, 0
      %v690 = vsel %vm628, %v454, 0
      %v693 = vsel %vm628, %v455, 0
      %v696 = vsel %vm628, %v456, 0
      %v699 = vsel %vm628, %v457, 0
      %v702 = vsel %vm628, %v458, 0
      %v705 = vsel %vm628, %v459, 0
      %v708 = vsel %vm628, %v460, 0
      %v711 = vsel %vm628, %v461, 0
      %v714 = vsel %vm628, %v462, 0
      %v717 = vsel %vm628, %v463, 0
      %v720 = vsel %vm628, %v464, 0
      %v723 = vsel %vm628, %v465, 0
      %v726 = vsel %vm628, %v466, 0
      %v729 = vsel %vm628, %v467, 0
      %v732 = vsel %vm628, %v468, 0
      %v735 = vsel %vm628, %v469, 0
      %v738 = vsel %vm628, %v470, 0
      %v741 = vsel %vm628, %v471, 0
      %v744 = vsel %vm628, %v472, 0
      %v747 = vsel %vm628, %v473, 0
      %v750 = vsel %vm628, %v474, 0
      %v753 = vsel %vm628, %v475, 0
      %v756 = vsel %vm628, %v476, 0
      %v759 = vsel %vm628, %v477, 0
      %v762 = vsel %vm628, %v478, 0
      %v765 = vsel %vm628, %v479, 0
      %v768 = vsel %vm628, %v480, 0
      %v771 = vsel %vm628, %v481, 0
      %v774 = vsel %vm628, %v482, 0
      %v777 = vsel %vm628, %v483, 0
      %v780 = vsel %vm628, %v484, 0
      %v783 = vsel %vm628, %v485, 0
      %v786 = vsel %vm628, %v486, 0
      %v789 = vsel %vm628, %v487, 0
      %v792 = vsel %vm628, %v488, 0
      %v795 = vsel %vm628, %v489, 0
      %v798 = vsel %vm628, %v490, 0
      %v801 = vsel %vm628, %v491, 0
      %v804 = vsel %vm628, %v492, 0
      %v807 = vsel %vm628, %v493, 0
      %v810 = vsel %vm628, %v494, 0
      %v813 = vsel %vm628, %v495, 0
      %v816 = vsel %vm628, %v496, 0
      %vm818 = vcmask 1042432
      %v820 = vsel %vm818, %v627, 0
      %822 = vmatprep.subr.mxu0 0.0
      %823 = vmatpush1.msra.mxu0 %v820
      %824 = vmatprep.subr.mxu0 0.0
      %825 = vmatpush1.msra.mxu0 0.0
      %826 = vmatprep.subr.mxu0 0.0
      %827 = vmatpush1.msra.mxu0 0.0
      %828 = vmatprep.subr.mxu0 0.0
      %829 = vmatpush1.msra.mxu0 0.0
      %830 = vmatprep.subr.mxu0 0.0
      %831 = vmatpush1.msra.mxu0 0.0
      %832 = vmatprep.subr.mxu0 0.0
      %833 = vmatpush1.msra.mxu0 0.0
      %834 = vmatprep.subr.mxu0 0.0
      %835 = vmatpush1.msra.mxu0 0.0
      %836 = vmatprep.subr.mxu0 0.0
      %837 = vmatpush1.msra.mxu0 0.0
      %838 = vmatprep.subr.mxu0 0.0
      %839 = vmatpush1.msra.mxu0 0.0
      %840 = vmatprep.subr.mxu0 0.0
      %841 = vmatpush1.msra.mxu0 0.0
      %842 = vmatprep.subr.mxu0 0.0
      %843 = vmatpush1.msra.mxu0 0.0
      %844 = vmatprep.subr.mxu0 0.0
      %845 = vmatpush1.msra.mxu0 0.0
      %846 = vmatprep.subr.mxu0 0.0
      %847 = vmatpush1.msra.mxu0 0.0
      %848 = vmatprep.subr.mxu0 0.0
      %849 = vmatpush1.msra.mxu0 0.0
      %850 = vmatprep.subr.mxu0 0.0
      %851 = vmatpush1.msra.mxu0 0.0
      %852 = vmatprep.subr.mxu0 0.0
      %853 = vmatpush1.msra.mxu0 0.0
      %854 = vmatprep.subr.mxu0 0.0
      %855 = vmatpush1.msra.mxu0 0.0
      %856 = vmatprep.subr.mxu0 0.0
      %857 = vmatpush1.msra.mxu0 0.0
      %858 = vmatprep.subr.mxu0 0.0
      %859 = vmatpush1.msra.mxu0 0.0
      %860 = vmatprep.subr.mxu0 0.0
      %861 = vmatpush1.msra.mxu0 0.0
      %862 = vmatprep.subr.mxu0 0.0
      %863 = vmatpush1.msra.mxu0 0.0
      %864 = vmatprep.subr.mxu0 0.0
      %865 = vmatpush1.msra.mxu0 0.0
      %866 = vmatprep.subr.mxu0 0.0
      %867 = vmatpush1.msra.mxu0 0.0
      %868 = vmatprep.subr.mxu0 0.0
      %869 = vmatpush1.msra.mxu0 0.0
      %870 = vmatprep.subr.mxu0 0.0
      %871 = vmatpush1.msra.mxu0 0.0
      %872 = vmatprep.subr.mxu0 0.0
      %873 = vmatpush1.msra.mxu0 0.0
      %874 = vmatprep.subr.mxu0 0.0
      %875 = vmatpush1.msra.mxu0 0.0
      %876 = vmatprep.subr.mxu0 0.0
      %877 = vmatpush1.msra.mxu0 0.0
      %878 = vmatprep.subr.mxu0 0.0
      %879 = vmatpush1.msra.mxu0 0.0
      %880 = vmatprep.subr.mxu0 0.0
      %881 = vmatpush1.msra.mxu0 0.0
      %882 = vmatprep.subr.mxu0 0.0
      %883 = vmatpush1.msra.mxu0 0.0
      %884 = vmatprep.subr.mxu0 0.0
      %885 = vmatpush1.msra.mxu0 0.0
      %886 = vmatprep.mubr.f32.mxu0 0.0
      %887 = vmatmul.mubr.f32.gmra.mrb[0].mxu0 %v630
      %v888 = vpop.f32.mrb[0].mxu0
      %v889 = vadd.f32 0.0, %v888
      %v890 = vpop.f32.mrb[0].mxu0
      %891 = vmatprep.mubr.f32.mxu0 0.0
      %892 = vmatmul.mubr.f32.gmra.mrb[0].mxu0 %v633
      %v893 = vpop.f32.mrb[0].mxu0
      %v894 = vadd.f32 0.0, %v893
      %v895 = vpop.f32.mrb[0].mxu0
      %896 = vmatprep.mubr.f32.mxu0 0.0
      %897 = vmatmul.mubr.f32.gmra.mrb[0].mxu0 %v636
      %v898 = vpop.f32.mrb[0].mxu0
      %v899 = vadd.f32 0.0, %v898
      %v900 = vpop.f32.mrb[0].mxu0
      %901 = vmatprep.mubr.f32.mxu0 0.0
      %902 = vmatmul.mubr.f32.gmra.mrb[0].mxu0 %v639
      %v903 = vpop.f32.mrb[0].mxu0
      %v904 = vadd.f32 0.0, %v903
      %v905 = vpop.f32.mrb[0].mxu0
      %906 = vmatprep.mubr.f32.mxu0 0.0
      %907 = vmatmul.mubr.f32.gmra.mrb[0].mxu0 %v642
      %v908 = vpop.f32.mrb[0].mxu0
      %v909 = vadd.f32 0.0, %v908
      %v910 = vpop.f32.mrb[0].mxu0
      %911 = vmatprep.mubr.f32.mxu0 0.0
      %912 = vmatmul.mubr.f32.gmra.mrb[0].mxu0 %v645
      %v913 = vpop.f32.mrb[0].mxu0
      %v914 = vadd.f32 0.0, %v913
      %v915 = vpop.f32.mrb[0].mxu0
      %916 = vmatprep.mubr.f32.mxu0 0.0
      %917 = vmatmul.mubr.f32.gmra.mrb[0].mxu0 %v648
      %v918 = vpop.f32.mrb[0].mxu0
      %v919 = vadd.f32 0.0, %v918
      %v920 = vpop.f32.mrb[0].mxu0
      %921 = vmatprep.mubr.f32.mxu0 0.0
      %922 = vmatmul.mubr.f32.gmra.mrb[0].mxu0 %v651
      %v923 = vpop.f32.mrb[0].mxu0
      %v924 = vadd.f32 0.0, %v923
      %v925 = vpop.f32.mrb[0].mxu0
      %926 = vmatprep.mubr.f32.mxu0 0.0
      %927 = vmatmul.mubr.f32.gmra.mrb[0].mxu0 %v654
      %v928 = vpop.f32.mrb[0].mxu0
      %v929 = vadd.f32 0.0, %v928
      %v930 = vpop.f32.mrb[0].mxu0
      %931 = vmatprep.mubr.f32.mxu0 0.0
      %932 = vmatmul.mubr.f32.gmra.mrb[0].mxu0 %v657
      %v933 = vpop.f32.mrb[0].mxu0
      %v934 = vadd.f32 0.0, %v933
      %v935 = vpop.f32.mrb[0].mxu0
      %936 = vmatprep.mubr.f32.mxu0 0.0
      %937 = vmatmul.mubr.f32.gmra.mrb[0].mxu0 %v660
      %v938 = vpop.f32.mrb[0].mxu0
      %v939 = vadd.f32 0.0, %v938
      %v940 = vpop.f32.mrb[0].mxu0
      %941 = vmatprep.mubr.f32.mxu0 0.0
      %942 = vmatmul.mubr.f32.gmra.mrb[0].mxu0 %v663
      %v943 = vpop.f32.mrb[0].mxu0
      %v944 = vadd.f32 0.0, %v943
      %v945 = vpop.f32.mrb[0].mxu0
      %946 = vmatprep.mubr.f32.mxu0 0.0
      %947 = vmatmul.mubr.f32.gmra.mrb[0].mxu0 %v666
      %v948 = vpop.f32.mrb[0].mxu0
      %v949 = vadd.f32 0.0, %v948
      %v950 = vpop.f32.mrb[0].mxu0
      %951 = vmatprep.mubr.f32.mxu0 0.0
      %952 = vmatmul.mubr.f32.gmra.mrb[0].mxu0 %v669
      %v953 = vpop.f32.mrb[0].mxu0
      %v954 = vadd.f32 0.0, %v953
      %v955 = vpop.f32.mrb[0].mxu0
      %956 = vmatprep.mubr.f32.mxu0 0.0
      %957 = vmatmul.mubr.f32.gmra.mrb[0].mxu0 %v672
      %v958 = vpop.f32.mrb[0].mxu0
      %v959 = vadd.f32 0.0, %v958
      %v960 = vpop.f32.mrb[0].mxu0
      %961 = vmatprep.mubr.f32.mxu0 0.0
      %962 = vmatmul.mubr.f32.gmra.mrb[0].mxu0 %v675
      %v963 = vpop.f32.mrb[0].mxu0
      %v964 = vadd.f32 0.0, %v963
      %v965 = vpop.f32.mrb[0].mxu0
      %966 = vmatprep.mubr.f32.mxu0 0.0
      %967 = vmatmul.mubr.f32.gmra.mrb[0].mxu0 %v678
      %v968 = vpop.f32.mrb[0].mxu0
      %v969 = vadd.f32 0.0, %v968
      %v970 = vpop.f32.mrb[0].mxu0
      %971 = vmatprep.mubr.f32.mxu0 0.0
      %972 = vmatmul.mubr.f32.gmra.mrb[0].mxu0 %v681
      %v973 = vpop.f32.mrb[0].mxu0
      %v974 = vadd.f32 0.0, %v973
      %v975 = vpop.f32.mrb[0].mxu0
      %976 = vmatprep.mubr.f32.mxu0 0.0
      %977 = vmatmul.mubr.f32.gmra.mrb[0].mxu0 %v684
      %v978 = vpop.f32.mrb[0].mxu0
      %v979 = vadd.f32 0.0, %v978
      %v980 = vpop.f32.mrb[0].mxu0
      %981 = vmatprep.mubr.f32.mxu0 0.0
      %982 = vmatmul.mubr.f32.gmra.mrb[0].mxu0 %v687
      %v983 = vpop.f32.mrb[0].mxu0
      %v984 = vadd.f32 0.0, %v983
      %v985 = vpop.f32.mrb[0].mxu0
      %986 = vmatprep.mubr.f32.mxu0 0.0
      %987 = vmatmul.mubr.f32.gmra.mrb[0].mxu0 %v690
      %v988 = vpop.f32.mrb[0].mxu0
      %v989 = vadd.f32 0.0, %v988
      %v990 = vpop.f32.mrb[0].mxu0
      %991 = vmatprep.mubr.f32.mxu0 0.0
      %992 = vmatmul.mubr.f32.gmra.mrb[0].mxu0 %v693
      %v993 = vpop.f32.mrb[0].mxu0
      %v994 = vadd.f32 0.0, %v993
      %v995 = vpop.f32.mrb[0].mxu0
      %996 = vmatprep.mubr.f32.mxu0 0.0
      %997 = vmatmul.mubr.f32.gmra.mrb[0].mxu0 %v696
      %v998 = vpop.f32.mrb[0].mxu0
      %v999 = vadd.f32 0.0, %v998
      %v1000 = vpop.f32.mrb[0].mxu0
      %1001 = vmatprep.mubr.f32.mxu0 0.0
      %1002 = vmatmul.mubr.f32.gmra.mrb[0].mxu0 %v699
      %v1003 = vpop.f32.mrb[0].mxu0
      %v1004 = vadd.f32 0.0, %v1003
      %v1005 = vpop.f32.mrb[0].mxu0
      %1006 = vmatprep.mubr.f32.mxu0 0.0
      %1007 = vmatmul.mubr.f32.gmra.mrb[0].mxu0 %v702
      %v1008 = vpop.f32.mrb[0].mxu0
      %v1009 = vadd.f32 0.0, %v1008
      %v1010 = vpop.f32.mrb[0].mxu0
      %1011 = vmatprep.mubr.f32.mxu0 0.0
      %1012 = vmatmul.mubr.f32.gmra.mrb[0].mxu0 %v705
      %v1013 = vpop.f32.mrb[0].mxu0
      %v1014 = vadd.f32 0.0, %v1013
      %v1015 = vpop.f32.mrb[0].mxu0
      %1016 = vmatprep.mubr.f32.mxu0 0.0
      %1017 = vmatmul.mubr.f32.gmra.mrb[0].mxu0 %v708
      %v1018 = vpop.f32.mrb[0].mxu0
      %v1019 = vadd.f32 0.0, %v1018
      %v1020 = vpop.f32.mrb[0].mxu0
      %1021 = vmatprep.mubr.f32.mxu0 0.0
      %1022 = vmatmul.mubr.f32.gmra.mrb[0].mxu0 %v711
      %v1023 = vpop.f32.mrb[0].mxu0
      %v1024 = vadd.f32 0.0, %v1023
      %v1025 = vpop.f32.mrb[0].mxu0
      %1026 = vmatprep.mubr.f32.mxu0 0.0
      %1027 = vmatmul.mubr.f32.gmra.mrb[0].mxu0 %v714
      %v1028 = vpop.f32.mrb[0].mxu0
      %v1029 = vadd.f32 0.0, %v1028
      %v1030 = vpop.f32.mrb[0].mxu0
      %1031 = vmatprep.mubr.f32.mxu0 0.0
      %1032 = vmatmul.mubr.f32.gmra.mrb[0].mxu0 %v717
      %v1033 = vpop.f32.mrb[0].mxu0
      %v1034 = vadd.f32 0.0, %v1033
      %v1035 = vpop.f32.mrb[0].mxu0
      %1036 = vmatprep.mubr.f32.mxu0 0.0
      %1037 = vmatmul.mubr.f32.gmra.mrb[0].mxu0 %v720
      %v1038 = vpop.f32.mrb[0].mxu0
      %v1039 = vadd.f32 0.0, %v1038
      %v1040 = vpop.f32.mrb[0].mxu0
      %1041 = vmatprep.mubr.f32.mxu0 0.0
      %1042 = vmatmul.mubr.f32.gmra.mrb[0].mxu0 %v723
      %v1043 = vpop.f32.mrb[0].mxu0
      %v1044 = vadd.f32 0.0, %v1043
      %v1045 = vpop.f32.mrb[0].mxu0
      %1046 = vmatprep.mubr.f32.mxu0 0.0
      %1047 = vmatmul.mubr.f32.gmra.mrb[0].mxu0 %v726
      %v1048 = vpop.f32.mrb[0].mxu0
      %v1049 = vadd.f32 0.0, %v1048
      %v1050 = vpop.f32.mrb[0].mxu0
      %1051 = vmatprep.mubr.f32.mxu0 0.0
      %1052 = vmatmul.mubr.f32.gmra.mrb[0].mxu0 %v729
      %v1053 = vpop.f32.mrb[0].mxu0
      %v1054 = vadd.f32 0.0, %v1053
      %v1055 = vpop.f32.mrb[0].mxu0
      %1056 = vmatprep.mubr.f32.mxu0 0.0
      %1057 = vmatmul.mubr.f32.gmra.mrb[0].mxu0 %v732
      %v1058 = vpop.f32.mrb[0].mxu0
      %v1059 = vadd.f32 0.0, %v1058
      %v1060 = vpop.f32.mrb[0].mxu0
      %1061 = vmatprep.mubr.f32.mxu0 0.0
      %1062 = vmatmul.mubr.f32.gmra.mrb[0].mxu0 %v735
      %v1063 = vpop.f32.mrb[0].mxu0
      %v1064 = vadd.f32 0.0, %v1063
      %v1065 = vpop.f32.mrb[0].mxu0
      %1066 = vmatprep.mubr.f32.mxu0 0.0
      %1067 = vmatmul.mubr.f32.gmra.mrb[0].mxu0 %v738
      %v1068 = vpop.f32.mrb[0].mxu0
      %v1069 = vadd.f32 0.0, %v1068
      %v1070 = vpop.f32.mrb[0].mxu0
      %1071 = vmatprep.mubr.f32.mxu0 0.0
      %1072 = vmatmul.mubr.f32.gmra.mrb[0].mxu0 %v741
      %v1073 = vpop.f32.mrb[0].mxu0
      %v1074 = vadd.f32 0.0, %v1073
      %v1075 = vpop.f32.mrb[0].mxu0
      %1076 = vmatprep.mubr.f32.mxu0 0.0
      %1077 = vmatmul.mubr.f32.gmra.mrb[0].mxu0 %v744
      %v1078 = vpop.f32.mrb[0].mxu0
      %v1079 = vadd.f32 0.0, %v1078
      %v1080 = vpop.f32.mrb[0].mxu0
      %1081 = vmatprep.mubr.f32.mxu0 0.0
      %1082 = vmatmul.mubr.f32.gmra.mrb[0].mxu0 %v747
      %v1083 = vpop.f32.mrb[0].mxu0
      %v1084 = vadd.f32 0.0, %v1083
      %v1085 = vpop.f32.mrb[0].mxu0
      %1086 = vmatprep.mubr.f32.mxu0 0.0
      %1087 = vmatmul.mubr.f32.gmra.mrb[0].mxu0 %v750
      %v1088 = vpop.f32.mrb[0].mxu0
      %v1089 = vadd.f32 0.0, %v1088
      %v1090 = vpop.f32.mrb[0].mxu0
      %1091 = vmatprep.mubr.f32.mxu0 0.0
      %1092 = vmatmul.mubr.f32.gmra.mrb[0].mxu0 %v753
      %v1093 = vpop.f32.mrb[0].mxu0
      %v1094 = vadd.f32 0.0, %v1093
      %v1095 = vpop.f32.mrb[0].mxu0
      %1096 = vmatprep.mubr.f32.mxu0 0.0
      %1097 = vmatmul.mubr.f32.gmra.mrb[0].mxu0 %v756
      %v1098 = vpop.f32.mrb[0].mxu0
      %v1099 = vadd.f32 0.0, %v1098
      %v1100 = vpop.f32.mrb[0].mxu0
      %1101 = vmatprep.mubr.f32.mxu0 0.0
      %1102 = vmatmul.mubr.f32.gmra.mrb[0].mxu0 %v759
      %v1103 = vpop.f32.mrb[0].mxu0
      %v1104 = vadd.f32 0.0, %v1103
      %v1105 = vpop.f32.mrb[0].mxu0
      %1106 = vmatprep.mubr.f32.mxu0 0.0
      %1107 = vmatmul.mubr.f32.gmra.mrb[0].mxu0 %v762
      %v1108 = vpop.f32.mrb[0].mxu0
      %v1109 = vadd.f32 0.0, %v1108
      %v1110 = vpop.f32.mrb[0].mxu0
      %1111 = vmatprep.mubr.f32.mxu0 0.0
      %1112 = vmatmul.mubr.f32.gmra.mrb[0].mxu0 %v765
      %v1113 = vpop.f32.mrb[0].mxu0
      %v1114 = vadd.f32 0.0, %v1113
      %v1115 = vpop.f32.mrb[0].mxu0
      %1116 = vmatprep.mubr.f32.mxu0 0.0
      %1117 = vmatmul.mubr.f32.gmra.mrb[0].mxu0 %v768
      %v1118 = vpop.f32.mrb[0].mxu0
      %v1119 = vadd.f32 0.0, %v1118
      %v1120 = vpop.f32.mrb[0].mxu0
      %1121 = vmatprep.mubr.f32.mxu0 0.0
      %1122 = vmatmul.mubr.f32.gmra.mrb[0].mxu0 %v771
      %v1123 = vpop.f32.mrb[0].mxu0
      %v1124 = vadd.f32 0.0, %v1123
      %v1125 = vpop.f32.mrb[0].mxu0
      %1126 = vmatprep.mubr.f32.mxu0 0.0
      %1127 = vmatmul.mubr.f32.gmra.mrb[0].mxu0 %v774
      %v1128 = vpop.f32.mrb[0].mxu0
      %v1129 = vadd.f32 0.0, %v1128
      %v1130 = vpop.f32.mrb[0].mxu0
      %1131 = vmatprep.mubr.f32.mxu0 0.0
      %1132 = vmatmul.mubr.f32.gmra.mrb[0].mxu0 %v777
      %v1133 = vpop.f32.mrb[0].mxu0
      %v1134 = vadd.f32 0.0, %v1133
      %v1135 = vpop.f32.mrb[0].mxu0
      %1136 = vmatprep.mubr.f32.mxu0 0.0
      %1137 = vmatmul.mubr.f32.gmra.mrb[0].mxu0 %v780
      %v1138 = vpop.f32.mrb[0].mxu0
      %v1139 = vadd.f32 0.0, %v1138
      %v1140 = vpop.f32.mrb[0].mxu0
      %1141 = vmatprep.mubr.f32.mxu0 0.0
      %1142 = vmatmul.mubr.f32.gmra.mrb[0].mxu0 %v783
      %v1143 = vpop.f32.mrb[0].mxu0
      %v1144 = vadd.f32 0.0, %v1143
      %v1145 = vpop.f32.mrb[0].mxu0
      %1146 = vmatprep.mubr.f32.mxu0 0.0
      %1147 = vmatmul.mubr.f32.gmra.mrb[0].mxu0 %v786
      %v1148 = vpop.f32.mrb[0].mxu0
      %v1149 = vadd.f32 0.0, %v1148
      %v1150 = vpop.f32.mrb[0].mxu0
      %1151 = vmatprep.mubr.f32.mxu0 0.0
      %1152 = vmatmul.mubr.f32.gmra.mrb[0].mxu0 %v789
      %v1153 = vpop.f32.mrb[0].mxu0
      %v1154 = vadd.f32 0.0, %v1153
      %v1155 = vpop.f32.mrb[0].mxu0
      %1156 = vmatprep.mubr.f32.mxu0 0.0
      %1157 = vmatmul.mubr.f32.gmra.mrb[0].mxu0 %v792
      %v1158 = vpop.f32.mrb[0].mxu0
      %v1159 = vadd.f32 0.0, %v1158
      %v1160 = vpop.f32.mrb[0].mxu0
      %1161 = vmatprep.mubr.f32.mxu0 0.0
      %1162 = vmatmul.mubr.f32.gmra.mrb[0].mxu0 %v795
      %v1163 = vpop.f32.mrb[0].mxu0
      %v1164 = vadd.f32 0.0, %v1163
      %v1165 = vpop.f32.mrb[0].mxu0
      %1166 = vmatprep.mubr.f32.mxu0 0.0
      %1167 = vmatmul.mubr.f32.gmra.mrb[0].mxu0 %v798
      %v1168 = vpop.f32.mrb[0].mxu0
      %v1169 = vadd.f32 0.0, %v1168
      %v1170 = vpop.f32.mrb[0].mxu0
      %1171 = vmatprep.mubr.f32.mxu0 0.0
      %1172 = vmatmul.mubr.f32.gmra.mrb[0].mxu0 %v801
      %v1173 = vpop.f32.mrb[0].mxu0
      %v1174 = vadd.f32 0.0, %v1173
      %v1175 = vpop.f32.mrb[0].mxu0
      %1176 = vmatprep.mubr.f32.mxu0 0.0
      %1177 = vmatmul.mubr.f32.gmra.mrb[0].mxu0 %v804
      %v1178 = vpop.f32.mrb[0].mxu0
      %v1179 = vadd.f32 0.0, %v1178
      %v1180 = vpop.f32.mrb[0].mxu0
      %1181 = vmatprep.mubr.f32.mxu0 0.0
      %1182 = vmatmul.mubr.f32.gmra.mrb[0].mxu0 %v807
      %v1183 = vpop.f32.mrb[0].mxu0
      %v1184 = vadd.f32 0.0, %v1183
      %v1185 = vpop.f32.mrb[0].mxu0
      %1186 = vmatprep.mubr.f32.mxu0 0.0
      %1187 = vmatmul.mubr.f32.gmra.mrb[0].mxu0 %v810
      %v1188 = vpop.f32.mrb[0].mxu0
      %v1189 = vadd.f32 0.0, %v1188
      %v1190 = vpop.f32.mrb[0].mxu0
      %1191 = vmatprep.mubr.f32.mxu0 0.0
      %1192 = vmatmul.mubr.f32.gmra.mrb[0].mxu0 %v813
      %v1193 = vpop.f32.mrb[0].mxu0
      %v1194 = vadd.f32 0.0, %v1193
      %v1195 = vpop.f32.mrb[0].mxu0
      %1196 = vmatprep.mubr.f32.mxu0 0.0
      %1197 = vmatmul.mubr.f32.gmra.mrb[0].mxu0 %v816
      %v1198 = vpop.f32.mrb[0].mxu0
      %v1199 = vadd.f32 0.0, %v1198
      %v1200 = vpop.f32.mrb[0].mxu0
      %1201 = vdwg.mxu0
      %vm1202 = vcmask 261120
      %v1204 = vsel %vm1202, %v560, 0
      %v1207 = vsel %vm1202, %v561, 0
      %v1210 = vsel %vm1202, %v562, 0
      %v1213 = vsel %vm1202, %v563, 0
      %v1216 = vsel %vm1202, %v564, 0
      %v1219 = vsel %vm1202, %v565, 0
      %v1222 = vsel %vm1202, %v566, 0
      %v1225 = vsel %vm1202, %v567, 0
      %v1228 = vsel %vm1202, %v568, 0
      %v1231 = vsel %vm1202, %v569, 0
      %v1234 = vsel %vm1202, %v570, 0
      %v1237 = vsel %vm1202, %v571, 0
      %v1240 = vsel %vm1202, %v572, 0
      %v1243 = vsel %vm1202, %v573, 0
      %v1246 = vsel %vm1202, %v574, 0
      %v1249 = vsel %vm1202, %v575, 0
      %v1252 = vsel %vm1202, %v576, 0
      %v1255 = vsel %vm1202, %v577, 0
      %v1258 = vsel %vm1202, %v578, 0
      %v1261 = vsel %vm1202, %v579, 0
      %v1264 = vsel %vm1202, %v580, 0
      %v1267 = vsel %vm1202, %v581, 0
      %v1270 = vsel %vm1202, %v582, 0
      %v1273 = vsel %vm1202, %v583, 0
      %v1276 = vsel %vm1202, %v584, 0
      %v1279 = vsel %vm1202, %v585, 0
      %v1282 = vsel %vm1202, %v586, 0
      %v1285 = vsel %vm1202, %v587, 0
      %v1288 = vsel %vm1202, %v588, 0
      %v1291 = vsel %vm1202, %v589, 0
      %v1294 = vsel %vm1202, %v590, 0
      %v1297 = vsel %vm1202, %v591, 0
      %v1300 = vsel %vm1202, %v592, 0
      %v1303 = vsel %vm1202, %v593, 0
      %v1306 = vsel %vm1202, %v594, 0
      %v1309 = vsel %vm1202, %v595, 0
      %v1312 = vsel %vm1202, %v596, 0
      %v1315 = vsel %vm1202, %v597, 0
      %v1318 = vsel %vm1202, %v598, 0
      %v1321 = vsel %vm1202, %v599, 0
      %v1324 = vsel %vm1202, %v600, 0
      %v1327 = vsel %vm1202, %v601, 0
      %v1330 = vsel %vm1202, %v602, 0
      %v1333 = vsel %vm1202, %v603, 0
      %v1336 = vsel %vm1202, %v604, 0
      %v1339 = vsel %vm1202, %v605, 0
      %v1342 = vsel %vm1202, %v606, 0
      %v1345 = vsel %vm1202, %v607, 0
      %v1348 = vsel %vm1202, %v608, 0
      %v1351 = vsel %vm1202, %v609, 0
      %v1354 = vsel %vm1202, %v610, 0
      %v1357 = vsel %vm1202, %v611, 0
      %v1360 = vsel %vm1202, %v612, 0
      %v1363 = vsel %vm1202, %v613, 0
      %v1366 = vsel %vm1202, %v614, 0
      %v1369 = vsel %vm1202, %v615, 0
      %v1372 = vsel %vm1202, %v616, 0
      %v1375 = vsel %vm1202, %v617, 0
      %v1378 = vsel %vm1202, %v618, 0
      %v1381 = vsel %vm1202, %v619, 0
      %v1384 = vsel %vm1202, %v620, 0
      %v1387 = vsel %vm1202, %v621, 0
      %v1390 = vsel %vm1202, %v622, 0
      %1392 = vmatprep.subr.mxu0 0.0
      %1393 = vmatpush1.msra.mxu0 %v623
      %1394 = vmatprep.subr.mxu0 0.0
      %1395 = vmatpush1.msra.mxu0 %v624
      %1396 = vmatprep.subr.mxu0 0.0
      %1397 = vmatpush1.msra.mxu0 %v625
      %1398 = vmatprep.subr.mxu0 0.0
      %1399 = vmatpush1.msra.mxu0 %v626
      %1400 = vmatprep.subr.mxu0 0.0
      %1401 = vmatpush1.msra.mxu0 0.0
      %1402 = vmatprep.subr.mxu0 0.0
      %1403 = vmatpush1.msra.mxu0 0.0
      %1404 = vmatprep.subr.mxu0 0.0
      %1405 = vmatpush1.msra.mxu0 0.0
      %1406 = vmatprep.subr.mxu0 0.0
      %1407 = vmatpush1.msra.mxu0 0.0
      %1408 = vmatprep.subr.mxu0 0.0
      %1409 = vmatpush1.msra.mxu0 0.0
      %1410 = vmatprep.subr.mxu0 0.0
      %1411 = vmatpush1.msra.mxu0 0.0
      %1412 = vmatprep.subr.mxu0 0.0
      %1413 = vmatpush1.msra.mxu0 0.0
      %1414 = vmatprep.subr.mxu0 0.0
      %1415 = vmatpush1.msra.mxu0 0.0
      %1416 = vmatprep.subr.mxu0 0.0
      %1417 = vmatpush1.msra.mxu0 0.0
      %1418 = vmatprep.subr.mxu0 0.0
      %1419 = vmatpush1.msra.mxu0 0.0
      %1420 = vmatprep.subr.mxu0 0.0
      %1421 = vmatpush1.msra.mxu0 0.0
      %1422 = vmatprep.subr.mxu0 0.0
      %1423 = vmatpush1.msra.mxu0 0.0
      %1424 = vmatprep.subr.mxu0 0.0
      %1425 = vmatpush1.msra.mxu0 0.0
      %1426 = vmatprep.subr.mxu0 0.0
      %1427 = vmatpush1.msra.mxu0 0.0
      %1428 = vmatprep.subr.mxu0 0.0
      %1429 = vmatpush1.msra.mxu0 0.0
      %1430 = vmatprep.subr.mxu0 0.0
      %1431 = vmatpush1.msra.mxu0 0.0
      %1432 = vmatprep.subr.mxu0 0.0
      %1433 = vmatpush1.msra.mxu0 0.0
      %1434 = vmatprep.subr.mxu0 0.0
      %1435 = vmatpush1.msra.mxu0 0.0
      %1436 = vmatprep.subr.mxu0 0.0
      %1437 = vmatpush1.msra.mxu0 0.0
      %1438 = vmatprep.subr.mxu0 0.0
      %1439 = vmatpush1.msra.mxu0 0.0
      %1440 = vmatprep.subr.mxu0 0.0
      %1441 = vmatpush1.msra.mxu0 0.0
      %1442 = vmatprep.subr.mxu0 0.0
      %1443 = vmatpush1.msra.mxu0 0.0
      %1444 = vmatprep.subr.mxu0 0.0
      %1445 = vmatpush1.msra.mxu0 0.0
      %1446 = vmatprep.subr.mxu0 0.0
      %1447 = vmatpush1.msra.mxu0 0.0
      %1448 = vmatprep.subr.mxu0 0.0
      %1449 = vmatpush1.msra.mxu0 0.0
      %1450 = vmatprep.subr.mxu0 0.0
      %1451 = vmatpush1.msra.mxu0 0.0
      %1452 = vmatprep.subr.mxu0 0.0
      %1453 = vmatpush1.msra.mxu0 0.0
      %1454 = vmatprep.subr.mxu0 0.0
      %1455 = vmatpush1.msra.mxu0 0.0
      %1456 = vmatprep.mubr.f32.mxu0 0.0
      %1457 = vmatmul.mubr.f32.gmra.mrb[0].mxu0 %v1204
      %v1458 = vpop.f32.mrb[0].mxu0
      %v1459 = vadd.f32 %v889, %v1458
      %v1460 = vpop.f32.mrb[0].mxu0
      %1461 = vmatprep.mubr.f32.mxu0 0.0
      %1462 = vmatmul.mubr.f32.gmra.mrb[0].mxu0 %v1207
      %v1463 = vpop.f32.mrb[0].mxu0
      %v1464 = vadd.f32 %v894, %v1463
      %v1465 = vpop.f32.mrb[0].mxu0
      %1466 = vmatprep.mubr.f32.mxu0 0.0
      %1467 = vmatmul.mubr.f32.gmra.mrb[0].mxu0 %v1210
      %v1468 = vpop.f32.mrb[0].mxu0
      %v1469 = vadd.f32 %v899, %v1468
      %v1470 = vpop.f32.mrb[0].mxu0
      %1471 = vmatprep.mubr.f32.mxu0 0.0
      %1472 = vmatmul.mubr.f32.gmra.mrb[0].mxu0 %v1213
      %v1473 = vpop.f32.mrb[0].mxu0
      %v1474 = vadd.f32 %v904, %v1473
      %v1475 = vpop.f32.mrb[0].mxu0
      %1476 = vmatprep.mubr.f32.mxu0 0.0
      %1477 = vmatmul.mubr.f32.gmra.mrb[0].mxu0 %v1216
      %v1478 = vpop.f32.mrb[0].mxu0
      %v1479 = vadd.f32 %v909, %v1478
      %v1480 = vpop.f32.mrb[0].mxu0
      %1481 = vmatprep.mubr.f32.mxu0 0.0
      %1482 = vmatmul.mubr.f32.gmra.mrb[0].mxu0 %v1219
      %v1483 = vpop.f32.mrb[0].mxu0
      %v1484 = vadd.f32 %v914, %v1483
      %v1485 = vpop.f32.mrb[0].mxu0
      %1486 = vmatprep.mubr.f32.mxu0 0.0
      %1487 = vmatmul.mubr.f32.gmra.mrb[0].mxu0 %v1222
      %v1488 = vpop.f32.mrb[0].mxu0
      %v1489 = vadd.f32 %v919, %v1488
      %v1490 = vpop.f32.mrb[0].mxu0
      %1491 = vmatprep.mubr.f32.mxu0 0.0
      %1492 = vmatmul.mubr.f32.gmra.mrb[0].mxu0 %v1225
      %v1493 = vpop.f32.mrb[0].mxu0
      %v1494 = vadd.f32 %v924, %v1493
      %v1495 = vpop.f32.mrb[0].mxu0
      %1496 = vmatprep.mubr.f32.mxu0 0.0
      %1497 = vmatmul.mubr.f32.gmra.mrb[0].mxu0 %v1228
      %v1498 = vpop.f32.mrb[0].mxu0
      %v1499 = vadd.f32 %v929, %v1498
      %v1500 = vpop.f32.mrb[0].mxu0
      %1501 = vmatprep.mubr.f32.mxu0 0.0
      %1502 = vmatmul.mubr.f32.gmra.mrb[0].mxu0 %v1231
      %v1503 = vpop.f32.mrb[0].mxu0
      %v1504 = vadd.f32 %v934, %v1503
      %v1505 = vpop.f32.mrb[0].mxu0
      %1506 = vmatprep.mubr.f32.mxu0 0.0
      %1507 = vmatmul.mubr.f32.gmra.mrb[0].mxu0 %v1234
      %v1508 = vpop.f32.mrb[0].mxu0
      %v1509 = vadd.f32 %v939, %v1508
      %v1510 = vpop.f32.mrb[0].mxu0
      %1511 = vmatprep.mubr.f32.mxu0 0.0
      %1512 = vmatmul.mubr.f32.gmra.mrb[0].mxu0 %v1237
      %v1513 = vpop.f32.mrb[0].mxu0
      %v1514 = vadd.f32 %v944, %v1513
      %v1515 = vpop.f32.mrb[0].mxu0
      %1516 = vmatprep.mubr.f32.mxu0 0.0
      %1517 = vmatmul.mubr.f32.gmra.mrb[0].mxu0 %v1240
      %v1518 = vpop.f32.mrb[0].mxu0
      %v1519 = vadd.f32 %v949, %v1518
      %v1520 = vpop.f32.mrb[0].mxu0
      %1521 = vmatprep.mubr.f32.mxu0 0.0
      %1522 = vmatmul.mubr.f32.gmra.mrb[0].mxu0 %v1243
      %v1523 = vpop.f32.mrb[0].mxu0
      %v1524 = vadd.f32 %v954, %v1523
      %v1525 = vpop.f32.mrb[0].mxu0
      %1526 = vmatprep.mubr.f32.mxu0 0.0
      %1527 = vmatmul.mubr.f32.gmra.mrb[0].mxu0 %v1246
      %v1528 = vpop.f32.mrb[0].mxu0
      %v1529 = vadd.f32 %v959, %v1528
      %v1530 = vpop.f32.mrb[0].mxu0
      %1531 = vmatprep.mubr.f32.mxu0 0.0
      %1532 = vmatmul.mubr.f32.gmra.mrb[0].mxu0 %v1249
      %v1533 = vpop.f32.mrb[0].mxu0
      %v1534 = vadd.f32 %v964, %v1533
      %v1535 = vpop.f32.mrb[0].mxu0
      %1536 = vmatprep.mubr.f32.mxu0 0.0
      %1537 = vmatmul.mubr.f32.gmra.mrb[0].mxu0 %v1252
      %v1538 = vpop.f32.mrb[0].mxu0
      %v1539 = vadd.f32 %v969, %v1538
      %v1540 = vpop.f32.mrb[0].mxu0
      %1541 = vmatprep.mubr.f32.mxu0 0.0
      %1542 = vmatmul.mubr.f32.gmra.mrb[0].mxu0 %v1255
      %v1543 = vpop.f32.mrb[0].mxu0
      %v1544 = vadd.f32 %v974, %v1543
      %v1545 = vpop.f32.mrb[0].mxu0
      %1546 = vmatprep.mubr.f32.mxu0 0.0
      %1547 = vmatmul.mubr.f32.gmra.mrb[0].mxu0 %v1258
      %v1548 = vpop.f32.mrb[0].mxu0
      %v1549 = vadd.f32 %v979, %v1548
      %v1550 = vpop.f32.mrb[0].mxu0
      %1551 = vmatprep.mubr.f32.mxu0 0.0
      %1552 = vmatmul.mubr.f32.gmra.mrb[0].mxu0 %v1261
      %v1553 = vpop.f32.mrb[0].mxu0
      %v1554 = vadd.f32 %v984, %v1553
      %v1555 = vpop.f32.mrb[0].mxu0
      %1556 = vmatprep.mubr.f32.mxu0 0.0
      %1557 = vmatmul.mubr.f32.gmra.mrb[0].mxu0 %v1264
      %v1558 = vpop.f32.mrb[0].mxu0
      %v1559 = vadd.f32 %v989, %v1558
      %v1560 = vpop.f32.mrb[0].mxu0
      %1561 = vmatprep.mubr.f32.mxu0 0.0
      %1562 = vmatmul.mubr.f32.gmra.mrb[0].mxu0 %v1267
      %v1563 = vpop.f32.mrb[0].mxu0
      %v1564 = vadd.f32 %v994, %v1563
      %v1565 = vpop.f32.mrb[0].mxu0
      %1566 = vmatprep.mubr.f32.mxu0 0.0
      %1567 = vmatmul.mubr.f32.gmra.mrb[0].mxu0 %v1270
      %v1568 = vpop.f32.mrb[0].mxu0
      %v1569 = vadd.f32 %v999, %v1568
      %v1570 = vpop.f32.mrb[0].mxu0
      %1571 = vmatprep.mubr.f32.mxu0 0.0
      %1572 = vmatmul.mubr.f32.gmra.mrb[0].mxu0 %v1273
      %v1573 = vpop.f32.mrb[0].mxu0
      %v1574 = vadd.f32 %v1004, %v1573
      %v1575 = vpop.f32.mrb[0].mxu0
      %1576 = vmatprep.mubr.f32.mxu0 0.0
      %1577 = vmatmul.mubr.f32.gmra.mrb[0].mxu0 %v1276
      %v1578 = vpop.f32.mrb[0].mxu0
      %v1579 = vadd.f32 %v1009, %v1578
      %v1580 = vpop.f32.mrb[0].mxu0
      %1581 = vmatprep.mubr.f32.mxu0 0.0
      %1582 = vmatmul.mubr.f32.gmra.mrb[0].mxu0 %v1279
      %v1583 = vpop.f32.mrb[0].mxu0
      %v1584 = vadd.f32 %v1014, %v1583
      %v1585 = vpop.f32.mrb[0].mxu0
      %1586 = vmatprep.mubr.f32.mxu0 0.0
      %1587 = vmatmul.mubr.f32.gmra.mrb[0].mxu0 %v1282
      %v1588 = vpop.f32.mrb[0].mxu0
      %v1589 = vadd.f32 %v1019, %v1588
      %v1590 = vpop.f32.mrb[0].mxu0
      %1591 = vmatprep.mubr.f32.mxu0 0.0
      %1592 = vmatmul.mubr.f32.gmra.mrb[0].mxu0 %v1285
      %v1593 = vpop.f32.mrb[0].mxu0
      %v1594 = vadd.f32 %v1024, %v1593
      %v1595 = vpop.f32.mrb[0].mxu0
      %1596 = vmatprep.mubr.f32.mxu0 0.0
      %1597 = vmatmul.mubr.f32.gmra.mrb[0].mxu0 %v1288
      %v1598 = vpop.f32.mrb[0].mxu0
      %v1599 = vadd.f32 %v1029, %v1598
      %v1600 = vpop.f32.mrb[0].mxu0
      %1601 = vmatprep.mubr.f32.mxu0 0.0
      %1602 = vmatmul.mubr.f32.gmra.mrb[0].mxu0 %v1291
      %v1603 = vpop.f32.mrb[0].mxu0
      %v1604 = vadd.f32 %v1034, %v1603
      %v1605 = vpop.f32.mrb[0].mxu0
      %1606 = vmatprep.mubr.f32.mxu0 0.0
      %1607 = vmatmul.mubr.f32.gmra.mrb[0].mxu0 %v1294
      %v1608 = vpop.f32.mrb[0].mxu0
      %v1609 = vadd.f32 %v1039, %v1608
      %v1610 = vpop.f32.mrb[0].mxu0
      %1611 = vmatprep.mubr.f32.mxu0 0.0
      %1612 = vmatmul.mubr.f32.gmra.mrb[0].mxu0 %v1297
      %v1613 = vpop.f32.mrb[0].mxu0
      %v1614 = vadd.f32 %v1044, %v1613
      %v1615 = vpop.f32.mrb[0].mxu0
      %1616 = vmatprep.mubr.f32.mxu0 0.0
      %1617 = vmatmul.mubr.f32.gmra.mrb[0].mxu0 %v1300
      %v1618 = vpop.f32.mrb[0].mxu0
      %v1619 = vadd.f32 %v1049, %v1618
      %v1620 = vpop.f32.mrb[0].mxu0
      %1621 = vmatprep.mubr.f32.mxu0 0.0
      %1622 = vmatmul.mubr.f32.gmra.mrb[0].mxu0 %v1303
      %v1623 = vpop.f32.mrb[0].mxu0
      %v1624 = vadd.f32 %v1054, %v1623
      %v1625 = vpop.f32.mrb[0].mxu0
      %1626 = vmatprep.mubr.f32.mxu0 0.0
      %1627 = vmatmul.mubr.f32.gmra.mrb[0].mxu0 %v1306
      %v1628 = vpop.f32.mrb[0].mxu0
      %v1629 = vadd.f32 %v1059, %v1628
      %v1630 = vpop.f32.mrb[0].mxu0
      %1631 = vmatprep.mubr.f32.mxu0 0.0
      %1632 = vmatmul.mubr.f32.gmra.mrb[0].mxu0 %v1309
      %v1633 = vpop.f32.mrb[0].mxu0
      %v1634 = vadd.f32 %v1064, %v1633
      %v1635 = vpop.f32.mrb[0].mxu0
      %1636 = vmatprep.mubr.f32.mxu0 0.0
      %1637 = vmatmul.mubr.f32.gmra.mrb[0].mxu0 %v1312
      %v1638 = vpop.f32.mrb[0].mxu0
      %v1639 = vadd.f32 %v1069, %v1638
      %v1640 = vpop.f32.mrb[0].mxu0
      %1641 = vmatprep.mubr.f32.mxu0 0.0
      %1642 = vmatmul.mubr.f32.gmra.mrb[0].mxu0 %v1315
      %v1643 = vpop.f32.mrb[0].mxu0
      %v1644 = vadd.f32 %v1074, %v1643
      %v1645 = vpop.f32.mrb[0].mxu0
      %1646 = vmatprep.mubr.f32.mxu0 0.0
      %1647 = vmatmul.mubr.f32.gmra.mrb[0].mxu0 %v1318
      %v1648 = vpop.f32.mrb[0].mxu0
      %v1649 = vadd.f32 %v1079, %v1648
      %v1650 = vpop.f32.mrb[0].mxu0
      %1651 = vmatprep.mubr.f32.mxu0 0.0
      %1652 = vmatmul.mubr.f32.gmra.mrb[0].mxu0 %v1321
      %v1653 = vpop.f32.mrb[0].mxu0
      %v1654 = vadd.f32 %v1084, %v1653
      %v1655 = vpop.f32.mrb[0].mxu0
      %1656 = vmatprep.mubr.f32.mxu0 0.0
      %1657 = vmatmul.mubr.f32.gmra.mrb[0].mxu0 %v1324
      %v1658 = vpop.f32.mrb[0].mxu0
      %v1659 = vadd.f32 %v1089, %v1658
      %v1660 = vpop.f32.mrb[0].mxu0
      %1661 = vmatprep.mubr.f32.mxu0 0.0
      %1662 = vmatmul.mubr.f32.gmra.mrb[0].mxu0 %v1327
      %v1663 = vpop.f32.mrb[0].mxu0
      %v1664 = vadd.f32 %v1094, %v1663
      %v1665 = vpop.f32.mrb[0].mxu0
      %1666 = vmatprep.mubr.f32.mxu0 0.0
      %1667 = vmatmul.mubr.f32.gmra.mrb[0].mxu0 %v1330
      %v1668 = vpop.f32.mrb[0].mxu0
      %v1669 = vadd.f32 %v1099, %v1668
      %v1670 = vpop.f32.mrb[0].mxu0
      %1671 = vmatprep.mubr.f32.mxu0 0.0
      %1672 = vmatmul.mubr.f32.gmra.mrb[0].mxu0 %v1333
      %v1673 = vpop.f32.mrb[0].mxu0
      %v1674 = vadd.f32 %v1104, %v1673
      %v1675 = vpop.f32.mrb[0].mxu0
      %1676 = vmatprep.mubr.f32.mxu0 0.0
      %1677 = vmatmul.mubr.f32.gmra.mrb[0].mxu0 %v1336
      %v1678 = vpop.f32.mrb[0].mxu0
      %v1679 = vadd.f32 %v1109, %v1678
      %v1680 = vpop.f32.mrb[0].mxu0
      %1681 = vmatprep.mubr.f32.mxu0 0.0
      %1682 = vmatmul.mubr.f32.gmra.mrb[0].mxu0 %v1339
      %v1683 = vpop.f32.mrb[0].mxu0
      %v1684 = vadd.f32 %v1114, %v1683
      %v1685 = vpop.f32.mrb[0].mxu0
      %1686 = vmatprep.mubr.f32.mxu0 0.0
      %1687 = vmatmul.mubr.f32.gmra.mrb[0].mxu0 %v1342
      %v1688 = vpop.f32.mrb[0].mxu0
      %v1689 = vadd.f32 %v1119, %v1688
      %v1690 = vpop.f32.mrb[0].mxu0
      %1691 = vmatprep.mubr.f32.mxu0 0.0
      %1692 = vmatmul.mubr.f32.gmra.mrb[0].mxu0 %v1345
      %v1693 = vpop.f32.mrb[0].mxu0
      %v1694 = vadd.f32 %v1124, %v1693
      %v1695 = vpop.f32.mrb[0].mxu0
      %1696 = vmatprep.mubr.f32.mxu0 0.0
      %1697 = vmatmul.mubr.f32.gmra.mrb[0].mxu0 %v1348
      %v1698 = vpop.f32.mrb[0].mxu0
      %v1699 = vadd.f32 %v1129, %v1698
      %v1700 = vpop.f32.mrb[0].mxu0
      %1701 = vmatprep.mubr.f32.mxu0 0.0
      %1702 = vmatmul.mubr.f32.gmra.mrb[0].mxu0 %v1351
      %v1703 = vpop.f32.mrb[0].mxu0
      %v1704 = vadd.f32 %v1134, %v1703
      %v1705 = vpop.f32.mrb[0].mxu0
      %1706 = vmatprep.mubr.f32.mxu0 0.0
      %1707 = vmatmul.mubr.f32.gmra.mrb[0].mxu0 %v1354
      %v1708 = vpop.f32.mrb[0].mxu0
      %v1709 = vadd.f32 %v1139, %v1708
      %v1710 = vpop.f32.mrb[0].mxu0
      %1711 = vmatprep.mubr.f32.mxu0 0.0
      %1712 = vmatmul.mubr.f32.gmra.mrb[0].mxu0 %v1357
      %v1713 = vpop.f32.mrb[0].mxu0
      %v1714 = vadd.f32 %v1144, %v1713
      %v1715 = vpop.f32.mrb[0].mxu0
      %1716 = vmatprep.mubr.f32.mxu0 0.0
      %1717 = vmatmul.mubr.f32.gmra.mrb[0].mxu0 %v1360
      %v1718 = vpop.f32.mrb[0].mxu0
      %v1719 = vadd.f32 %v1149, %v1718
      %v1720 = vpop.f32.mrb[0].mxu0
      %1721 = vmatprep.mubr.f32.mxu0 0.0
      %1722 = vmatmul.mubr.f32.gmra.mrb[0].mxu0 %v1363
      %v1723 = vpop.f32.mrb[0].mxu0
      %v1724 = vadd.f32 %v1154, %v1723
      %v1725 = vpop.f32.mrb[0].mxu0
      %1726 = vmatprep.mubr.f32.mxu0 0.0
      %1727 = vmatmul.mubr.f32.gmra.mrb[0].mxu0 %v1366
      %v1728 = vpop.f32.mrb[0].mxu0
      %v1729 = vadd.f32 %v1159, %v1728
      %v1730 = vpop.f32.mrb[0].mxu0
      %1731 = vmatprep.mubr.f32.mxu0 0.0
      %1732 = vmatmul.mubr.f32.gmra.mrb[0].mxu0 %v1369
      %v1733 = vpop.f32.mrb[0].mxu0
      %v1734 = vadd.f32 %v1164, %v1733
      %v1735 = vpop.f32.mrb[0].mxu0
      %1736 = vmatprep.mubr.f32.mxu0 0.0
      %1737 = vmatmul.mubr.f32.gmra.mrb[0].mxu0 %v1372
      %v1738 = vpop.f32.mrb[0].mxu0
      %v1739 = vadd.f32 %v1169, %v1738
      %v1740 = vpop.f32.mrb[0].mxu0
      %1741 = vmatprep.mubr.f32.mxu0 0.0
      %1742 = vmatmul.mubr.f32.gmra.mrb[0].mxu0 %v1375
      %v1743 = vpop.f32.mrb[0].mxu0
      %v1744 = vadd.f32 %v1174, %v1743
      %v1745 = vpop.f32.mrb[0].mxu0
      %1746 = vmatprep.mubr.f32.mxu0 0.0
      %1747 = vmatmul.mubr.f32.gmra.mrb[0].mxu0 %v1378
      %v1748 = vpop.f32.mrb[0].mxu0
      %v1749 = vadd.f32 %v1179, %v1748
      %v1750 = vpop.f32.mrb[0].mxu0
      %1751 = vmatprep.mubr.f32.mxu0 0.0
      %1752 = vmatmul.mubr.f32.gmra.mrb[0].mxu0 %v1381
      %v1753 = vpop.f32.mrb[0].mxu0
      %v1754 = vadd.f32 %v1184, %v1753
      %v1755 = vpop.f32.mrb[0].mxu0
      %1756 = vmatprep.mubr.f32.mxu0 0.0
      %1757 = vmatmul.mubr.f32.gmra.mrb[0].mxu0 %v1384
      %v1758 = vpop.f32.mrb[0].mxu0
      %v1759 = vadd.f32 %v1189, %v1758
      %v1760 = vpop.f32.mrb[0].mxu0
      %1761 = vmatprep.mubr.f32.mxu0 0.0
      %1762 = vmatmul.mubr.f32.gmra.mrb[0].mxu0 %v1387
      %v1763 = vpop.f32.mrb[0].mxu0
      %v1764 = vadd.f32 %v1194, %v1763
      %v1765 = vpop.f32.mrb[0].mxu0
      %1766 = vmatprep.mubr.f32.mxu0 0.0
      %1767 = vmatmul.mubr.f32.gmra.mrb[0].mxu0 %v1390
      %v1768 = vpop.f32.mrb[0].mxu0
      %v1769 = vadd.f32 %v1199, %v1768
      %v1770 = vpop.f32.mrb[0].mxu0
      %1771 = vdwg.mxu0
      %v1772 = vld [vmem:[%s4] sm:$0x7]
      %v1774 = vsel %vm628, %v497, 0
      %v1777 = vsel %vm628, %v498, 0
      %v1780 = vsel %vm628, %v499, 0
      %v1783 = vsel %vm628, %v500, 0
      %v1786 = vsel %vm628, %v501, 0
      %v1789 = vsel %vm628, %v502, 0
      %v1792 = vsel %vm628, %v503, 0
      %v1795 = vsel %vm628, %v504, 0
      %v1798 = vsel %vm628, %v505, 0
      %v1801 = vsel %vm628, %v506, 0
      %v1804 = vsel %vm628, %v507, 0
      %v1807 = vsel %vm628, %v508, 0
      %v1810 = vsel %vm628, %v509, 0
      %v1813 = vsel %vm628, %v510, 0
      %v1816 = vsel %vm628, %v511, 0
      %v1819 = vsel %vm628, %v512, 0
      %v1822 = vsel %vm628, %v513, 0
      %v1825 = vsel %vm628, %v514, 0
      %v1828 = vsel %vm628, %v515, 0
      %v1831 = vsel %vm628, %v516, 0
      %v1834 = vsel %vm628, %v517, 0
      %v1837 = vsel %vm628, %v518, 0
      %v1840 = vsel %vm628, %v519, 0
      %v1843 = vsel %vm628, %v520, 0
      %v1846 = vsel %vm628, %v521, 0
      %v1849 = vsel %vm628, %v522, 0
      %v1852 = vsel %vm628, %v523, 0
      %v1855 = vsel %vm628, %v524, 0
      %v1858 = vsel %vm628, %v525, 0
      %v1861 = vsel %vm628, %v526, 0
      %v1864 = vsel %vm628, %v527, 0
      %v1867 = vsel %vm628, %v528, 0
      %v1870 = vsel %vm628, %v529, 0
      %v1873 = vsel %vm628, %v530, 0
      %v1876 = vsel %vm628, %v531, 0
      %v1879 = vsel %vm628, %v532, 0
      %v1882 = vsel %vm628, %v533, 0
      %v1885 = vsel %vm628, %v534, 0
      %v1888 = vsel %vm628, %v535, 0
      %v1891 = vsel %vm628, %v536, 0
      %v1894 = vsel %vm628, %v537, 0
      %v1897 = vsel %vm628, %v538, 0
      %v1900 = vsel %vm628, %v539, 0
      %v1903 = vsel %vm628, %v540, 0
      %v1906 = vsel %vm628, %v541, 0
      %v1909 = vsel %vm628, %v542, 0
      %v1912 = vsel %vm628, %v543, 0
      %v1915 = vsel %vm628, %v544, 0
      %v1918 = vsel %vm628, %v545, 0
      %v1921 = vsel %vm628, %v546, 0
      %v1924 = vsel %vm628, %v547, 0
      %v1927 = vsel %vm628, %v548, 0
      %v1930 = vsel %vm628, %v549, 0
      %v1933 = vsel %vm628, %v550, 0
      %v1936 = vsel %vm628, %v551, 0
      %v1939 = vsel %vm628, %v552, 0
      %v1942 = vsel %vm628, %v553, 0
      %v1945 = vsel %vm628, %v554, 0
      %v1948 = vsel %vm628, %v555, 0
      %v1951 = vsel %vm628, %v556, 0
      %v1954 = vsel %vm628, %v557, 0
      %v1957 = vsel %vm628, %v558, 0
      %v1960 = vsel %vm628, %v559, 0
      %v1963 = vsel %vm818, %v1772, 0
      %1965 = vmatprep.subr.mxu0 0.0
      %1966 = vmatpush1.msra.mxu0 %v1963
      %1967 = vmatprep.subr.mxu0 0.0
      %1968 = vmatpush1.msra.mxu0 0.0
      %1969 = vmatprep.subr.mxu0 0.0
      %1970 = vmatpush1.msra.mxu0 0.0
      %1971 = vmatprep.subr.mxu0 0.0
      %1972 = vmatpush1.msra.mxu0 0.0
      %1973 = vmatprep.subr.mxu0 0.0
      %1974 = vmatpush1.msra.mxu0 0.0
      %1975 = vmatprep.subr.mxu0 0.0
      %1976 = vmatpush1.msra.mxu0 0.0
      %1977 = vmatprep.subr.mxu0 0.0
      %1978 = vmatpush1.msra.mxu0 0.0
      %1979 = vmatprep.subr.mxu0 0.0
      %1980 = vmatpush1.msra.mxu0 0.0
      %1981 = vmatprep.subr.mxu0 0.0
      %1982 = vmatpush1.msra.mxu0 0.0
      %1983 = vmatprep.subr.mxu0 0.0
      %1984 = vmatpush1.msra.mxu0 0.0
      %1985 = vmatprep.subr.mxu0 0.0
      %1986 = vmatpush1.msra.mxu0 0.0
      %1987 = vmatprep.subr.mxu0 0.0
      %1988 = vmatpush1.msra.mxu0 0.0
      %1989 = vmatprep.subr.mxu0 0.0
      %1990 = vmatpush1.msra.mxu0 0.0
      %1991 = vmatprep.subr.mxu0 0.0
      %1992 = vmatpush1.msra.mxu0 0.0
      %1993 = vmatprep.subr.mxu0 0.0
      %1994 = vmatpush1.msra.mxu0 0.0
      %1995 = vmatprep.subr.mxu0 0.0
      %1996 = vmatpush1.msra.mxu0 0.0
      %1997 = vmatprep.subr.mxu0 0.0
      %1998 = vmatpush1.msra.mxu0 0.0
      %1999 = vmatprep.subr.mxu0 0.0
      %2000 = vmatpush1.msra.mxu0 0.0
      %2001 = vmatprep.subr.mxu0 0.0
      %2002 = vmatpush1.msra.mxu0 0.0
      %2003 = vmatprep.subr.mxu0 0.0
      %2004 = vmatpush1.msra.mxu0 0.0
      %2005 = vmatprep.subr.mxu0 0.0
      %2006 = vmatpush1.msra.mxu0 0.0
      %2007 = vmatprep.subr.mxu0 0.0
      %2008 = vmatpush1.msra.mxu0 0.0
      %2009 = vmatprep.subr.mxu0 0.0
      %2010 = vmatpush1.msra.mxu0 0.0
      %2011 = vmatprep.subr.mxu0 0.0
      %2012 = vmatpush1.msra.mxu0 0.0
      %2013 = vmatprep.subr.mxu0 0.0
      %2014 = vmatpush1.msra.mxu0 0.0
      %2015 = vmatprep.subr.mxu0 0.0
      %2016 = vmatpush1.msra.mxu0 0.0
      %2017 = vmatprep.subr.mxu0 0.0
      %2018 = vmatpush1.msra.mxu0 0.0
      %2019 = vmatprep.subr.mxu0 0.0
      %2020 = vmatpush1.msra.mxu0 0.0
      %2021 = vmatprep.subr.mxu0 0.0
      %2022 = vmatpush1.msra.mxu0 0.0
      %2023 = vmatprep.subr.mxu0 0.0
      %2024 = vmatpush1.msra.mxu0 0.0
      %2025 = vmatprep.subr.mxu0 0.0
      %2026 = vmatpush1.msra.mxu0 0.0
      %2027 = vmatprep.subr.mxu0 0.0
      %2028 = vmatpush1.msra.mxu0 0.0
      %2029 = vmatprep.mubr.f32.mxu0 0.0
      %2030 = vmatmul.mubr.f32.gmra.mrb[0].mxu0 %v1774
      %v2031 = vpop.f32.mrb[0].mxu0
      %v2032 = vadd.f32 0.0, %v2031
      %v2033 = vpop.f32.mrb[0].mxu0
      %2034 = vmatprep.mubr.f32.mxu0 0.0
      %2035 = vmatmul.mubr.f32.gmra.mrb[0].mxu0 %v1777
      %v2036 = vpop.f32.mrb[0].mxu0
      %v2037 = vadd.f32 0.0, %v2036
      %v2038 = vpop.f32.mrb[0].mxu0
      %2039 = vmatprep.mubr.f32.mxu0 0.0
      %2040 = vmatmul.mubr.f32.gmra.mrb[0].mxu0 %v1780
      %v2041 = vpop.f32.mrb[0].mxu0
      %v2042 = vadd.f32 0.0, %v2041
      %v2043 = vpop.f32.mrb[0].mxu0
      %2044 = vmatprep.mubr.f32.mxu0 0.0
      %2045 = vmatmul.mubr.f32.gmra.mrb[0].mxu0 %v1783
      %v2046 = vpop.f32.mrb[0].mxu0
      %v2047 = vadd.f32 0.0, %v2046
      %v2048 = vpop.f32.mrb[0].mxu0
      %2049 = vmatprep.mubr.f32.mxu0 0.0
      %2050 = vmatmul.mubr.f32.gmra.mrb[0].mxu0 %v1786
      %v2051 = vpop.f32.mrb[0].mxu0
      %v2052 = vadd.f32 0.0, %v2051
      %v2053 = vpop.f32.mrb[0].mxu0
      %2054 = vmatprep.mubr.f32.mxu0 0.0
      %2055 = vmatmul.mubr.f32.gmra.mrb[0].mxu0 %v1789
      %v2056 = vpop.f32.mrb[0].mxu0
      %v2057 = vadd.f32 0.0, %v2056
      %v2058 = vpop.f32.mrb[0].mxu0
      %2059 = vmatprep.mubr.f32.mxu0 0.0
      %2060 = vmatmul.mubr.f32.gmra.mrb[0].mxu0 %v1792
      %v2061 = vpop.f32.mrb[0].mxu0
      %v2062 = vadd.f32 0.0, %v2061
      %v2063 = vpop.f32.mrb[0].mxu0
      %2064 = vmatprep.mubr.f32.mxu0 0.0
      %2065 = vmatmul.mubr.f32.gmra.mrb[0].mxu0 %v1795
      %v2066 = vpop.f32.mrb[0].mxu0
      %v2067 = vadd.f32 0.0, %v2066
      %v2068 = vpop.f32.mrb[0].mxu0
      %2069 = vmatprep.mubr.f32.mxu0 0.0
      %2070 = vmatmul.mubr.f32.gmra.mrb[0].mxu0 %v1798
      %v2071 = vpop.f32.mrb[0].mxu0
      %v2072 = vadd.f32 0.0, %v2071
      %v2073 = vpop.f32.mrb[0].mxu0
      %2074 = vmatprep.mubr.f32.mxu0 0.0
      %2075 = vmatmul.mubr.f32.gmra.mrb[0].mxu0 %v1801
      %v2076 = vpop.f32.mrb[0].mxu0
      %v2077 = vadd.f32 0.0, %v2076
      %v2078 = vpop.f32.mrb[0].mxu0
      %2079 = vmatprep.mubr.f32.mxu0 0.0
      %2080 = vmatmul.mubr.f32.gmra.mrb[0].mxu0 %v1804
      %v2081 = vpop.f32.mrb[0].mxu0
      %v2082 = vadd.f32 0.0, %v2081
      %v2083 = vpop.f32.mrb[0].mxu0
      %2084 = vmatprep.mubr.f32.mxu0 0.0
      %2085 = vmatmul.mubr.f32.gmra.mrb[0].mxu0 %v1807
      %v2086 = vpop.f32.mrb[0].mxu0
      %v2087 = vadd.f32 0.0, %v2086
      %v2088 = vpop.f32.mrb[0].mxu0
      %2089 = vmatprep.mubr.f32.mxu0 0.0
      %2090 = vmatmul.mubr.f32.gmra.mrb[0].mxu0 %v1810
      %v2091 = vpop.f32.mrb[0].mxu0
      %v2092 = vadd.f32 0.0, %v2091
      %v2093 = vpop.f32.mrb[0].mxu0
      %2094 = vmatprep.mubr.f32.mxu0 0.0
      %2095 = vmatmul.mubr.f32.gmra.mrb[0].mxu0 %v1813
      %v2096 = vpop.f32.mrb[0].mxu0
      %v2097 = vadd.f32 0.0, %v2096
      %v2098 = vpop.f32.mrb[0].mxu0
      %2099 = vmatprep.mubr.f32.mxu0 0.0
      %2100 = vmatmul.mubr.f32.gmra.mrb[0].mxu0 %v1816
      %v2101 = vpop.f32.mrb[0].mxu0
      %v2102 = vadd.f32 0.0, %v2101
      %v2103 = vpop.f32.mrb[0].mxu0
      %2104 = vmatprep.mubr.f32.mxu0 0.0
      %2105 = vmatmul.mubr.f32.gmra.mrb[0].mxu0 %v1819
      %v2106 = vpop.f32.mrb[0].mxu0
      %v2107 = vadd.f32 0.0, %v2106
      %v2108 = vpop.f32.mrb[0].mxu0
      %2109 = vmatprep.mubr.f32.mxu0 0.0
      %2110 = vmatmul.mubr.f32.gmra.mrb[0].mxu0 %v1822
      %v2111 = vpop.f32.mrb[0].mxu0
      %v2112 = vadd.f32 0.0, %v2111
      %v2113 = vpop.f32.mrb[0].mxu0
      %2114 = vmatprep.mubr.f32.mxu0 0.0
      %2115 = vmatmul.mubr.f32.gmra.mrb[0].mxu0 %v1825
      %v2116 = vpop.f32.mrb[0].mxu0
      %v2117 = vadd.f32 0.0, %v2116
      %v2118 = vpop.f32.mrb[0].mxu0
      %2119 = vmatprep.mubr.f32.mxu0 0.0
      %2120 = vmatmul.mubr.f32.gmra.mrb[0].mxu0 %v1828
      %v2121 = vpop.f32.mrb[0].mxu0
      %v2122 = vadd.f32 0.0, %v2121
      %v2123 = vpop.f32.mrb[0].mxu0
      %2124 = vmatprep.mubr.f32.mxu0 0.0
      %2125 = vmatmul.mubr.f32.gmra.mrb[0].mxu0 %v1831
      %v2126 = vpop.f32.mrb[0].mxu0
      %v2127 = vadd.f32 0.0, %v2126
      %v2128 = vpop.f32.mrb[0].mxu0
      %2129 = vmatprep.mubr.f32.mxu0 0.0
      %2130 = vmatmul.mubr.f32.gmra.mrb[0].mxu0 %v1834
      %v2131 = vpop.f32.mrb[0].mxu0
      %v2132 = vadd.f32 0.0, %v2131
      %v2133 = vpop.f32.mrb[0].mxu0
      %2134 = vmatprep.mubr.f32.mxu0 0.0
      %2135 = vmatmul.mubr.f32.gmra.mrb[0].mxu0 %v1837
      %v2136 = vpop.f32.mrb[0].mxu0
      %v2137 = vadd.f32 0.0, %v2136
      %v2138 = vpop.f32.mrb[0].mxu0
      %2139 = vmatprep.mubr.f32.mxu0 0.0
      %2140 = vmatmul.mubr.f32.gmra.mrb[0].mxu0 %v1840
      %v2141 = vpop.f32.mrb[0].mxu0
      %v2142 = vadd.f32 0.0, %v2141
      %v2143 = vpop.f32.mrb[0].mxu0
      %2144 = vmatprep.mubr.f32.mxu0 0.0
      %2145 = vmatmul.mubr.f32.gmra.mrb[0].mxu0 %v1843
      %v2146 = vpop.f32.mrb[0].mxu0
      %v2147 = vadd.f32 0.0, %v2146
      %v2148 = vpop.f32.mrb[0].mxu0
      %2149 = vmatprep.mubr.f32.mxu0 0.0
      %2150 = vmatmul.mubr.f32.gmra.mrb[0].mxu0 %v1846
      %v2151 = vpop.f32.mrb[0].mxu0
      %v2152 = vadd.f32 0.0, %v2151
      %v2153 = vpop.f32.mrb[0].mxu0
      %2154 = vmatprep.mubr.f32.mxu0 0.0
      %2155 = vmatmul.mubr.f32.gmra.mrb[0].mxu0 %v1849
      %v2156 = vpop.f32.mrb[0].mxu0
      %v2157 = vadd.f32 0.0, %v2156
      %v2158 = vpop.f32.mrb[0].mxu0
      %2159 = vmatprep.mubr.f32.mxu0 0.0
      %2160 = vmatmul.mubr.f32.gmra.mrb[0].mxu0 %v1852
      %v2161 = vpop.f32.mrb[0].mxu0
      %v2162 = vadd.f32 0.0, %v2161
      %v2163 = vpop.f32.mrb[0].mxu0
      %2164 = vmatprep.mubr.f32.mxu0 0.0
      %2165 = vmatmul.mubr.f32.gmra.mrb[0].mxu0 %v1855
      %v2166 = vpop.f32.mrb[0].mxu0
      %v2167 = vadd.f32 0.0, %v2166
      %v2168 = vpop.f32.mrb[0].mxu0
      %2169 = vmatprep.mubr.f32.mxu0 0.0
      %2170 = vmatmul.mubr.f32.gmra.mrb[0].mxu0 %v1858
      %v2171 = vpop.f32.mrb[0].mxu0
      %v2172 = vadd.f32 0.0, %v2171
      %v2173 = vpop.f32.mrb[0].mxu0
      %2174 = vmatprep.mubr.f32.mxu0 0.0
      %2175 = vmatmul.mubr.f32.gmra.mrb[0].mxu0 %v1861
      %v2176 = vpop.f32.mrb[0].mxu0
      %v2177 = vadd.f32 0.0, %v2176
      %v2178 = vpop.f32.mrb[0].mxu0
      %2179 = vmatprep.mubr.f32.mxu0 0.0
      %2180 = vmatmul.mubr.f32.gmra.mrb[0].mxu0 %v1864
      %v2181 = vpop.f32.mrb[0].mxu0
      %v2182 = vadd.f32 0.0, %v2181
      %v2183 = vpop.f32.mrb[0].mxu0
      %2184 = vmatprep.mubr.f32.mxu0 0.0
      %2185 = vmatmul.mubr.f32.gmra.mrb[0].mxu0 %v1867
      %v2186 = vpop.f32.mrb[0].mxu0
      %v2187 = vadd.f32 0.0, %v2186
      %v2188 = vpop.f32.mrb[0].mxu0
      %2189 = vmatprep.mubr.f32.mxu0 0.0
      %2190 = vmatmul.mubr.f32.gmra.mrb[0].mxu0 %v1870
      %v2191 = vpop.f32.mrb[0].mxu0
      %v2192 = vadd.f32 0.0, %v2191
      %v2193 = vpop.f32.mrb[0].mxu0
      %2194 = vmatprep.mubr.f32.mxu0 0.0
      %2195 = vmatmul.mubr.f32.gmra.mrb[0].mxu0 %v1873
      %v2196 = vpop.f32.mrb[0].mxu0
      %v2197 = vadd.f32 0.0, %v2196
      %v2198 = vpop.f32.mrb[0].mxu0
      %2199 = vmatprep.mubr.f32.mxu0 0.0
      %2200 = vmatmul.mubr.f32.gmra.mrb[0].mxu0 %v1876
      %v2201 = vpop.f32.mrb[0].mxu0
      %v2202 = vadd.f32 0.0, %v2201
      %v2203 = vpop.f32.mrb[0].mxu0
      %2204 = vmatprep.mubr.f32.mxu0 0.0
      %2205 = vmatmul.mubr.f32.gmra.mrb[0].mxu0 %v1879
      %v2206 = vpop.f32.mrb[0].mxu0
      %v2207 = vadd.f32 0.0, %v2206
      %v2208 = vpop.f32.mrb[0].mxu0
      %2209 = vmatprep.mubr.f32.mxu0 0.0
      %2210 = vmatmul.mubr.f32.gmra.mrb[0].mxu0 %v1882
      %v2211 = vpop.f32.mrb[0].mxu0
      %v2212 = vadd.f32 0.0, %v2211
      %v2213 = vpop.f32.mrb[0].mxu0
      %2214 = vmatprep.mubr.f32.mxu0 0.0
      %2215 = vmatmul.mubr.f32.gmra.mrb[0].mxu0 %v1885
      %v2216 = vpop.f32.mrb[0].mxu0
      %v2217 = vadd.f32 0.0, %v2216
      %v2218 = vpop.f32.mrb[0].mxu0
      %2219 = vmatprep.mubr.f32.mxu0 0.0
      %2220 = vmatmul.mubr.f32.gmra.mrb[0].mxu0 %v1888
      %v2221 = vpop.f32.mrb[0].mxu0
      %v2222 = vadd.f32 0.0, %v2221
      %v2223 = vpop.f32.mrb[0].mxu0
      %2224 = vmatprep.mubr.f32.mxu0 0.0
      %2225 = vmatmul.mubr.f32.gmra.mrb[0].mxu0 %v1891
      %v2226 = vpop.f32.mrb[0].mxu0
      %v2227 = vadd.f32 0.0, %v2226
      %v2228 = vpop.f32.mrb[0].mxu0
      %2229 = vmatprep.mubr.f32.mxu0 0.0
      %2230 = vmatmul.mubr.f32.gmra.mrb[0].mxu0 %v1894
      %v2231 = vpop.f32.mrb[0].mxu0
      %v2232 = vadd.f32 0.0, %v2231
      %v2233 = vpop.f32.mrb[0].mxu0
      %2234 = vmatprep.mubr.f32.mxu0 0.0
      %2235 = vmatmul.mubr.f32.gmra.mrb[0].mxu0 %v1897
      %v2236 = vpop.f32.mrb[0].mxu0
      %v2237 = vadd.f32 0.0, %v2236
      %v2238 = vpop.f32.mrb[0].mxu0
      %2239 = vmatprep.mubr.f32.mxu0 0.0
      %2240 = vmatmul.mubr.f32.gmra.mrb[0].mxu0 %v1900
      %v2241 = vpop.f32.mrb[0].mxu0
      %v2242 = vadd.f32 0.0, %v2241
      %v2243 = vpop.f32.mrb[0].mxu0
      %2244 = vmatprep.mubr.f32.mxu0 0.0
      %2245 = vmatmul.mubr.f32.gmra.mrb[0].mxu0 %v1903
      %v2246 = vpop.f32.mrb[0].mxu0
      %v2247 = vadd.f32 0.0, %v2246
      %v2248 = vpop.f32.mrb[0].mxu0
      %2249 = vmatprep.mubr.f32.mxu0 0.0
      %2250 = vmatmul.mubr.f32.gmra.mrb[0].mxu0 %v1906
      %v2251 = vpop.f32.mrb[0].mxu0
      %v2252 = vadd.f32 0.0, %v2251
      %v2253 = vpop.f32.mrb[0].mxu0
      %2254 = vmatprep.mubr.f32.mxu0 0.0
      %2255 = vmatmul.mubr.f32.gmra.mrb[0].mxu0 %v1909
      %v2256 = vpop.f32.mrb[0].mxu0
      %v2257 = vadd.f32 0.0, %v2256
      %v2258 = vpop.f32.mrb[0].mxu0
      %2259 = vmatprep.mubr.f32.mxu0 0.0
      %2260 = vmatmul.mubr.f32.gmra.mrb[0].mxu0 %v1912
      %v2261 = vpop.f32.mrb[0].mxu0
      %v2262 = vadd.f32 0.0, %v2261
      %v2263 = vpop.f32.mrb[0].mxu0
      %2264 = vmatprep.mubr.f32.mxu0 0.0
      %2265 = vmatmul.mubr.f32.gmra.mrb[0].mxu0 %v1915
      %v2266 = vpop.f32.mrb[0].mxu0
      %v2267 = vadd.f32 0.0, %v2266
      %v2268 = vpop.f32.mrb[0].mxu0
      %2269 = vmatprep.mubr.f32.mxu0 0.0
      %2270 = vmatmul.mubr.f32.gmra.mrb[0].mxu0 %v1918
      %v2271 = vpop.f32.mrb[0].mxu0
      %v2272 = vadd.f32 0.0, %v2271
      %v2273 = vpop.f32.mrb[0].mxu0
      %2274 = vmatprep.mubr.f32.mxu0 0.0
      %2275 = vmatmul.mubr.f32.gmra.mrb[0].mxu0 %v1921
      %v2276 = vpop.f32.mrb[0].mxu0
      %v2277 = vadd.f32 0.0, %v2276
      %v2278 = vpop.f32.mrb[0].mxu0
      %2279 = vmatprep.mubr.f32.mxu0 0.0
      %2280 = vmatmul.mubr.f32.gmra.mrb[0].mxu0 %v1924
      %v2281 = vpop.f32.mrb[0].mxu0
      %v2282 = vadd.f32 0.0, %v2281
      %v2283 = vpop.f32.mrb[0].mxu0
      %2284 = vmatprep.mubr.f32.mxu0 0.0
      %2285 = vmatmul.mubr.f32.gmra.mrb[0].mxu0 %v1927
      %v2286 = vpop.f32.mrb[0].mxu0
      %v2287 = vadd.f32 0.0, %v2286
      %v2288 = vpop.f32.mrb[0].mxu0
      %2289 = vmatprep.mubr.f32.mxu0 0.0
      %2290 = vmatmul.mubr.f32.gmra.mrb[0].mxu0 %v1930
      %v2291 = vpop.f32.mrb[0].mxu0
      %v2292 = vadd.f32 0.0, %v2291
      %v2293 = vpop.f32.mrb[0].mxu0
      %2294 = vmatprep.mubr.f32.mxu0 0.0
      %2295 = vmatmul.mubr.f32.gmra.mrb[0].mxu0 %v1933
      %v2296 = vpop.f32.mrb[0].mxu0
      %v2297 = vadd.f32 0.0, %v2296
      %v2298 = vpop.f32.mrb[0].mxu0
      %2299 = vmatprep.mubr.f32.mxu0 0.0
      %2300 = vmatmul.mubr.f32.gmra.mrb[0].mxu0 %v1936
      %v2301 = vpop.f32.mrb[0].mxu0
      %v2302 = vadd.f32 0.0, %v2301
      %v2303 = vpop.f32.mrb[0].mxu0
      %2304 = vmatprep.mubr.f32.mxu0 0.0
      %2305 = vmatmul.mubr.f32.gmra.mrb[0].mxu0 %v1939
      %v2306 = vpop.f32.mrb[0].mxu0
      %v2307 = vadd.f32 0.0, %v2306
      %v2308 = vpop.f32.mrb[0].mxu0
      %2309 = vmatprep.mubr.f32.mxu0 0.0
      %2310 = vmatmul.mubr.f32.gmra.mrb[0].mxu0 %v1942
      %v2311 = vpop.f32.mrb[0].mxu0
      %v2312 = vadd.f32 0.0, %v2311
      %v2313 = vpop.f32.mrb[0].mxu0
      %2314 = vmatprep.mubr.f32.mxu0 0.0
      %2315 = vmatmul.mubr.f32.gmra.mrb[0].mxu0 %v1945
      %v2316 = vpop.f32.mrb[0].mxu0
      %v2317 = vadd.f32 0.0, %v2316
      %v2318 = vpop.f32.mrb[0].mxu0
      %2319 = vmatprep.mubr.f32.mxu0 0.0
      %2320 = vmatmul.mubr.f32.gmra.mrb[0].mxu0 %v1948
      %v2321 = vpop.f32.mrb[0].mxu0
      %v2322 = vadd.f32 0.0, %v2321
      %v2323 = vpop.f32.mrb[0].mxu0
      %2324 = vmatprep.mubr.f32.mxu0 0.0
      %2325 = vmatmul.mubr.f32.gmra.mrb[0].mxu0 %v1951
      %v2326 = vpop.f32.mrb[0].mxu0
      %v2327 = vadd.f32 0.0, %v2326
      %v2328 = vpop.f32.mrb[0].mxu0
      %2329 = vmatprep.mubr.f32.mxu0 0.0
      %2330 = vmatmul.mubr.f32.gmra.mrb[0].mxu0 %v1954
      %v2331 = vpop.f32.mrb[0].mxu0
      %v2332 = vadd.f32 0.0, %v2331
      %v2333 = vpop.f32.mrb[0].mxu0
      %2334 = vmatprep.mubr.f32.mxu0 0.0
      %2335 = vmatmul.mubr.f32.gmra.mrb[0].mxu0 %v1957
      %v2336 = vpop.f32.mrb[0].mxu0
      %v2337 = vadd.f32 0.0, %v2336
      %v2338 = vpop.f32.mrb[0].mxu0
      %2339 = vmatprep.mubr.f32.mxu0 0.0
      %2340 = vmatmul.mubr.f32.gmra.mrb[0].mxu0 %v1960
      %v2341 = vpop.f32.mrb[0].mxu0
      %v2342 = vadd.f32 0.0, %v2341
      %v2343 = vpop.f32.mrb[0].mxu0
      %2344 = vdwg.mxu0
      %v2345 = vadd.f32 %v1459, %v2032
      %v2346 = vadd.f32 %v1464, %v2037
      %v2347 = vadd.f32 %v1469, %v2042
      %v2348 = vadd.f32 %v1474, %v2047
      %v2349 = vadd.f32 %v1479, %v2052
      %v2350 = vadd.f32 %v1484, %v2057
      %v2351 = vadd.f32 %v1489, %v2062
      %v2352 = vadd.f32 %v1494, %v2067
      %v2353 = vadd.f32 %v1499, %v2072
      %v2354 = vadd.f32 %v1504, %v2077
      %v2355 = vadd.f32 %v1509, %v2082
      %v2356 = vadd.f32 %v1514, %v2087
      %v2357 = vadd.f32 %v1519, %v2092
      %v2358 = vadd.f32 %v1524, %v2097
      %v2359 = vadd.f32 %v1529, %v2102
      %v2360 = vadd.f32 %v1534, %v2107
      %v2361 = vadd.f32 %v1539, %v2112
      %v2362 = vadd.f32 %v1544, %v2117
      %v2363 = vadd.f32 %v1549, %v2122
      %v2364 = vadd.f32 %v1554, %v2127
      %v2365 = vadd.f32 %v1559, %v2132
      %v2366 = vadd.f32 %v1564, %v2137
      %v2367 = vadd.f32 %v1569, %v2142
      %v2368 = vadd.f32 %v1574, %v2147
      %v2369 = vadd.f32 %v1579, %v2152
      %v2370 = vadd.f32 %v1584, %v2157
      %v2371 = vadd.f32 %v1589, %v2162
      %v2372 = vadd.f32 %v1594, %v2167
      %v2373 = vadd.f32 %v1599, %v2172
      %v2374 = vadd.f32 %v1604, %v2177
      %v2375 = vadd.f32 %v1609, %v2182
      %v2376 = vadd.f32 %v1614, %v2187
      %v2377 = vadd.f32 %v1619, %v2192
      %v2378 = vadd.f32 %v1624, %v2197
      %v2379 = vadd.f32 %v1629, %v2202
      %v2380 = vadd.f32 %v1634, %v2207
      %v2381 = vadd.f32 %v1639, %v2212
      %v2382 = vadd.f32 %v1644, %v2217
      %v2383 = vadd.f32 %v1649, %v2222
      %v2384 = vadd.f32 %v1654, %v2227
      %v2385 = vadd.f32 %v1659, %v2232
      %v2386 = vadd.f32 %v1664, %v2237
      %v2387 = vadd.f32 %v1669, %v2242
      %v2388 = vadd.f32 %v1674, %v2247
      %v2389 = vadd.f32 %v1679, %v2252
      %v2390 = vadd.f32 %v1684, %v2257
      %v2391 = vadd.f32 %v1689, %v2262
      %v2392 = vadd.f32 %v1694, %v2267
      %v2393 = vadd.f32 %v1699, %v2272
      %v2394 = vadd.f32 %v1704, %v2277
      %v2395 = vadd.f32 %v1709, %v2282
      %v2396 = vadd.f32 %v1714, %v2287
      %v2397 = vadd.f32 %v1719, %v2292
      %v2398 = vadd.f32 %v1724, %v2297
      %v2399 = vadd.f32 %v1729, %v2302
      %v2400 = vadd.f32 %v1734, %v2307
      %v2401 = vadd.f32 %v1739, %v2312
      %v2402 = vadd.f32 %v1744, %v2317
      %v2403 = vadd.f32 %v1749, %v2322
      %v2404 = vadd.f32 %v1754, %v2327
      %v2405 = vadd.f32 %v1759, %v2332
      %v2406 = vadd.f32 %v1764, %v2337
      %v2407 = vadd.f32 %v1769, %v2342
      %v2408 = vld [vmem:[%s6] sm:$0x1]
      %v2410 = vlaneseq
      %v2411 = vshrl.u32 %v2410, 7
      %v2412 = vsub.s32 0, %v2411
      %v2413 = vrot.slane %v2408, %v2412
      %v2415 = vadd.f32 %v2345, %v2413
      %v2416 = vadd.f32 %v2346, %v2413
      %v2417 = vadd.f32 %v2347, %v2413
      %v2418 = vadd.f32 %v2348, %v2413
      %v2419 = vadd.f32 %v2349, %v2413
      %v2420 = vadd.f32 %v2350, %v2413
      %v2421 = vadd.f32 %v2351, %v2413
      %v2422 = vadd.f32 %v2352, %v2413
      %v2423 = vadd.f32 %v2353, %v2413
      %v2424 = vadd.f32 %v2354, %v2413
      %v2425 = vadd.f32 %v2355, %v2413
      %v2426 = vadd.f32 %v2356, %v2413
      %v2427 = vadd.f32 %v2357, %v2413
      %v2428 = vadd.f32 %v2358, %v2413
      %v2429 = vadd.f32 %v2359, %v2413
      %v2430 = vadd.f32 %v2360, %v2413
      %v2431 = vadd.f32 %v2361, %v2413
      %v2432 = vadd.f32 %v2362, %v2413
      %v2433 = vadd.f32 %v2363, %v2413
      %v2434 = vadd.f32 %v2364, %v2413
      %v2435 = vadd.f32 %v2365, %v2413
      %v2436 = vadd.f32 %v2366, %v2413
      %v2437 = vadd.f32 %v2367, %v2413
      %v2438 = vadd.f32 %v2368, %v2413
      %v2439 = vadd.f32 %v2369, %v2413
      %v2440 = vadd.f32 %v2370, %v2413
      %v2441 = vadd.f32 %v2371, %v2413
      %v2442 = vadd.f32 %v2372, %v2413
      %v2443 = vadd.f32 %v2373, %v2413
      %v2444 = vadd.f32 %v2374, %v2413
      %v2445 = vadd.f32 %v2375, %v2413
      %v2446 = vadd.f32 %v2376, %v2413
      %v2447 = vadd.f32 %v2377, %v2413
      %v2448 = vadd.f32 %v2378, %v2413
      %v2449 = vadd.f32 %v2379, %v2413
      %v2450 = vadd.f32 %v2380, %v2413
      %v2451 = vadd.f32 %v2381, %v2413
      %v2452 = vadd.f32 %v2382, %v2413
      %v2453 = vadd.f32 %v2383, %v2413
      %v2454 = vadd.f32 %v2384, %v2413
      %v2455 = vadd.f32 %v2385, %v2413
      %v2456 = vadd.f32 %v2386, %v2413
      %v2457 = vadd.f32 %v2387, %v2413
      %v2458 = vadd.f32 %v2388, %v2413
      %v2459 = vadd.f32 %v2389, %v2413
      %v2460 = vadd.f32 %v2390, %v2413
      %v2461 = vadd.f32 %v2391, %v2413
      %v2462 = vadd.f32 %v2392, %v2413
      %v2463 = vadd.f32 %v2393, %v2413
      %v2464 = vadd.f32 %v2394, %v2413
      %v2465 = vadd.f32 %v2395, %v2413
      %v2466 = vadd.f32 %v2396, %v2413
      %v2467 = vadd.f32 %v2397, %v2413
      %v2468 = vadd.f32 %v2398, %v2413
      %v2469 = vadd.f32 %v2399, %v2413
      %v2470 = vadd.f32 %v2400, %v2413
      %v2471 = vadd.f32 %v2401, %v2413
      %v2472 = vadd.f32 %v2402, %v2413
      %v2473 = vadd.f32 %v2403, %v2413
      %v2474 = vadd.f32 %v2404, %v2413
      %v2475 = vadd.f32 %v2405, %v2413
      %v2476 = vadd.f32 %v2406, %v2413
      %v2477 = vadd.f32 %v2407, %v2413
      %v2478 = vmax.f32 %v2415, 0.0
      %v2479 = vmax.f32 %v2416, 0.0
      %v2480 = vmax.f32 %v2417, 0.0
      %v2481 = vmax.f32 %v2418, 0.0
      %v2482 = vmax.f32 %v2419, 0.0
      %v2483 = vmax.f32 %v2420, 0.0
      %v2484 = vmax.f32 %v2421, 0.0
      %v2485 = vmax.f32 %v2422, 0.0
      %v2486 = vmax.f32 %v2423, 0.0
      %v2487 = vmax.f32 %v2424, 0.0
      %v2488 = vmax.f32 %v2425, 0.0
      %v2489 = vmax.f32 %v2426, 0.0
      %v2490 = vmax.f32 %v2427, 0.0
      %v2491 = vmax.f32 %v2428, 0.0
      %v2492 = vmax.f32 %v2429, 0.0
      %v2493 = vmax.f32 %v2430, 0.0
      %v2494 = vmax.f32 %v2431, 0.0
      %v2495 = vmax.f32 %v2432, 0.0
      %v2496 = vmax.f32 %v2433, 0.0
      %v2497 = vmax.f32 %v2434, 0.0
      %v2498 = vmax.f32 %v2435, 0.0
      %v2499 = vmax.f32 %v2436, 0.0
      %v2500 = vmax.f32 %v2437, 0.0
      %v2501 = vmax.f32 %v2438, 0.0
      %v2502 = vmax.f32 %v2439, 0.0
      %v2503 = vmax.f32 %v2440, 0.0
      %v2504 = vmax.f32 %v2441, 0.0
      %v2505 = vmax.f32 %v2442, 0.0
      %v2506 = vmax.f32 %v2443, 0.0
      %v2507 = vmax.f32 %v2444, 0.0
      %v2508 = vmax.f32 %v2445, 0.0
      %v2509 = vmax.f32 %v2446, 0.0
      %v2510 = vmax.f32 %v2447, 0.0
      %v2511 = vmax.f32 %v2448, 0.0
      %v2512 = vmax.f32 %v2449, 0.0
      %v2513 = vmax.f32 %v2450, 0.0
      %v2514 = vmax.f32 %v2451, 0.0
      %v2515 = vmax.f32 %v2452, 0.0
      %v2516 = vmax.f32 %v2453, 0.0
      %v2517 = vmax.f32 %v2454, 0.0
      %v2518 = vmax.f32 %v2455, 0.0
      %v2519 = vmax.f32 %v2456, 0.0
      %v2520 = vmax.f32 %v2457, 0.0
      %v2521 = vmax.f32 %v2458, 0.0
      %v2522 = vmax.f32 %v2459, 0.0
      %v2523 = vmax.f32 %v2460, 0.0
      %v2524 = vmax.f32 %v2461, 0.0
      %v2525 = vmax.f32 %v2462, 0.0
      %v2526 = vmax.f32 %v2463, 0.0
      %v2527 = vmax.f32 %v2464, 0.0
      %v2528 = vmax.f32 %v2465, 0.0
      %v2529 = vmax.f32 %v2466, 0.0
      %v2530 = vmax.f32 %v2467, 0.0
      %v2531 = vmax.f32 %v2468, 0.0
      %v2532 = vmax.f32 %v2469, 0.0
      %v2533 = vmax.f32 %v2470, 0.0
      %v2534 = vmax.f32 %v2471, 0.0
      %v2535 = vmax.f32 %v2472, 0.0
      %v2536 = vmax.f32 %v2473, 0.0
      %v2537 = vmax.f32 %v2474, 0.0
      %v2538 = vmax.f32 %v2475, 0.0
      %v2539 = vmax.f32 %v2476, 0.0
      %v2540 = vmax.f32 %v2477, 0.0
      %v2541 = vld [vmem:[%s7] sm:$0xff]
      %v2542 = vld [vmem:[%s7 + $0x8] sm:$0xff]
      %v2543 = vld [vmem:[%s7 + $0x10] sm:$0xff]
      %v2544 = vld [vmem:[%s7 + $0x18] sm:$0xff]
      %v2545 = vld [vmem:[%s7 + $0x20] sm:$0xff]
      %v2546 = vld [vmem:[%s7 + $0x28] sm:$0xff]
      %v2547 = vld [vmem:[%s7 + $0x30] sm:$0xff]
      %v2548 = vld [vmem:[%s7 + $0x38] sm:$0xff]
      %v2549 = vld [vmem:[%s8] sm:$0x1]
      %v2551 = vlaneseq
      %v2552 = vshrl.u32 %v2551, 7
      %v2553 = vsub.s32 0, %v2552
      %v2554 = vrot.slane %v2549, %v2553
      %vm2556 = vcmask 523264
      %v2558 = vsel %vm2556, %v2478, 0
      %v2561 = vsel %vm2556, %v2479, 0
      %v2564 = vsel %vm2556, %v2480, 0
      %v2567 = vsel %vm2556, %v2481, 0
      %v2570 = vsel %vm2556, %v2482, 0
      %v2573 = vsel %vm2556, %v2483, 0
      %v2576 = vsel %vm2556, %v2484, 0
      %v2579 = vsel %vm2556, %v2485, 0
      %v2582 = vsel %vm2556, %v2486, 0
      %v2585 = vsel %vm2556, %v2487, 0
      %v2588 = vsel %vm2556, %v2488, 0
      %v2591 = vsel %vm2556, %v2489, 0
      %v2594 = vsel %vm2556, %v2490, 0
      %v2597 = vsel %vm2556, %v2491, 0
      %v2600 = vsel %vm2556, %v2492, 0
      %v2603 = vsel %vm2556, %v2493, 0
      %v2606 = vsel %vm2556, %v2494, 0
      %v2609 = vsel %vm2556, %v2495, 0
      %v2612 = vsel %vm2556, %v2496, 0
      %v2615 = vsel %vm2556, %v2497, 0
      %v2618 = vsel %vm2556, %v2498, 0
      %v2621 = vsel %vm2556, %v2499, 0
      %v2624 = vsel %vm2556, %v2500, 0
      %v2627 = vsel %vm2556, %v2501, 0
      %v2630 = vsel %vm2556, %v2502, 0
      %v2633 = vsel %vm2556, %v2503, 0
      %v2636 = vsel %vm2556, %v2504, 0
      %v2639 = vsel %vm2556, %v2505, 0
      %v2642 = vsel %vm2556, %v2506, 0
      %v2645 = vsel %vm2556, %v2507, 0
      %v2648 = vsel %vm2556, %v2508, 0
      %v2651 = vsel %vm2556, %v2509, 0
      %v2654 = vsel %vm2556, %v2510, 0
      %v2657 = vsel %vm2556, %v2511, 0
      %v2660 = vsel %vm2556, %v2512, 0
      %v2663 = vsel %vm2556, %v2513, 0
      %v2666 = vsel %vm2556, %v2514, 0
      %v2669 = vsel %vm2556, %v2515, 0
      %v2672 = vsel %vm2556, %v2516, 0
      %v2675 = vsel %vm2556, %v2517, 0
      %v2678 = vsel %vm2556, %v2518, 0
      %v2681 = vsel %vm2556, %v2519, 0
      %v2684 = vsel %vm2556, %v2520, 0
      %v2687 = vsel %vm2556, %v2521, 0
      %v2690 = vsel %vm2556, %v2522, 0
      %v2693 = vsel %vm2556, %v2523, 0
      %v2696 = vsel %vm2556, %v2524, 0
      %v2699 = vsel %vm2556, %v2525, 0
      %v2702 = vsel %vm2556, %v2526, 0
      %v2705 = vsel %vm2556, %v2527, 0
      %v2708 = vsel %vm2556, %v2528, 0
      %v2711 = vsel %vm2556, %v2529, 0
      %v2714 = vsel %vm2556, %v2530, 0
      %v2717 = vsel %vm2556, %v2531, 0
      %v2720 = vsel %vm2556, %v2532, 0
      %v2723 = vsel %vm2556, %v2533, 0
      %v2726 = vsel %vm2556, %v2534, 0
      %v2729 = vsel %vm2556, %v2535, 0
      %v2732 = vsel %vm2556, %v2536, 0
      %v2735 = vsel %vm2556, %v2537, 0
      %v2738 = vsel %vm2556, %v2538, 0
      %v2741 = vsel %vm2556, %v2539, 0
      %v2744 = vsel %vm2556, %v2540, 0
      %2746 = vmatprep.subr.mxu0 0.0
      %2747 = vmatpush1.msra.mxu0 %v2541
      %2748 = vmatprep.subr.mxu0 0.0
      %2749 = vmatpush1.msra.mxu0 %v2542
      %2750 = vmatprep.subr.mxu0 0.0
      %2751 = vmatpush1.msra.mxu0 %v2543
      %2752 = vmatprep.subr.mxu0 0.0
      %2753 = vmatpush1.msra.mxu0 %v2544
      %2754 = vmatprep.subr.mxu0 0.0
      %2755 = vmatpush1.msra.mxu0 %v2545
      %2756 = vmatprep.subr.mxu0 0.0
      %2757 = vmatpush1.msra.mxu0 %v2546
      %2758 = vmatprep.subr.mxu0 0.0
      %2759 = vmatpush1.msra.mxu0 %v2547
      %2760 = vmatprep.subr.mxu0 0.0
      %2761 = vmatpush1.msra.mxu0 %v2548
      %2762 = vmatprep.subr.mxu0 0.0
      %2763 = vmatpush1.msra.mxu0 0.0
      %2764 = vmatprep.subr.mxu0 0.0
      %2765 = vmatpush1.msra.mxu0 0.0
      %2766 = vmatprep.subr.mxu0 0.0
      %2767 = vmatpush1.msra.mxu0 0.0
      %2768 = vmatprep.subr.mxu0 0.0
      %2769 = vmatpush1.msra.mxu0 0.0
      %2770 = vmatprep.subr.mxu0 0.0
      %2771 = vmatpush1.msra.mxu0 0.0
      %2772 = vmatprep.subr.mxu0 0.0
      %2773 = vmatpush1.msra.mxu0 0.0
      %2774 = vmatprep.subr.mxu0 0.0
      %2775 = vmatpush1.msra.mxu0 0.0
      %2776 = vmatprep.subr.mxu0 0.0
      %2777 = vmatpush1.msra.mxu0 0.0
      %2778 = vmatprep.subr.mxu0 0.0
      %2779 = vmatpush1.msra.mxu0 0.0
      %2780 = vmatprep.subr.mxu0 0.0
      %2781 = vmatpush1.msra.mxu0 0.0
      %2782 = vmatprep.subr.mxu0 0.0
      %2783 = vmatpush1.msra.mxu0 0.0
      %2784 = vmatprep.subr.mxu0 0.0
      %2785 = vmatpush1.msra.mxu0 0.0
      %2786 = vmatprep.subr.mxu0 0.0
      %2787 = vmatpush1.msra.mxu0 0.0
      %2788 = vmatprep.subr.mxu0 0.0
      %2789 = vmatpush1.msra.mxu0 0.0
      %2790 = vmatprep.subr.mxu0 0.0
      %2791 = vmatpush1.msra.mxu0 0.0
      %2792 = vmatprep.subr.mxu0 0.0
      %2793 = vmatpush1.msra.mxu0 0.0
      %2794 = vmatprep.subr.mxu0 0.0
      %2795 = vmatpush1.msra.mxu0 0.0
      %2796 = vmatprep.subr.mxu0 0.0
      %2797 = vmatpush1.msra.mxu0 0.0
      %2798 = vmatprep.subr.mxu0 0.0
      %2799 = vmatpush1.msra.mxu0 0.0
      %2800 = vmatprep.subr.mxu0 0.0
      %2801 = vmatpush1.msra.mxu0 0.0
      %2802 = vmatprep.subr.mxu0 0.0
      %2803 = vmatpush1.msra.mxu0 0.0
      %2804 = vmatprep.subr.mxu0 0.0
      %2805 = vmatpush1.msra.mxu0 0.0
      %2806 = vmatprep.subr.mxu0 0.0
      %2807 = vmatpush1.msra.mxu0 0.0
      %2808 = vmatprep.subr.mxu0 0.0
      %2809 = vmatpush1.msra.mxu0 0.0
      %2810 = vmatprep.mubr.f32.mxu0 0.0
      %2811 = vmatmul.mubr.f32.gmra.mrb[0].mxu0 %v2558
      %v2812 = vpop.f32.mrb[0].mxu0
      %v2813 = vadd.f32 %v2554, %v2812
      %v2814 = vpop.f32.mrb[0].mxu0
      %2815 = vmatprep.mubr.f32.mxu0 0.0
      %2816 = vmatmul.mubr.f32.gmra.mrb[0].mxu0 %v2561
      %v2817 = vpop.f32.mrb[0].mxu0
      %v2818 = vadd.f32 %v2554, %v2817
      %v2819 = vpop.f32.mrb[0].mxu0
      %2820 = vmatprep.mubr.f32.mxu0 0.0
      %2821 = vmatmul.mubr.f32.gmra.mrb[0].mxu0 %v2564
      %v2822 = vpop.f32.mrb[0].mxu0
      %v2823 = vadd.f32 %v2554, %v2822
      %v2824 = vpop.f32.mrb[0].mxu0
      %2825 = vmatprep.mubr.f32.mxu0 0.0
      %2826 = vmatmul.mubr.f32.gmra.mrb[0].mxu0 %v2567
      %v2827 = vpop.f32.mrb[0].mxu0
      %v2828 = vadd.f32 %v2554, %v2827
      %v2829 = vpop.f32.mrb[0].mxu0
      %2830 = vmatprep.mubr.f32.mxu0 0.0
      %2831 = vmatmul.mubr.f32.gmra.mrb[0].mxu0 %v2570
      %v2832 = vpop.f32.mrb[0].mxu0
      %v2833 = vadd.f32 %v2554, %v2832
      %v2834 = vpop.f32.mrb[0].mxu0
      %2835 = vmatprep.mubr.f32.mxu0 0.0
      %2836 = vmatmul.mubr.f32.gmra.mrb[0].mxu0 %v2573
      %v2837 = vpop.f32.mrb[0].mxu0
      %v2838 = vadd.f32 %v2554, %v2837
      %v2839 = vpop.f32.mrb[0].mxu0
      %2840 = vmatprep.mubr.f32.mxu0 0.0
      %2841 = vmatmul.mubr.f32.gmra.mrb[0].mxu0 %v2576
      %v2842 = vpop.f32.mrb[0].mxu0
      %v2843 = vadd.f32 %v2554, %v2842
      %v2844 = vpop.f32.mrb[0].mxu0
      %2845 = vmatprep.mubr.f32.mxu0 0.0
      %2846 = vmatmul.mubr.f32.gmra.mrb[0].mxu0 %v2579
      %v2847 = vpop.f32.mrb[0].mxu0
      %v2848 = vadd.f32 %v2554, %v2847
      %v2849 = vpop.f32.mrb[0].mxu0
      %2850 = vmatprep.mubr.f32.mxu0 0.0
      %2851 = vmatmul.mubr.f32.gmra.mrb[0].mxu0 %v2582
      %v2852 = vpop.f32.mrb[0].mxu0
      %v2853 = vadd.f32 %v2554, %v2852
      %v2854 = vpop.f32.mrb[0].mxu0
      %2855 = vmatprep.mubr.f32.mxu0 0.0
      %2856 = vmatmul.mubr.f32.gmra.mrb[0].mxu0 %v2585
      %v2857 = vpop.f32.mrb[0].mxu0
      %v2858 = vadd.f32 %v2554, %v2857
      %v2859 = vpop.f32.mrb[0].mxu0
      %2860 = vmatprep.mubr.f32.mxu0 0.0
      %2861 = vmatmul.mubr.f32.gmra.mrb[0].mxu0 %v2588
      %v2862 = vpop.f32.mrb[0].mxu0
      %v2863 = vadd.f32 %v2554, %v2862
      %v2864 = vpop.f32.mrb[0].mxu0
      %2865 = vmatprep.mubr.f32.mxu0 0.0
      %2866 = vmatmul.mubr.f32.gmra.mrb[0].mxu0 %v2591
      %v2867 = vpop.f32.mrb[0].mxu0
      %v2868 = vadd.f32 %v2554, %v2867
      %v2869 = vpop.f32.mrb[0].mxu0
      %2870 = vmatprep.mubr.f32.mxu0 0.0
      %2871 = vmatmul.mubr.f32.gmra.mrb[0].mxu0 %v2594
      %v2872 = vpop.f32.mrb[0].mxu0
      %v2873 = vadd.f32 %v2554, %v2872
      %v2874 = vpop.f32.mrb[0].mxu0
      %2875 = vmatprep.mubr.f32.mxu0 0.0
      %2876 = vmatmul.mubr.f32.gmra.mrb[0].mxu0 %v2597
      %v2877 = vpop.f32.mrb[0].mxu0
      %v2878 = vadd.f32 %v2554, %v2877
      %v2879 = vpop.f32.mrb[0].mxu0
      %2880 = vmatprep.mubr.f32.mxu0 0.0
      %2881 = vmatmul.mubr.f32.gmra.mrb[0].mxu0 %v2600
      %v2882 = vpop.f32.mrb[0].mxu0
      %v2883 = vadd.f32 %v2554, %v2882
      %v2884 = vpop.f32.mrb[0].mxu0
      %2885 = vmatprep.mubr.f32.mxu0 0.0
      %2886 = vmatmul.mubr.f32.gmra.mrb[0].mxu0 %v2603
      %v2887 = vpop.f32.mrb[0].mxu0
      %v2888 = vadd.f32 %v2554, %v2887
      %v2889 = vpop.f32.mrb[0].mxu0
      %2890 = vmatprep.mubr.f32.mxu0 0.0
      %2891 = vmatmul.mubr.f32.gmra.mrb[0].mxu0 %v2606
      %v2892 = vpop.f32.mrb[0].mxu0
      %v2893 = vadd.f32 %v2554, %v2892
      %v2894 = vpop.f32.mrb[0].mxu0
      %2895 = vmatprep.mubr.f32.mxu0 0.0
      %2896 = vmatmul.mubr.f32.gmra.mrb[0].mxu0 %v2609
      %v2897 = vpop.f32.mrb[0].mxu0
      %v2898 = vadd.f32 %v2554, %v2897
      %v2899 = vpop.f32.mrb[0].mxu0
      %2900 = vmatprep.mubr.f32.mxu0 0.0
      %2901 = vmatmul.mubr.f32.gmra.mrb[0].mxu0 %v2612
      %v2902 = vpop.f32.mrb[0].mxu0
      %v2903 = vadd.f32 %v2554, %v2902
      %v2904 = vpop.f32.mrb[0].mxu0
      %2905 = vmatprep.mubr.f32.mxu0 0.0
      %2906 = vmatmul.mubr.f32.gmra.mrb[0].mxu0 %v2615
      %v2907 = vpop.f32.mrb[0].mxu0
      %v2908 = vadd.f32 %v2554, %v2907
      %v2909 = vpop.f32.mrb[0].mxu0
      %2910 = vmatprep.mubr.f32.mxu0 0.0
      %2911 = vmatmul.mubr.f32.gmra.mrb[0].mxu0 %v2618
      %v2912 = vpop.f32.mrb[0].mxu0
      %v2913 = vadd.f32 %v2554, %v2912
      %v2914 = vpop.f32.mrb[0].mxu0
      %2915 = vmatprep.mubr.f32.mxu0 0.0
      %2916 = vmatmul.mubr.f32.gmra.mrb[0].mxu0 %v2621
      %v2917 = vpop.f32.mrb[0].mxu0
      %v2918 = vadd.f32 %v2554, %v2917
      %v2919 = vpop.f32.mrb[0].mxu0
      %2920 = vmatprep.mubr.f32.mxu0 0.0
      %2921 = vmatmul.mubr.f32.gmra.mrb[0].mxu0 %v2624
      %v2922 = vpop.f32.mrb[0].mxu0
      %v2923 = vadd.f32 %v2554, %v2922
      %v2924 = vpop.f32.mrb[0].mxu0
      %2925 = vmatprep.mubr.f32.mxu0 0.0
      %2926 = vmatmul.mubr.f32.gmra.mrb[0].mxu0 %v2627
      %v2927 = vpop.f32.mrb[0].mxu0
      %v2928 = vadd.f32 %v2554, %v2927
      %v2929 = vpop.f32.mrb[0].mxu0
      %2930 = vmatprep.mubr.f32.mxu0 0.0
      %2931 = vmatmul.mubr.f32.gmra.mrb[0].mxu0 %v2630
      %v2932 = vpop.f32.mrb[0].mxu0
      %v2933 = vadd.f32 %v2554, %v2932
      %v2934 = vpop.f32.mrb[0].mxu0
      %2935 = vmatprep.mubr.f32.mxu0 0.0
      %2936 = vmatmul.mubr.f32.gmra.mrb[0].mxu0 %v2633
      %v2937 = vpop.f32.mrb[0].mxu0
      %v2938 = vadd.f32 %v2554, %v2937
      %v2939 = vpop.f32.mrb[0].mxu0
      %2940 = vmatprep.mubr.f32.mxu0 0.0
      %2941 = vmatmul.mubr.f32.gmra.mrb[0].mxu0 %v2636
      %v2942 = vpop.f32.mrb[0].mxu0
      %v2943 = vadd.f32 %v2554, %v2942
      %v2944 = vpop.f32.mrb[0].mxu0
      %2945 = vmatprep.mubr.f32.mxu0 0.0
      %2946 = vmatmul.mubr.f32.gmra.mrb[0].mxu0 %v2639
      %v2947 = vpop.f32.mrb[0].mxu0
      %v2948 = vadd.f32 %v2554, %v2947
      %v2949 = vpop.f32.mrb[0].mxu0
      %2950 = vmatprep.mubr.f32.mxu0 0.0
      %2951 = vmatmul.mubr.f32.gmra.mrb[0].mxu0 %v2642
      %v2952 = vpop.f32.mrb[0].mxu0
      %v2953 = vadd.f32 %v2554, %v2952
      %v2954 = vpop.f32.mrb[0].mxu0
      %2955 = vmatprep.mubr.f32.mxu0 0.0
      %2956 = vmatmul.mubr.f32.gmra.mrb[0].mxu0 %v2645
      %v2957 = vpop.f32.mrb[0].mxu0
      %v2958 = vadd.f32 %v2554, %v2957
      %v2959 = vpop.f32.mrb[0].mxu0
      %2960 = vmatprep.mubr.f32.mxu0 0.0
      %2961 = vmatmul.mubr.f32.gmra.mrb[0].mxu0 %v2648
      %v2962 = vpop.f32.mrb[0].mxu0
      %v2963 = vadd.f32 %v2554, %v2962
      %v2964 = vpop.f32.mrb[0].mxu0
      %2965 = vmatprep.mubr.f32.mxu0 0.0
      %2966 = vmatmul.mubr.f32.gmra.mrb[0].mxu0 %v2651
      %v2967 = vpop.f32.mrb[0].mxu0
      %v2968 = vadd.f32 %v2554, %v2967
      %v2969 = vpop.f32.mrb[0].mxu0
      %2970 = vmatprep.mubr.f32.mxu0 0.0
      %2971 = vmatmul.mubr.f32.gmra.mrb[0].mxu0 %v2654
      %v2972 = vpop.f32.mrb[0].mxu0
      %v2973 = vadd.f32 %v2554, %v2972
      %v2974 = vpop.f32.mrb[0].mxu0
      %2975 = vmatprep.mubr.f32.mxu0 0.0
      %2976 = vmatmul.mubr.f32.gmra.mrb[0].mxu0 %v2657
      %v2977 = vpop.f32.mrb[0].mxu0
      %v2978 = vadd.f32 %v2554, %v2977
      %v2979 = vpop.f32.mrb[0].mxu0
      %2980 = vmatprep.mubr.f32.mxu0 0.0
      %2981 = vmatmul.mubr.f32.gmra.mrb[0].mxu0 %v2660
      %v2982 = vpop.f32.mrb[0].mxu0
      %v2983 = vadd.f32 %v2554, %v2982
      %v2984 = vpop.f32.mrb[0].mxu0
      %2985 = vmatprep.mubr.f32.mxu0 0.0
      %2986 = vmatmul.mubr.f32.gmra.mrb[0].mxu0 %v2663
      %v2987 = vpop.f32.mrb[0].mxu0
      %v2988 = vadd.f32 %v2554, %v2987
      %v2989 = vpop.f32.mrb[0].mxu0
      %2990 = vmatprep.mubr.f32.mxu0 0.0
      %2991 = vmatmul.mubr.f32.gmra.mrb[0].mxu0 %v2666
      %v2992 = vpop.f32.mrb[0].mxu0
      %v2993 = vadd.f32 %v2554, %v2992
      %v2994 = vpop.f32.mrb[0].mxu0
      %2995 = vmatprep.mubr.f32.mxu0 0.0
      %2996 = vmatmul.mubr.f32.gmra.mrb[0].mxu0 %v2669
      %v2997 = vpop.f32.mrb[0].mxu0
      %v2998 = vadd.f32 %v2554, %v2997
      %v2999 = vpop.f32.mrb[0].mxu0
      %3000 = vmatprep.mubr.f32.mxu0 0.0
      %3001 = vmatmul.mubr.f32.gmra.mrb[0].mxu0 %v2672
      %v3002 = vpop.f32.mrb[0].mxu0
      %v3003 = vadd.f32 %v2554, %v3002
      %v3004 = vpop.f32.mrb[0].mxu0
      %3005 = vmatprep.mubr.f32.mxu0 0.0
      %3006 = vmatmul.mubr.f32.gmra.mrb[0].mxu0 %v2675
      %v3007 = vpop.f32.mrb[0].mxu0
      %v3008 = vadd.f32 %v2554, %v3007
      %v3009 = vpop.f32.mrb[0].mxu0
      %3010 = vmatprep.mubr.f32.mxu0 0.0
      %3011 = vmatmul.mubr.f32.gmra.mrb[0].mxu0 %v2678
      %v3012 = vpop.f32.mrb[0].mxu0
      %v3013 = vadd.f32 %v2554, %v3012
      %v3014 = vpop.f32.mrb[0].mxu0
      %3015 = vmatprep.mubr.f32.mxu0 0.0
      %3016 = vmatmul.mubr.f32.gmra.mrb[0].mxu0 %v2681
      %v3017 = vpop.f32.mrb[0].mxu0
      %v3018 = vadd.f32 %v2554, %v3017
      %v3019 = vpop.f32.mrb[0].mxu0
      %3020 = vmatprep.mubr.f32.mxu0 0.0
      %3021 = vmatmul.mubr.f32.gmra.mrb[0].mxu0 %v2684
      %v3022 = vpop.f32.mrb[0].mxu0
      %v3023 = vadd.f32 %v2554, %v3022
      %v3024 = vpop.f32.mrb[0].mxu0
      %3025 = vmatprep.mubr.f32.mxu0 0.0
      %3026 = vmatmul.mubr.f32.gmra.mrb[0].mxu0 %v2687
      %v3027 = vpop.f32.mrb[0].mxu0
      %v3028 = vadd.f32 %v2554, %v3027
      %v3029 = vpop.f32.mrb[0].mxu0
      %3030 = vmatprep.mubr.f32.mxu0 0.0
      %3031 = vmatmul.mubr.f32.gmra.mrb[0].mxu0 %v2690
      %v3032 = vpop.f32.mrb[0].mxu0
      %v3033 = vadd.f32 %v2554, %v3032
      %v3034 = vpop.f32.mrb[0].mxu0
      %3035 = vmatprep.mubr.f32.mxu0 0.0
      %3036 = vmatmul.mubr.f32.gmra.mrb[0].mxu0 %v2693
      %v3037 = vpop.f32.mrb[0].mxu0
      %v3038 = vadd.f32 %v2554, %v3037
      %v3039 = vpop.f32.mrb[0].mxu0
      %3040 = vmatprep.mubr.f32.mxu0 0.0
      %3041 = vmatmul.mubr.f32.gmra.mrb[0].mxu0 %v2696
      %v3042 = vpop.f32.mrb[0].mxu0
      %v3043 = vadd.f32 %v2554, %v3042
      %v3044 = vpop.f32.mrb[0].mxu0
      %3045 = vmatprep.mubr.f32.mxu0 0.0
      %3046 = vmatmul.mubr.f32.gmra.mrb[0].mxu0 %v2699
      %v3047 = vpop.f32.mrb[0].mxu0
      %v3048 = vadd.f32 %v2554, %v3047
      %v3049 = vpop.f32.mrb[0].mxu0
      %3050 = vmatprep.mubr.f32.mxu0 0.0
      %3051 = vmatmul.mubr.f32.gmra.mrb[0].mxu0 %v2702
      %v3052 = vpop.f32.mrb[0].mxu0
      %v3053 = vadd.f32 %v2554, %v3052
      %v3054 = vpop.f32.mrb[0].mxu0
      %3055 = vmatprep.mubr.f32.mxu0 0.0
      %3056 = vmatmul.mubr.f32.gmra.mrb[0].mxu0 %v2705
      %v3057 = vpop.f32.mrb[0].mxu0
      %v3058 = vadd.f32 %v2554, %v3057
      %v3059 = vpop.f32.mrb[0].mxu0
      %3060 = vmatprep.mubr.f32.mxu0 0.0
      %3061 = vmatmul.mubr.f32.gmra.mrb[0].mxu0 %v2708
      %v3062 = vpop.f32.mrb[0].mxu0
      %v3063 = vadd.f32 %v2554, %v3062
      %v3064 = vpop.f32.mrb[0].mxu0
      %3065 = vmatprep.mubr.f32.mxu0 0.0
      %3066 = vmatmul.mubr.f32.gmra.mrb[0].mxu0 %v2711
      %v3067 = vpop.f32.mrb[0].mxu0
      %v3068 = vadd.f32 %v2554, %v3067
      %v3069 = vpop.f32.mrb[0].mxu0
      %3070 = vmatprep.mubr.f32.mxu0 0.0
      %3071 = vmatmul.mubr.f32.gmra.mrb[0].mxu0 %v2714
      %v3072 = vpop.f32.mrb[0].mxu0
      %v3073 = vadd.f32 %v2554, %v3072
      %v3074 = vpop.f32.mrb[0].mxu0
      %3075 = vmatprep.mubr.f32.mxu0 0.0
      %3076 = vmatmul.mubr.f32.gmra.mrb[0].mxu0 %v2717
      %v3077 = vpop.f32.mrb[0].mxu0
      %v3078 = vadd.f32 %v2554, %v3077
      %v3079 = vpop.f32.mrb[0].mxu0
      %3080 = vmatprep.mubr.f32.mxu0 0.0
      %3081 = vmatmul.mubr.f32.gmra.mrb[0].mxu0 %v2720
      %v3082 = vpop.f32.mrb[0].mxu0
      %v3083 = vadd.f32 %v2554, %v3082
      %v3084 = vpop.f32.mrb[0].mxu0
      %3085 = vmatprep.mubr.f32.mxu0 0.0
      %3086 = vmatmul.mubr.f32.gmra.mrb[0].mxu0 %v2723
      %v3087 = vpop.f32.mrb[0].mxu0
      %v3088 = vadd.f32 %v2554, %v3087
      %v3089 = vpop.f32.mrb[0].mxu0
      %3090 = vmatprep.mubr.f32.mxu0 0.0
      %3091 = vmatmul.mubr.f32.gmra.mrb[0].mxu0 %v2726
      %v3092 = vpop.f32.mrb[0].mxu0
      %v3093 = vadd.f32 %v2554, %v3092
      %v3094 = vpop.f32.mrb[0].mxu0
      %3095 = vmatprep.mubr.f32.mxu0 0.0
      %3096 = vmatmul.mubr.f32.gmra.mrb[0].mxu0 %v2729
      %v3097 = vpop.f32.mrb[0].mxu0
      %v3098 = vadd.f32 %v2554, %v3097
      %v3099 = vpop.f32.mrb[0].mxu0
      %3100 = vmatprep.mubr.f32.mxu0 0.0
      %3101 = vmatmul.mubr.f32.gmra.mrb[0].mxu0 %v2732
      %v3102 = vpop.f32.mrb[0].mxu0
      %v3103 = vadd.f32 %v2554, %v3102
      %v3104 = vpop.f32.mrb[0].mxu0
      %3105 = vmatprep.mubr.f32.mxu0 0.0
      %3106 = vmatmul.mubr.f32.gmra.mrb[0].mxu0 %v2735
      %v3107 = vpop.f32.mrb[0].mxu0
      %v3108 = vadd.f32 %v2554, %v3107
      %v3109 = vpop.f32.mrb[0].mxu0
      %3110 = vmatprep.mubr.f32.mxu0 0.0
      %3111 = vmatmul.mubr.f32.gmra.mrb[0].mxu0 %v2738
      %v3112 = vpop.f32.mrb[0].mxu0
      %v3113 = vadd.f32 %v2554, %v3112
      %v3114 = vpop.f32.mrb[0].mxu0
      %3115 = vmatprep.mubr.f32.mxu0 0.0
      %3116 = vmatmul.mubr.f32.gmra.mrb[0].mxu0 %v2741
      %v3117 = vpop.f32.mrb[0].mxu0
      %v3118 = vadd.f32 %v2554, %v3117
      %v3119 = vpop.f32.mrb[0].mxu0
      %3120 = vmatprep.mubr.f32.mxu0 0.0
      %3121 = vmatmul.mubr.f32.gmra.mrb[0].mxu0 %v2744
      %v3122 = vpop.f32.mrb[0].mxu0
      %v3123 = vadd.f32 %v2554, %v3122
      %v3124 = vpop.f32.mrb[0].mxu0
      %3125 = vdwg.mxu0
      %v3126 = vmax.f32 %v2813, 0.0
      %v3127 = vmax.f32 %v2818, 0.0
      %v3128 = vmax.f32 %v2823, 0.0
      %v3129 = vmax.f32 %v2828, 0.0
      %v3130 = vmax.f32 %v2833, 0.0
      %v3131 = vmax.f32 %v2838, 0.0
      %v3132 = vmax.f32 %v2843, 0.0
      %v3133 = vmax.f32 %v2848, 0.0
      %v3134 = vmax.f32 %v2853, 0.0
      %v3135 = vmax.f32 %v2858, 0.0
      %v3136 = vmax.f32 %v2863, 0.0
      %v3137 = vmax.f32 %v2868, 0.0
      %v3138 = vmax.f32 %v2873, 0.0
      %v3139 = vmax.f32 %v2878, 0.0
      %v3140 = vmax.f32 %v2883, 0.0
      %v3141 = vmax.f32 %v2888, 0.0
      %v3142 = vmax.f32 %v2893, 0.0
      %v3143 = vmax.f32 %v2898, 0.0
      %v3144 = vmax.f32 %v2903, 0.0
      %v3145 = vmax.f32 %v2908, 0.0
      %v3146 = vmax.f32 %v2913, 0.0
      %v3147 = vmax.f32 %v2918, 0.0
      %v3148 = vmax.f32 %v2923, 0.0
      %v3149 = vmax.f32 %v2928, 0.0
      %v3150 = vmax.f32 %v2933, 0.0
      %v3151 = vmax.f32 %v2938, 0.0
      %v3152 = vmax.f32 %v2943, 0.0
      %v3153 = vmax.f32 %v2948, 0.0
      %v3154 = vmax.f32 %v2953, 0.0
      %v3155 = vmax.f32 %v2958, 0.0
      %v3156 = vmax.f32 %v2963, 0.0
      %v3157 = vmax.f32 %v2968, 0.0
      %v3158 = vmax.f32 %v2973, 0.0
      %v3159 = vmax.f32 %v2978, 0.0
      %v3160 = vmax.f32 %v2983, 0.0
      %v3161 = vmax.f32 %v2988, 0.0
      %v3162 = vmax.f32 %v2993, 0.0
      %v3163 = vmax.f32 %v2998, 0.0
      %v3164 = vmax.f32 %v3003, 0.0
      %v3165 = vmax.f32 %v3008, 0.0
      %v3166 = vmax.f32 %v3013, 0.0
      %v3167 = vmax.f32 %v3018, 0.0
      %v3168 = vmax.f32 %v3023, 0.0
      %v3169 = vmax.f32 %v3028, 0.0
      %v3170 = vmax.f32 %v3033, 0.0
      %v3171 = vmax.f32 %v3038, 0.0
      %v3172 = vmax.f32 %v3043, 0.0
      %v3173 = vmax.f32 %v3048, 0.0
      %v3174 = vmax.f32 %v3053, 0.0
      %v3175 = vmax.f32 %v3058, 0.0
      %v3176 = vmax.f32 %v3063, 0.0
      %v3177 = vmax.f32 %v3068, 0.0
      %v3178 = vmax.f32 %v3073, 0.0
      %v3179 = vmax.f32 %v3078, 0.0
      %v3180 = vmax.f32 %v3083, 0.0
      %v3181 = vmax.f32 %v3088, 0.0
      %v3182 = vmax.f32 %v3093, 0.0
      %v3183 = vmax.f32 %v3098, 0.0
      %v3184 = vmax.f32 %v3103, 0.0
      %v3185 = vmax.f32 %v3108, 0.0
      %v3186 = vmax.f32 %v3113, 0.0
      %v3187 = vmax.f32 %v3118, 0.0
      %v3188 = vmax.f32 %v3123, 0.0
      %v3189 = vld [vmem:[%s9] sm:$0xff]
      %v3190 = vld [vmem:[%s9 + $0x8] sm:$0xff]
      %v3191 = vld [vmem:[%s9 + $0x10] sm:$0xff]
      %v3192 = vld [vmem:[%s9 + $0x18] sm:$0xff]
      %v3193 = vld [vmem:[%s9 + $0x20] sm:$0xff]
      %v3194 = vld [vmem:[%s9 + $0x28] sm:$0xff]
      %v3195 = vld [vmem:[%s9 + $0x30] sm:$0xff]
      %v3196 = vld [vmem:[%s9 + $0x38] sm:$0xff]
      %v3197 = vld [vmem:[%s10] sm:$0x1]
      %v3199 = vlaneseq
      %v3200 = vshrl.u32 %v3199, 7
      %v3201 = vsub.s32 0, %v3200
      %v3202 = vrot.slane %v3197, %v3201
      %v3205 = vsel %vm2556, %v3126, 0
      %v3208 = vsel %vm2556, %v3127, 0
      %v3211 = vsel %vm2556, %v3128, 0
      %v3214 = vsel %vm2556, %v3129, 0
      %v3217 = vsel %vm2556, %v3130, 0
      %v3220 = vsel %vm2556, %v3131, 0
      %v3223 = vsel %vm2556, %v3132, 0
      %v3226 = vsel %vm2556, %v3133, 0
      %v3229 = vsel %vm2556, %v3134, 0
      %v3232 = vsel %vm2556, %v3135, 0
      %v3235 = vsel %vm2556, %v3136, 0
      %v3238 = vsel %vm2556, %v3137, 0
      %v3241 = vsel %vm2556, %v3138, 0
      %v3244 = vsel %vm2556, %v3139, 0
      %v3247 = vsel %vm2556, %v3140, 0
      %v3250 = vsel %vm2556, %v3141, 0
      %v3253 = vsel %vm2556, %v3142, 0
      %v3256 = vsel %vm2556, %v3143, 0
      %v3259 = vsel %vm2556, %v3144, 0
      %v3262 = vsel %vm2556, %v3145, 0
      %v3265 = vsel %vm2556, %v3146, 0
      %v3268 = vsel %vm2556, %v3147, 0
      %v3271 = vsel %vm2556, %v3148, 0
      %v3274 = vsel %vm2556, %v3149, 0
      %v3277 = vsel %vm2556, %v3150, 0
      %v3280 = vsel %vm2556, %v3151, 0
      %v3283 = vsel %vm2556, %v3152, 0
      %v3286 = vsel %vm2556, %v3153, 0
      %v3289 = vsel %vm2556, %v3154, 0
      %v3292 = vsel %vm2556, %v3155, 0
      %v3295 = vsel %vm2556, %v3156, 0
      %v3298 = vsel %vm2556, %v3157, 0
      %v3301 = vsel %vm2556, %v3158, 0
      %v3304 = vsel %vm2556, %v3159, 0
      %v3307 = vsel %vm2556, %v3160, 0
      %v3310 = vsel %vm2556, %v3161, 0
      %v3313 = vsel %vm2556, %v3162, 0
      %v3316 = vsel %vm2556, %v3163, 0
      %v3319 = vsel %vm2556, %v3164, 0
      %v3322 = vsel %vm2556, %v3165, 0
      %v3325 = vsel %vm2556, %v3166, 0
      %v3328 = vsel %vm2556, %v3167, 0
      %v3331 = vsel %vm2556, %v3168, 0
      %v3334 = vsel %vm2556, %v3169, 0
      %v3337 = vsel %vm2556, %v3170, 0
      %v3340 = vsel %vm2556, %v3171, 0
      %v3343 = vsel %vm2556, %v3172, 0
      %v3346 = vsel %vm2556, %v3173, 0
      %v3349 = vsel %vm2556, %v3174, 0
      %v3352 = vsel %vm2556, %v3175, 0
      %v3355 = vsel %vm2556, %v3176, 0
      %v3358 = vsel %vm2556, %v3177, 0
      %v3361 = vsel %vm2556, %v3178, 0
      %v3364 = vsel %vm2556, %v3179, 0
      %v3367 = vsel %vm2556, %v3180, 0
      %v3370 = vsel %vm2556, %v3181, 0
      %v3373 = vsel %vm2556, %v3182, 0
      %v3376 = vsel %vm2556, %v3183, 0
      %v3379 = vsel %vm2556, %v3184, 0
      %v3382 = vsel %vm2556, %v3185, 0
      %v3385 = vsel %vm2556, %v3186, 0
      %v3388 = vsel %vm2556, %v3187, 0
      %v3391 = vsel %vm2556, %v3188, 0
      %3393 = vmatprep.subr.mxu0 0.0
      %3394 = vmatpush1.msra.mxu0 %v3189
      %3395 = vmatprep.subr.mxu0 0.0
      %3396 = vmatpush1.msra.mxu0 %v3190
      %3397 = vmatprep.subr.mxu0 0.0
      %3398 = vmatpush1.msra.mxu0 %v3191
      %3399 = vmatprep.subr.mxu0 0.0
      %3400 = vmatpush1.msra.mxu0 %v3192
      %3401 = vmatprep.subr.mxu0 0.0
      %3402 = vmatpush1.msra.mxu0 %v3193
      %3403 = vmatprep.subr.mxu0 0.0
      %3404 = vmatpush1.msra.mxu0 %v3194
      %3405 = vmatprep.subr.mxu0 0.0
      %3406 = vmatpush1.msra.mxu0 %v3195
      %3407 = vmatprep.subr.mxu0 0.0
      %3408 = vmatpush1.msra.mxu0 %v3196
      %3409 = vmatprep.subr.mxu0 0.0
      %3410 = vmatpush1.msra.mxu0 0.0
      %3411 = vmatprep.subr.mxu0 0.0
      %3412 = vmatpush1.msra.mxu0 0.0
      %3413 = vmatprep.subr.mxu0 0.0
      %3414 = vmatpush1.msra.mxu0 0.0
      %3415 = vmatprep.subr.mxu0 0.0
      %3416 = vmatpush1.msra.mxu0 0.0
      %3417 = vmatprep.subr.mxu0 0.0
      %3418 = vmatpush1.msra.mxu0 0.0
      %3419 = vmatprep.subr.mxu0 0.0
      %3420 = vmatpush1.msra.mxu0 0.0
      %3421 = vmatprep.subr.mxu0 0.0
      %3422 = vmatpush1.msra.mxu0 0.0
      %3423 = vmatprep.subr.mxu0 0.0
      %3424 = vmatpush1.msra.mxu0 0.0
      %3425 = vmatprep.subr.mxu0 0.0
      %3426 = vmatpush1.msra.mxu0 0.0
      %3427 = vmatprep.subr.mxu0 0.0
      %3428 = vmatpush1.msra.mxu0 0.0
      %3429 = vmatprep.subr.mxu0 0.0
      %3430 = vmatpush1.msra.mxu0 0.0
      %3431 = vmatprep.subr.mxu0 0.0
      %3432 = vmatpush1.msra.mxu0 0.0
      %3433 = vmatprep.subr.mxu0 0.0
      %3434 = vmatpush1.msra.mxu0 0.0
      %3435 = vmatprep.subr.mxu0 0.0
      %3436 = vmatpush1.msra.mxu0 0.0
      %3437 = vmatprep.subr.mxu0 0.0
      %3438 = vmatpush1.msra.mxu0 0.0
      %3439 = vmatprep.subr.mxu0 0.0
      %3440 = vmatpush1.msra.mxu0 0.0
      %3441 = vmatprep.subr.mxu0 0.0
      %3442 = vmatpush1.msra.mxu0 0.0
      %3443 = vmatprep.subr.mxu0 0.0
      %3444 = vmatpush1.msra.mxu0 0.0
      %3445 = vmatprep.subr.mxu0 0.0
      %3446 = vmatpush1.msra.mxu0 0.0
      %3447 = vmatprep.subr.mxu0 0.0
      %3448 = vmatpush1.msra.mxu0 0.0
      %3449 = vmatprep.subr.mxu0 0.0
      %3450 = vmatpush1.msra.mxu0 0.0
      %3451 = vmatprep.subr.mxu0 0.0
      %3452 = vmatpush1.msra.mxu0 0.0
      %3453 = vmatprep.subr.mxu0 0.0
      %3454 = vmatpush1.msra.mxu0 0.0
      %3455 = vmatprep.subr.mxu0 0.0
      %3456 = vmatpush1.msra.mxu0 0.0
      %3457 = vmatprep.mubr.f32.mxu0 0.0
      %3458 = vmatmul.mubr.f32.gmra.mrb[0].mxu0 %v3205
      %v3459 = vpop.f32.mrb[0].mxu0
      %v3460 = vadd.f32 %v3202, %v3459
      %v3461 = vpop.f32.mrb[0].mxu0
      %3462 = vmatprep.mubr.f32.mxu0 0.0
      %3463 = vmatmul.mubr.f32.gmra.mrb[0].mxu0 %v3208
      %v3464 = vpop.f32.mrb[0].mxu0
      %v3465 = vadd.f32 %v3202, %v3464
      %v3466 = vpop.f32.mrb[0].mxu0
      %3467 = vmatprep.mubr.f32.mxu0 0.0
      %3468 = vmatmul.mubr.f32.gmra.mrb[0].mxu0 %v3211
      %v3469 = vpop.f32.mrb[0].mxu0
      %v3470 = vadd.f32 %v3202, %v3469
      %v3471 = vpop.f32.mrb[0].mxu0
      %3472 = vmatprep.mubr.f32.mxu0 0.0
      %3473 = vmatmul.mubr.f32.gmra.mrb[0].mxu0 %v3214
      %v3474 = vpop.f32.mrb[0].mxu0
      %v3475 = vadd.f32 %v3202, %v3474
      %v3476 = vpop.f32.mrb[0].mxu0
      %3477 = vmatprep.mubr.f32.mxu0 0.0
      %3478 = vmatmul.mubr.f32.gmra.mrb[0].mxu0 %v3217
      %v3479 = vpop.f32.mrb[0].mxu0
      %v3480 = vadd.f32 %v3202, %v3479
      %v3481 = vpop.f32.mrb[0].mxu0
      %3482 = vmatprep.mubr.f32.mxu0 0.0
      %3483 = vmatmul.mubr.f32.gmra.mrb[0].mxu0 %v3220
      %v3484 = vpop.f32.mrb[0].mxu0
      %v3485 = vadd.f32 %v3202, %v3484
      %v3486 = vpop.f32.mrb[0].mxu0
      %3487 = vmatprep.mubr.f32.mxu0 0.0
      %3488 = vmatmul.mubr.f32.gmra.mrb[0].mxu0 %v3223
      %v3489 = vpop.f32.mrb[0].mxu0
      %v3490 = vadd.f32 %v3202, %v3489
      %v3491 = vpop.f32.mrb[0].mxu0
      %3492 = vmatprep.mubr.f32.mxu0 0.0
      %3493 = vmatmul.mubr.f32.gmra.mrb[0].mxu0 %v3226
      %v3494 = vpop.f32.mrb[0].mxu0
      %v3495 = vadd.f32 %v3202, %v3494
      %v3496 = vpop.f32.mrb[0].mxu0
      %3497 = vmatprep.mubr.f32.mxu0 0.0
      %3498 = vmatmul.mubr.f32.gmra.mrb[0].mxu0 %v3229
      %v3499 = vpop.f32.mrb[0].mxu0
      %v3500 = vadd.f32 %v3202, %v3499
      %v3501 = vpop.f32.mrb[0].mxu0
      %3502 = vmatprep.mubr.f32.mxu0 0.0
      %3503 = vmatmul.mubr.f32.gmra.mrb[0].mxu0 %v3232
      %v3504 = vpop.f32.mrb[0].mxu0
      %v3505 = vadd.f32 %v3202, %v3504
      %v3506 = vpop.f32.mrb[0].mxu0
      %3507 = vmatprep.mubr.f32.mxu0 0.0
      %3508 = vmatmul.mubr.f32.gmra.mrb[0].mxu0 %v3235
      %v3509 = vpop.f32.mrb[0].mxu0
      %v3510 = vadd.f32 %v3202, %v3509
      %v3511 = vpop.f32.mrb[0].mxu0
      %3512 = vmatprep.mubr.f32.mxu0 0.0
      %3513 = vmatmul.mubr.f32.gmra.mrb[0].mxu0 %v3238
      %v3514 = vpop.f32.mrb[0].mxu0
      %v3515 = vadd.f32 %v3202, %v3514
      %v3516 = vpop.f32.mrb[0].mxu0
      %3517 = vmatprep.mubr.f32.mxu0 0.0
      %3518 = vmatmul.mubr.f32.gmra.mrb[0].mxu0 %v3241
      %v3519 = vpop.f32.mrb[0].mxu0
      %v3520 = vadd.f32 %v3202, %v3519
      %v3521 = vpop.f32.mrb[0].mxu0
      %3522 = vmatprep.mubr.f32.mxu0 0.0
      %3523 = vmatmul.mubr.f32.gmra.mrb[0].mxu0 %v3244
      %v3524 = vpop.f32.mrb[0].mxu0
      %v3525 = vadd.f32 %v3202, %v3524
      %v3526 = vpop.f32.mrb[0].mxu0
      %3527 = vmatprep.mubr.f32.mxu0 0.0
      %3528 = vmatmul.mubr.f32.gmra.mrb[0].mxu0 %v3247
      %v3529 = vpop.f32.mrb[0].mxu0
      %v3530 = vadd.f32 %v3202, %v3529
      %v3531 = vpop.f32.mrb[0].mxu0
      %3532 = vmatprep.mubr.f32.mxu0 0.0
      %3533 = vmatmul.mubr.f32.gmra.mrb[0].mxu0 %v3250
      %v3534 = vpop.f32.mrb[0].mxu0
      %v3535 = vadd.f32 %v3202, %v3534
      %v3536 = vpop.f32.mrb[0].mxu0
      %3537 = vmatprep.mubr.f32.mxu0 0.0
      %3538 = vmatmul.mubr.f32.gmra.mrb[0].mxu0 %v3253
      %v3539 = vpop.f32.mrb[0].mxu0
      %v3540 = vadd.f32 %v3202, %v3539
      %v3541 = vpop.f32.mrb[0].mxu0
      %3542 = vmatprep.mubr.f32.mxu0 0.0
      %3543 = vmatmul.mubr.f32.gmra.mrb[0].mxu0 %v3256
      %v3544 = vpop.f32.mrb[0].mxu0
      %v3545 = vadd.f32 %v3202, %v3544
      %v3546 = vpop.f32.mrb[0].mxu0
      %3547 = vmatprep.mubr.f32.mxu0 0.0
      %3548 = vmatmul.mubr.f32.gmra.mrb[0].mxu0 %v3259
      %v3549 = vpop.f32.mrb[0].mxu0
      %v3550 = vadd.f32 %v3202, %v3549
      %v3551 = vpop.f32.mrb[0].mxu0
      %3552 = vmatprep.mubr.f32.mxu0 0.0
      %3553 = vmatmul.mubr.f32.gmra.mrb[0].mxu0 %v3262
      %v3554 = vpop.f32.mrb[0].mxu0
      %v3555 = vadd.f32 %v3202, %v3554
      %v3556 = vpop.f32.mrb[0].mxu0
      %3557 = vmatprep.mubr.f32.mxu0 0.0
      %3558 = vmatmul.mubr.f32.gmra.mrb[0].mxu0 %v3265
      %v3559 = vpop.f32.mrb[0].mxu0
      %v3560 = vadd.f32 %v3202, %v3559
      %v3561 = vpop.f32.mrb[0].mxu0
      %3562 = vmatprep.mubr.f32.mxu0 0.0
      %3563 = vmatmul.mubr.f32.gmra.mrb[0].mxu0 %v3268
      %v3564 = vpop.f32.mrb[0].mxu0
      %v3565 = vadd.f32 %v3202, %v3564
      %v3566 = vpop.f32.mrb[0].mxu0
      %3567 = vmatprep.mubr.f32.mxu0 0.0
      %3568 = vmatmul.mubr.f32.gmra.mrb[0].mxu0 %v3271
      %v3569 = vpop.f32.mrb[0].mxu0
      %v3570 = vadd.f32 %v3202, %v3569
      %v3571 = vpop.f32.mrb[0].mxu0
      %3572 = vmatprep.mubr.f32.mxu0 0.0
      %3573 = vmatmul.mubr.f32.gmra.mrb[0].mxu0 %v3274
      %v3574 = vpop.f32.mrb[0].mxu0
      %v3575 = vadd.f32 %v3202, %v3574
      %v3576 = vpop.f32.mrb[0].mxu0
      %3577 = vmatprep.mubr.f32.mxu0 0.0
      %3578 = vmatmul.mubr.f32.gmra.mrb[0].mxu0 %v3277
      %v3579 = vpop.f32.mrb[0].mxu0
      %v3580 = vadd.f32 %v3202, %v3579
      %v3581 = vpop.f32.mrb[0].mxu0
      %3582 = vmatprep.mubr.f32.mxu0 0.0
      %3583 = vmatmul.mubr.f32.gmra.mrb[0].mxu0 %v3280
      %v3584 = vpop.f32.mrb[0].mxu0
      %v3585 = vadd.f32 %v3202, %v3584
      %v3586 = vpop.f32.mrb[0].mxu0
      %3587 = vmatprep.mubr.f32.mxu0 0.0
      %3588 = vmatmul.mubr.f32.gmra.mrb[0].mxu0 %v3283
      %v3589 = vpop.f32.mrb[0].mxu0
      %v3590 = vadd.f32 %v3202, %v3589
      %v3591 = vpop.f32.mrb[0].mxu0
      %3592 = vmatprep.mubr.f32.mxu0 0.0
      %3593 = vmatmul.mubr.f32.gmra.mrb[0].mxu0 %v3286
      %v3594 = vpop.f32.mrb[0].mxu0
      %v3595 = vadd.f32 %v3202, %v3594
      %v3596 = vpop.f32.mrb[0].mxu0
      %3597 = vmatprep.mubr.f32.mxu0 0.0
      %3598 = vmatmul.mubr.f32.gmra.mrb[0].mxu0 %v3289
      %v3599 = vpop.f32.mrb[0].mxu0
      %v3600 = vadd.f32 %v3202, %v3599
      %v3601 = vpop.f32.mrb[0].mxu0
      %3602 = vmatprep.mubr.f32.mxu0 0.0
      %3603 = vmatmul.mubr.f32.gmra.mrb[0].mxu0 %v3292
      %v3604 = vpop.f32.mrb[0].mxu0
      %v3605 = vadd.f32 %v3202, %v3604
      %v3606 = vpop.f32.mrb[0].mxu0
      %3607 = vmatprep.mubr.f32.mxu0 0.0
      %3608 = vmatmul.mubr.f32.gmra.mrb[0].mxu0 %v3295
      %v3609 = vpop.f32.mrb[0].mxu0
      %v3610 = vadd.f32 %v3202, %v3609
      %v3611 = vpop.f32.mrb[0].mxu0
      %3612 = vmatprep.mubr.f32.mxu0 0.0
      %3613 = vmatmul.mubr.f32.gmra.mrb[0].mxu0 %v3298
      %v3614 = vpop.f32.mrb[0].mxu0
      %v3615 = vadd.f32 %v3202, %v3614
      %v3616 = vpop.f32.mrb[0].mxu0
      %3617 = vmatprep.mubr.f32.mxu0 0.0
      %3618 = vmatmul.mubr.f32.gmra.mrb[0].mxu0 %v3301
      %v3619 = vpop.f32.mrb[0].mxu0
      %v3620 = vadd.f32 %v3202, %v3619
      %v3621 = vpop.f32.mrb[0].mxu0
      %3622 = vmatprep.mubr.f32.mxu0 0.0
      %3623 = vmatmul.mubr.f32.gmra.mrb[0].mxu0 %v3304
      %v3624 = vpop.f32.mrb[0].mxu0
      %v3625 = vadd.f32 %v3202, %v3624
      %v3626 = vpop.f32.mrb[0].mxu0
      %3627 = vmatprep.mubr.f32.mxu0 0.0
      %3628 = vmatmul.mubr.f32.gmra.mrb[0].mxu0 %v3307
      %v3629 = vpop.f32.mrb[0].mxu0
      %v3630 = vadd.f32 %v3202, %v3629
      %v3631 = vpop.f32.mrb[0].mxu0
      %3632 = vmatprep.mubr.f32.mxu0 0.0
      %3633 = vmatmul.mubr.f32.gmra.mrb[0].mxu0 %v3310
      %v3634 = vpop.f32.mrb[0].mxu0
      %v3635 = vadd.f32 %v3202, %v3634
      %v3636 = vpop.f32.mrb[0].mxu0
      %3637 = vmatprep.mubr.f32.mxu0 0.0
      %3638 = vmatmul.mubr.f32.gmra.mrb[0].mxu0 %v3313
      %v3639 = vpop.f32.mrb[0].mxu0
      %v3640 = vadd.f32 %v3202, %v3639
      %v3641 = vpop.f32.mrb[0].mxu0
      %3642 = vmatprep.mubr.f32.mxu0 0.0
      %3643 = vmatmul.mubr.f32.gmra.mrb[0].mxu0 %v3316
      %v3644 = vpop.f32.mrb[0].mxu0
      %v3645 = vadd.f32 %v3202, %v3644
      %v3646 = vpop.f32.mrb[0].mxu0
      %3647 = vmatprep.mubr.f32.mxu0 0.0
      %3648 = vmatmul.mubr.f32.gmra.mrb[0].mxu0 %v3319
      %v3649 = vpop.f32.mrb[0].mxu0
      %v3650 = vadd.f32 %v3202, %v3649
      %v3651 = vpop.f32.mrb[0].mxu0
      %3652 = vmatprep.mubr.f32.mxu0 0.0
      %3653 = vmatmul.mubr.f32.gmra.mrb[0].mxu0 %v3322
      %v3654 = vpop.f32.mrb[0].mxu0
      %v3655 = vadd.f32 %v3202, %v3654
      %v3656 = vpop.f32.mrb[0].mxu0
      %3657 = vmatprep.mubr.f32.mxu0 0.0
      %3658 = vmatmul.mubr.f32.gmra.mrb[0].mxu0 %v3325
      %v3659 = vpop.f32.mrb[0].mxu0
      %v3660 = vadd.f32 %v3202, %v3659
      %v3661 = vpop.f32.mrb[0].mxu0
      %3662 = vmatprep.mubr.f32.mxu0 0.0
      %3663 = vmatmul.mubr.f32.gmra.mrb[0].mxu0 %v3328
      %v3664 = vpop.f32.mrb[0].mxu0
      %v3665 = vadd.f32 %v3202, %v3664
      %v3666 = vpop.f32.mrb[0].mxu0
      %3667 = vmatprep.mubr.f32.mxu0 0.0
      %3668 = vmatmul.mubr.f32.gmra.mrb[0].mxu0 %v3331
      %v3669 = vpop.f32.mrb[0].mxu0
      %v3670 = vadd.f32 %v3202, %v3669
      %v3671 = vpop.f32.mrb[0].mxu0
      %3672 = vmatprep.mubr.f32.mxu0 0.0
      %3673 = vmatmul.mubr.f32.gmra.mrb[0].mxu0 %v3334
      %v3674 = vpop.f32.mrb[0].mxu0
      %v3675 = vadd.f32 %v3202, %v3674
      %v3676 = vpop.f32.mrb[0].mxu0
      %3677 = vmatprep.mubr.f32.mxu0 0.0
      %3678 = vmatmul.mubr.f32.gmra.mrb[0].mxu0 %v3337
      %v3679 = vpop.f32.mrb[0].mxu0
      %v3680 = vadd.f32 %v3202, %v3679
      %v3681 = vpop.f32.mrb[0].mxu0
      %3682 = vmatprep.mubr.f32.mxu0 0.0
      %3683 = vmatmul.mubr.f32.gmra.mrb[0].mxu0 %v3340
      %v3684 = vpop.f32.mrb[0].mxu0
      %v3685 = vadd.f32 %v3202, %v3684
      %v3686 = vpop.f32.mrb[0].mxu0
      %3687 = vmatprep.mubr.f32.mxu0 0.0
      %3688 = vmatmul.mubr.f32.gmra.mrb[0].mxu0 %v3343
      %v3689 = vpop.f32.mrb[0].mxu0
      %v3690 = vadd.f32 %v3202, %v3689
      %v3691 = vpop.f32.mrb[0].mxu0
      %3692 = vmatprep.mubr.f32.mxu0 0.0
      %3693 = vmatmul.mubr.f32.gmra.mrb[0].mxu0 %v3346
      %v3694 = vpop.f32.mrb[0].mxu0
      %v3695 = vadd.f32 %v3202, %v3694
      %v3696 = vpop.f32.mrb[0].mxu0
      %3697 = vmatprep.mubr.f32.mxu0 0.0
      %3698 = vmatmul.mubr.f32.gmra.mrb[0].mxu0 %v3349
      %v3699 = vpop.f32.mrb[0].mxu0
      %v3700 = vadd.f32 %v3202, %v3699
      %v3701 = vpop.f32.mrb[0].mxu0
      %3702 = vmatprep.mubr.f32.mxu0 0.0
      %3703 = vmatmul.mubr.f32.gmra.mrb[0].mxu0 %v3352
      %v3704 = vpop.f32.mrb[0].mxu0
      %v3705 = vadd.f32 %v3202, %v3704
      %v3706 = vpop.f32.mrb[0].mxu0
      %3707 = vmatprep.mubr.f32.mxu0 0.0
      %3708 = vmatmul.mubr.f32.gmra.mrb[0].mxu0 %v3355
      %v3709 = vpop.f32.mrb[0].mxu0
      %v3710 = vadd.f32 %v3202, %v3709
      %v3711 = vpop.f32.mrb[0].mxu0
      %3712 = vmatprep.mubr.f32.mxu0 0.0
      %3713 = vmatmul.mubr.f32.gmra.mrb[0].mxu0 %v3358
      %v3714 = vpop.f32.mrb[0].mxu0
      %v3715 = vadd.f32 %v3202, %v3714
      %v3716 = vpop.f32.mrb[0].mxu0
      %3717 = vmatprep.mubr.f32.mxu0 0.0
      %3718 = vmatmul.mubr.f32.gmra.mrb[0].mxu0 %v3361
      %v3719 = vpop.f32.mrb[0].mxu0
      %v3720 = vadd.f32 %v3202, %v3719
      %v3721 = vpop.f32.mrb[0].mxu0
      %3722 = vmatprep.mubr.f32.mxu0 0.0
      %3723 = vmatmul.mubr.f32.gmra.mrb[0].mxu0 %v3364
      %v3724 = vpop.f32.mrb[0].mxu0
      %v3725 = vadd.f32 %v3202, %v3724
      %v3726 = vpop.f32.mrb[0].mxu0
      %3727 = vmatprep.mubr.f32.mxu0 0.0
      %3728 = vmatmul.mubr.f32.gmra.mrb[0].mxu0 %v3367
      %v3729 = vpop.f32.mrb[0].mxu0
      %v3730 = vadd.f32 %v3202, %v3729
      %v3731 = vpop.f32.mrb[0].mxu0
      %3732 = vmatprep.mubr.f32.mxu0 0.0
      %3733 = vmatmul.mubr.f32.gmra.mrb[0].mxu0 %v3370
      %v3734 = vpop.f32.mrb[0].mxu0
      %v3735 = vadd.f32 %v3202, %v3734
      %v3736 = vpop.f32.mrb[0].mxu0
      %3737 = vmatprep.mubr.f32.mxu0 0.0
      %3738 = vmatmul.mubr.f32.gmra.mrb[0].mxu0 %v3373
      %v3739 = vpop.f32.mrb[0].mxu0
      %v3740 = vadd.f32 %v3202, %v3739
      %v3741 = vpop.f32.mrb[0].mxu0
      %3742 = vmatprep.mubr.f32.mxu0 0.0
      %3743 = vmatmul.mubr.f32.gmra.mrb[0].mxu0 %v3376
      %v3744 = vpop.f32.mrb[0].mxu0
      %v3745 = vadd.f32 %v3202, %v3744
      %v3746 = vpop.f32.mrb[0].mxu0
      %3747 = vmatprep.mubr.f32.mxu0 0.0
      %3748 = vmatmul.mubr.f32.gmra.mrb[0].mxu0 %v3379
      %v3749 = vpop.f32.mrb[0].mxu0
      %v3750 = vadd.f32 %v3202, %v3749
      %v3751 = vpop.f32.mrb[0].mxu0
      %3752 = vmatprep.mubr.f32.mxu0 0.0
      %3753 = vmatmul.mubr.f32.gmra.mrb[0].mxu0 %v3382
      %v3754 = vpop.f32.mrb[0].mxu0
      %v3755 = vadd.f32 %v3202, %v3754
      %v3756 = vpop.f32.mrb[0].mxu0
      %3757 = vmatprep.mubr.f32.mxu0 0.0
      %3758 = vmatmul.mubr.f32.gmra.mrb[0].mxu0 %v3385
      %v3759 = vpop.f32.mrb[0].mxu0
      %v3760 = vadd.f32 %v3202, %v3759
      %v3761 = vpop.f32.mrb[0].mxu0
      %3762 = vmatprep.mubr.f32.mxu0 0.0
      %3763 = vmatmul.mubr.f32.gmra.mrb[0].mxu0 %v3388
      %v3764 = vpop.f32.mrb[0].mxu0
      %v3765 = vadd.f32 %v3202, %v3764
      %v3766 = vpop.f32.mrb[0].mxu0
      %3767 = vmatprep.mubr.f32.mxu0 0.0
      %3768 = vmatmul.mubr.f32.gmra.mrb[0].mxu0 %v3391
      %v3769 = vpop.f32.mrb[0].mxu0
      %v3770 = vadd.f32 %v3202, %v3769
      %v3771 = vpop.f32.mrb[0].mxu0
      %3772 = vdwg.mxu0
      %v3773 = vadd.f32 %v434, %v3460
      %v3774 = vadd.f32 %v435, %v3465
      %v3775 = vadd.f32 %v436, %v3470
      %v3776 = vadd.f32 %v437, %v3475
      %v3777 = vadd.f32 %v438, %v3480
      %v3778 = vadd.f32 %v439, %v3485
      %v3779 = vadd.f32 %v440, %v3490
      %v3780 = vadd.f32 %v441, %v3495
      %v3781 = vadd.f32 %v442, %v3500
      %v3782 = vadd.f32 %v443, %v3505
      %v3783 = vadd.f32 %v444, %v3510
      %v3784 = vadd.f32 %v445, %v3515
      %v3785 = vadd.f32 %v446, %v3520
      %v3786 = vadd.f32 %v447, %v3525
      %v3787 = vadd.f32 %v448, %v3530
      %v3788 = vadd.f32 %v449, %v3535
      %v3789 = vadd.f32 %v450, %v3540
      %v3790 = vadd.f32 %v451, %v3545
      %v3791 = vadd.f32 %v452, %v3550
      %v3792 = vadd.f32 %v453, %v3555
      %v3793 = vadd.f32 %v454, %v3560
      %v3794 = vadd.f32 %v455, %v3565
      %v3795 = vadd.f32 %v456, %v3570
      %v3796 = vadd.f32 %v457, %v3575
      %v3797 = vadd.f32 %v458, %v3580
      %v3798 = vadd.f32 %v459, %v3585
      %v3799 = vadd.f32 %v460, %v3590
      %v3800 = vadd.f32 %v461, %v3595
      %v3801 = vadd.f32 %v462, %v3600
      %v3802 = vadd.f32 %v463, %v3605
      %v3803 = vadd.f32 %v464, %v3610
      %v3804 = vadd.f32 %v465, %v3615
      %v3805 = vadd.f32 %v466, %v3620
      %v3806 = vadd.f32 %v467, %v3625
      %v3807 = vadd.f32 %v468, %v3630
      %v3808 = vadd.f32 %v469, %v3635
      %v3809 = vadd.f32 %v470, %v3640
      %v3810 = vadd.f32 %v471, %v3645
      %v3811 = vadd.f32 %v472, %v3650
      %v3812 = vadd.f32 %v473, %v3655
      %v3813 = vadd.f32 %v474, %v3660
      %v3814 = vadd.f32 %v475, %v3665
      %v3815 = vadd.f32 %v476, %v3670
      %v3816 = vadd.f32 %v477, %v3675
      %v3817 = vadd.f32 %v478, %v3680
      %v3818 = vadd.f32 %v479, %v3685
      %v3819 = vadd.f32 %v480, %v3690
      %v3820 = vadd.f32 %v481, %v3695
      %v3821 = vadd.f32 %v482, %v3700
      %v3822 = vadd.f32 %v483, %v3705
      %v3823 = vadd.f32 %v484, %v3710
      %v3824 = vadd.f32 %v485, %v3715
      %v3825 = vadd.f32 %v486, %v3720
      %v3826 = vadd.f32 %v487, %v3725
      %v3827 = vadd.f32 %v488, %v3730
      %v3828 = vadd.f32 %v489, %v3735
      %v3829 = vadd.f32 %v490, %v3740
      %v3830 = vadd.f32 %v491, %v3745
      %v3831 = vadd.f32 %v492, %v3750
      %v3832 = vadd.f32 %v493, %v3755
      %v3833 = vadd.f32 %v494, %v3760
      %v3834 = vadd.f32 %v495, %v3765
      %v3835 = vadd.f32 %v496, %v3770
      %3836 = vst.msk [vmem:[%s432] sm:$0xff] %vm628, %v3773
      %3837 = vst.msk [vmem:[%s432 + $0x8] sm:$0xff] %vm628, %v3774
      %3838 = vst.msk [vmem:[%s432 + $0x10] sm:$0xff] %vm628, %v3775
      %3839 = vst.msk [vmem:[%s432 + $0x18] sm:$0xff] %vm628, %v3776
      %3840 = vst.msk [vmem:[%s432 + $0x20] sm:$0xff] %vm628, %v3777
      %3841 = vst.msk [vmem:[%s432 + $0x28] sm:$0xff] %vm628, %v3778
      %3842 = vst.msk [vmem:[%s432 + $0x30] sm:$0xff] %vm628, %v3779
      %3843 = vst.msk [vmem:[%s432 + $0x38] sm:$0xff] %vm628, %v3780
      %3844 = vst.msk [vmem:[%s432 + $0x40] sm:$0xff] %vm628, %v3781
      %3845 = vst.msk [vmem:[%s432 + $0x48] sm:$0xff] %vm628, %v3782
      %3846 = vst.msk [vmem:[%s432 + $0x50] sm:$0xff] %vm628, %v3783
      %3847 = vst.msk [vmem:[%s432 + $0x58] sm:$0xff] %vm628, %v3784
      %3848 = vst.msk [vmem:[%s432 + $0x60] sm:$0xff] %vm628, %v3785
      %3849 = vst.msk [vmem:[%s432 + $0x68] sm:$0xff] %vm628, %v3786
      %3850 = vst.msk [vmem:[%s432 + $0x70] sm:$0xff] %vm628, %v3787
      %3851 = vst.msk [vmem:[%s432 + $0x78] sm:$0xff] %vm628, %v3788
      %3852 = vst.msk [vmem:[%s432 + $0x80] sm:$0xff] %vm628, %v3789
      %3853 = vst.msk [vmem:[%s432 + $0x88] sm:$0xff] %vm628, %v3790
      %3854 = vst.msk [vmem:[%s432 + $0x90] sm:$0xff] %vm628, %v3791
      %3855 = vst.msk [vmem:[%s432 + $0x98] sm:$0xff] %vm628, %v3792
      %3856 = vst.msk [vmem:[%s432 + $0xa0] sm:$0xff] %vm628, %v3793
      %3857 = vst.msk [vmem:[%s432 + $0xa8] sm:$0xff] %vm628, %v3794
      %3858 = vst.msk [vmem:[%s432 + $0xb0] sm:$0xff] %vm628, %v3795
      %3859 = vst.msk [vmem:[%s432 + $0xb8] sm:$0xff] %vm628, %v3796
      %3860 = vst.msk [vmem:[%s432 + $0xc0] sm:$0xff] %vm628, %v3797
      %3861 = vst.msk [vmem:[%s432 + $0xc8] sm:$0xff] %vm628, %v3798
      %3862 = vst.msk [vmem:[%s432 + $0xd0] sm:$0xff] %vm628, %v3799
      %3863 = vst.msk [vmem:[%s432 + $0xd8] sm:$0xff] %vm628, %v3800
      %3864 = vst.msk [vmem:[%s432 + $0xe0] sm:$0xff] %vm628, %v3801
      %3865 = vst.msk [vmem:[%s432 + $0xe8] sm:$0xff] %vm628, %v3802
      %3866 = vst.msk [vmem:[%s432 + $0xf0] sm:$0xff] %vm628, %v3803
      %3867 = vst.msk [vmem:[%s432 + $0xf8] sm:$0xff] %vm628, %v3804
      %3868 = vst.msk [vmem:[%s432 + $0x100] sm:$0xff] %vm628, %v3805
      %3869 = vst.msk [vmem:[%s432 + $0x108] sm:$0xff] %vm628, %v3806
      %3870 = vst.msk [vmem:[%s432 + $0x110] sm:$0xff] %vm628, %v3807
      %3871 = vst.msk [vmem:[%s432 + $0x118] sm:$0xff] %vm628, %v3808
      %3872 = vst.msk [vmem:[%s432 + $0x120] sm:$0xff] %vm628, %v3809
      %3873 = vst.msk [vmem:[%s432 + $0x128] sm:$0xff] %vm628, %v3810
      %3874 = vst.msk [vmem:[%s432 + $0x130] sm:$0xff] %vm628, %v3811
      %3875 = vst.msk [vmem:[%s432 + $0x138] sm:$0xff] %vm628, %v3812
      %3876 = vst.msk [vmem:[%s432 + $0x140] sm:$0xff] %vm628, %v3813
      %3877 = vst.msk [vmem:[%s432 + $0x148] sm:$0xff] %vm628, %v3814
      %3878 = vst.msk [vmem:[%s432 + $0x150] sm:$0xff] %vm628, %v3815
      %3879 = vst.msk [vmem:[%s432 + $0x158] sm:$0xff] %vm628, %v3816
      %3880 = vst.msk [vmem:[%s432 + $0x160] sm:$0xff] %vm628, %v3817
      %3881 = vst.msk [vmem:[%s432 + $0x168] sm:$0xff] %vm628, %v3818
      %3882 = vst.msk [vmem:[%s432 + $0x170] sm:$0xff] %vm628, %v3819
      %3883 = vst.msk [vmem:[%s432 + $0x178] sm:$0xff] %vm628, %v3820
      %3884 = vst.msk [vmem:[%s432 + $0x180] sm:$0xff] %vm628, %v3821
      %3885 = vst.msk [vmem:[%s432 + $0x188] sm:$0xff] %vm628, %v3822
      %3886 = vst.msk [vmem:[%s432 + $0x190] sm:$0xff] %vm628, %v3823
      %3887 = vst.msk [vmem:[%s432 + $0x198] sm:$0xff] %vm628, %v3824
      %3888 = vst.msk [vmem:[%s432 + $0x1a0] sm:$0xff] %vm628, %v3825
      %3889 = vst.msk [vmem:[%s432 + $0x1a8] sm:$0xff] %vm628, %v3826
      %3890 = vst.msk [vmem:[%s432 + $0x1b0] sm:$0xff] %vm628, %v3827
      %3891 = vst.msk [vmem:[%s432 + $0x1b8] sm:$0xff] %vm628, %v3828
      %3892 = vst.msk [vmem:[%s432 + $0x1c0] sm:$0xff] %vm628, %v3829
      %3893 = vst.msk [vmem:[%s432 + $0x1c8] sm:$0xff] %vm628, %v3830
      %3894 = vst.msk [vmem:[%s432 + $0x1d0] sm:$0xff] %vm628, %v3831
      %3895 = vst.msk [vmem:[%s432 + $0x1d8] sm:$0xff] %vm628, %v3832
      %3896 = vst.msk [vmem:[%s432 + $0x1e0] sm:$0xff] %vm628, %v3833
      %3897 = vst.msk [vmem:[%s432 + $0x1e8] sm:$0xff] %vm628, %v3834
      %3898 = vst.msk [vmem:[%s432 + $0x1f0] sm:$0xff] %vm628, %v3835
      %3962 = vrot.lane.b32.xlu0 %v3460, 125
      %v3963 = vpop.permute.xlu0 %3962
      %3964 = vrot.lane.b32.xlu0 %v3465, 125
      %v3965 = vpop.permute.xlu0 %3964
      %3966 = vrot.lane.b32.xlu0 %v3470, 125
      %v3967 = vpop.permute.xlu0 %3966
      %3968 = vrot.lane.b32.xlu0 %v3475, 125
      %v3969 = vpop.permute.xlu0 %3968
      %3970 = vrot.lane.b32.xlu0 %v3480, 125
      %v3971 = vpop.permute.xlu0 %3970
      %3972 = vrot.lane.b32.xlu0 %v3485, 125
      %v3973 = vpop.permute.xlu0 %3972
      %3974 = vrot.lane.b32.xlu0 %v3490, 125
      %v3975 = vpop.permute.xlu0 %3974
      %3976 = vrot.lane.b32.xlu0 %v3495, 125
      %v3977 = vpop.permute.xlu0 %3976
      %3978 = vrot.lane.b32.xlu0 %v3500, 125
      %v3979 = vpop.permute.xlu0 %3978
      %3980 = vrot.lane.b32.xlu0 %v3505, 125
      %v3981 = vpop.permute.xlu0 %3980
      %3982 = vrot.lane.b32.xlu0 %v3510, 125
      %v3983 = vpop.permute.xlu0 %3982
      %3984 = vrot.lane.b32.xlu0 %v3515, 125
      %v3985 = vpop.permute.xlu0 %3984
      %3986 = vrot.lane.b32.xlu0 %v3520, 125
      %v3987 = vpop.permute.xlu0 %3986
      %3988 = vrot.lane.b32.xlu0 %v3525, 125
      %v3989 = vpop.permute.xlu0 %3988
      %3990 = vrot.lane.b32.xlu0 %v3530, 125
      %v3991 = vpop.permute.xlu0 %3990
      %3992 = vrot.lane.b32.xlu0 %v3535, 125
      %v3993 = vpop.permute.xlu0 %3992
      %3994 = vrot.lane.b32.xlu0 %v3540, 125
      %v3995 = vpop.permute.xlu0 %3994
      %3996 = vrot.lane.b32.xlu0 %v3545, 125
      %v3997 = vpop.permute.xlu0 %3996
      %3998 = vrot.lane.b32.xlu0 %v3550, 125
      %v3999 = vpop.permute.xlu0 %3998
      %4000 = vrot.lane.b32.xlu0 %v3555, 125
      %v4001 = vpop.permute.xlu0 %4000
      %4002 = vrot.lane.b32.xlu0 %v3560, 125
      %v4003 = vpop.permute.xlu0 %4002
      %4004 = vrot.lane.b32.xlu0 %v3565, 125
      %v4005 = vpop.permute.xlu0 %4004
      %4006 = vrot.lane.b32.xlu0 %v3570, 125
      %v4007 = vpop.permute.xlu0 %4006
      %4008 = vrot.lane.b32.xlu0 %v3575, 125
      %v4009 = vpop.permute.xlu0 %4008
      %4010 = vrot.lane.b32.xlu0 %v3580, 125
      %v4011 = vpop.permute.xlu0 %4010
      %4012 = vrot.lane.b32.xlu0 %v3585, 125
      %v4013 = vpop.permute.xlu0 %4012
      %4014 = vrot.lane.b32.xlu0 %v3590, 125
      %v4015 = vpop.permute.xlu0 %4014
      %4016 = vrot.lane.b32.xlu0 %v3595, 125
      %v4017 = vpop.permute.xlu0 %4016
      %4018 = vrot.lane.b32.xlu0 %v3600, 125
      %v4019 = vpop.permute.xlu0 %4018
      %4020 = vrot.lane.b32.xlu0 %v3605, 125
      %v4021 = vpop.permute.xlu0 %4020
      %4022 = vrot.lane.b32.xlu0 %v3610, 125
      %v4023 = vpop.permute.xlu0 %4022
      %4024 = vrot.lane.b32.xlu0 %v3615, 125
      %v4025 = vpop.permute.xlu0 %4024
      %4026 = vrot.lane.b32.xlu0 %v3620, 125
      %v4027 = vpop.permute.xlu0 %4026
      %4028 = vrot.lane.b32.xlu0 %v3625, 125
      %v4029 = vpop.permute.xlu0 %4028
      %4030 = vrot.lane.b32.xlu0 %v3630, 125
      %v4031 = vpop.permute.xlu0 %4030
      %4032 = vrot.lane.b32.xlu0 %v3635, 125
      %v4033 = vpop.permute.xlu0 %4032
      %4034 = vrot.lane.b32.xlu0 %v3640, 125
      %v4035 = vpop.permute.xlu0 %4034
      %4036 = vrot.lane.b32.xlu0 %v3645, 125
      %v4037 = vpop.permute.xlu0 %4036
      %4038 = vrot.lane.b32.xlu0 %v3650, 125
      %v4039 = vpop.permute.xlu0 %4038
      %4040 = vrot.lane.b32.xlu0 %v3655, 125
      %v4041 = vpop.permute.xlu0 %4040
      %4042 = vrot.lane.b32.xlu0 %v3660, 125
      %v4043 = vpop.permute.xlu0 %4042
      %4044 = vrot.lane.b32.xlu0 %v3665, 125
      %v4045 = vpop.permute.xlu0 %4044
      %4046 = vrot.lane.b32.xlu0 %v3670, 125
      %v4047 = vpop.permute.xlu0 %4046
      %4048 = vrot.lane.b32.xlu0 %v3675, 125
      %v4049 = vpop.permute.xlu0 %4048
      %4050 = vrot.lane.b32.xlu0 %v3680, 125
      %v4051 = vpop.permute.xlu0 %4050
      %4052 = vrot.lane.b32.xlu0 %v3685, 125
      %v4053 = vpop.permute.xlu0 %4052
      %4054 = vrot.lane.b32.xlu0 %v3690, 125
      %v4055 = vpop.permute.xlu0 %4054
      %4056 = vrot.lane.b32.xlu0 %v3695, 125
      %v4057 = vpop.permute.xlu0 %4056
      %4058 = vrot.lane.b32.xlu0 %v3700, 125
      %v4059 = vpop.permute.xlu0 %4058
      %4060 = vrot.lane.b32.xlu0 %v3705, 125
      %v4061 = vpop.permute.xlu0 %4060
      %4062 = vrot.lane.b32.xlu0 %v3710, 125
      %v4063 = vpop.permute.xlu0 %4062
      %4064 = vrot.lane.b32.xlu0 %v3715, 125
      %v4065 = vpop.permute.xlu0 %4064
      %4066 = vrot.lane.b32.xlu0 %v3720, 125
      %v4067 = vpop.permute.xlu0 %4066
      %4068 = vrot.lane.b32.xlu0 %v3725, 125
      %v4069 = vpop.permute.xlu0 %4068
      %4070 = vrot.lane.b32.xlu0 %v3730, 125
      %v4071 = vpop.permute.xlu0 %4070
      %4072 = vrot.lane.b32.xlu0 %v3735, 125
      %v4073 = vpop.permute.xlu0 %4072
      %4074 = vrot.lane.b32.xlu0 %v3740, 125
      %v4075 = vpop.permute.xlu0 %4074
      %4076 = vrot.lane.b32.xlu0 %v3745, 125
      %v4077 = vpop.permute.xlu0 %4076
      %4078 = vrot.lane.b32.xlu0 %v3750, 125
      %v4079 = vpop.permute.xlu0 %4078
      %4080 = vrot.lane.b32.xlu0 %v3755, 125
      %v4081 = vpop.permute.xlu0 %4080
      %4082 = vrot.lane.b32.xlu0 %v3760, 125
      %v4083 = vpop.permute.xlu0 %4082
      %4084 = vrot.lane.b32.xlu0 %v3765, 125
      %v4085 = vpop.permute.xlu0 %4084
      %4086 = vrot.lane.b32.xlu0 %v3770, 125
      %v4087 = vpop.permute.xlu0 %4086
      %v4151 = vadd.f32 %v434, %v3963
      %v4152 = vadd.f32 %v435, %v3965
      %v4153 = vadd.f32 %v436, %v3967
      %v4154 = vadd.f32 %v437, %v3969
      %v4155 = vadd.f32 %v438, %v3971
      %v4156 = vadd.f32 %v439, %v3973
      %v4157 = vadd.f32 %v440, %v3975
      %v4158 = vadd.f32 %v441, %v3977
      %v4159 = vadd.f32 %v442, %v3979
      %v4160 = vadd.f32 %v443, %v3981
      %v4161 = vadd.f32 %v444, %v3983
      %v4162 = vadd.f32 %v445, %v3985
      %v4163 = vadd.f32 %v446, %v3987
      %v4164 = vadd.f32 %v447, %v3989
      %v4165 = vadd.f32 %v448, %v3991
      %v4166 = vadd.f32 %v449, %v3993
      %v4167 = vadd.f32 %v450, %v3995
      %v4168 = vadd.f32 %v451, %v3997
      %v4169 = vadd.f32 %v452, %v3999
      %v4170 = vadd.f32 %v453, %v4001
      %v4171 = vadd.f32 %v454, %v4003
      %v4172 = vadd.f32 %v455, %v4005
      %v4173 = vadd.f32 %v456, %v4007
      %v4174 = vadd.f32 %v457, %v4009
      %v4175 = vadd.f32 %v458, %v4011
      %v4176 = vadd.f32 %v459, %v4013
      %v4177 = vadd.f32 %v460, %v4015
      %v4178 = vadd.f32 %v461, %v4017
      %v4179 = vadd.f32 %v462, %v4019
      %v4180 = vadd.f32 %v463, %v4021
      %v4181 = vadd.f32 %v464, %v4023
      %v4182 = vadd.f32 %v465, %v4025
      %v4183 = vadd.f32 %v466, %v4027
      %v4184 = vadd.f32 %v467, %v4029
      %v4185 = vadd.f32 %v468, %v4031
      %v4186 = vadd.f32 %v469, %v4033
      %v4187 = vadd.f32 %v470, %v4035
      %v4188 = vadd.f32 %v471, %v4037
      %v4189 = vadd.f32 %v472, %v4039
      %v4190 = vadd.f32 %v473, %v4041
      %v4191 = vadd.f32 %v474, %v4043
      %v4192 = vadd.f32 %v475, %v4045
      %v4193 = vadd.f32 %v476, %v4047
      %v4194 = vadd.f32 %v477, %v4049
      %v4195 = vadd.f32 %v478, %v4051
      %v4196 = vadd.f32 %v479, %v4053
      %v4197 = vadd.f32 %v480, %v4055
      %v4198 = vadd.f32 %v481, %v4057
      %v4199 = vadd.f32 %v482, %v4059
      %v4200 = vadd.f32 %v483, %v4061
      %v4201 = vadd.f32 %v484, %v4063
      %v4202 = vadd.f32 %v485, %v4065
      %v4203 = vadd.f32 %v486, %v4067
      %v4204 = vadd.f32 %v487, %v4069
      %v4205 = vadd.f32 %v488, %v4071
      %v4206 = vadd.f32 %v489, %v4073
      %v4207 = vadd.f32 %v490, %v4075
      %v4208 = vadd.f32 %v491, %v4077
      %v4209 = vadd.f32 %v492, %v4079
      %v4210 = vadd.f32 %v493, %v4081
      %v4211 = vadd.f32 %v494, %v4083
      %v4212 = vadd.f32 %v495, %v4085
      %v4213 = vadd.f32 %v496, %v4087
      %4277 = vrot.lane.b32.xlu0 %v4151, 3
      %v4278 = vpop.permute.xlu0 %4277
      %4279 = vrot.lane.b32.xlu0 %v4152, 3
      %v4280 = vpop.permute.xlu0 %4279
      %4281 = vrot.lane.b32.xlu0 %v4153, 3
      %v4282 = vpop.permute.xlu0 %4281
      %4283 = vrot.lane.b32.xlu0 %v4154, 3
      %v4284 = vpop.permute.xlu0 %4283
      %4285 = vrot.lane.b32.xlu0 %v4155, 3
      %v4286 = vpop.permute.xlu0 %4285
      %4287 = vrot.lane.b32.xlu0 %v4156, 3
      %v4288 = vpop.permute.xlu0 %4287
      %4289 = vrot.lane.b32.xlu0 %v4157, 3
      %v4290 = vpop.permute.xlu0 %4289
      %4291 = vrot.lane.b32.xlu0 %v4158, 3
      %v4292 = vpop.permute.xlu0 %4291
      %4293 = vrot.lane.b32.xlu0 %v4159, 3
      %v4294 = vpop.permute.xlu0 %4293
      %4295 = vrot.lane.b32.xlu0 %v4160, 3
      %v4296 = vpop.permute.xlu0 %4295
      %4297 = vrot.lane.b32.xlu0 %v4161, 3
      %v4298 = vpop.permute.xlu0 %4297
      %4299 = vrot.lane.b32.xlu0 %v4162, 3
      %v4300 = vpop.permute.xlu0 %4299
      %4301 = vrot.lane.b32.xlu0 %v4163, 3
      %v4302 = vpop.permute.xlu0 %4301
      %4303 = vrot.lane.b32.xlu0 %v4164, 3
      %v4304 = vpop.permute.xlu0 %4303
      %4305 = vrot.lane.b32.xlu0 %v4165, 3
      %v4306 = vpop.permute.xlu0 %4305
      %4307 = vrot.lane.b32.xlu0 %v4166, 3
      %v4308 = vpop.permute.xlu0 %4307
      %4309 = vrot.lane.b32.xlu0 %v4167, 3
      %v4310 = vpop.permute.xlu0 %4309
      %4311 = vrot.lane.b32.xlu0 %v4168, 3
      %v4312 = vpop.permute.xlu0 %4311
      %4313 = vrot.lane.b32.xlu0 %v4169, 3
      %v4314 = vpop.permute.xlu0 %4313
      %4315 = vrot.lane.b32.xlu0 %v4170, 3
      %v4316 = vpop.permute.xlu0 %4315
      %4317 = vrot.lane.b32.xlu0 %v4171, 3
      %v4318 = vpop.permute.xlu0 %4317
      %4319 = vrot.lane.b32.xlu0 %v4172, 3
      %v4320 = vpop.permute.xlu0 %4319
      %4321 = vrot.lane.b32.xlu0 %v4173, 3
      %v4322 = vpop.permute.xlu0 %4321
      %4323 = vrot.lane.b32.xlu0 %v4174, 3
      %v4324 = vpop.permute.xlu0 %4323
      %4325 = vrot.lane.b32.xlu0 %v4175, 3
      %v4326 = vpop.permute.xlu0 %4325
      %4327 = vrot.lane.b32.xlu0 %v4176, 3
      %v4328 = vpop.permute.xlu0 %4327
      %4329 = vrot.lane.b32.xlu0 %v4177, 3
      %v4330 = vpop.permute.xlu0 %4329
      %4331 = vrot.lane.b32.xlu0 %v4178, 3
      %v4332 = vpop.permute.xlu0 %4331
      %4333 = vrot.lane.b32.xlu0 %v4179, 3
      %v4334 = vpop.permute.xlu0 %4333
      %4335 = vrot.lane.b32.xlu0 %v4180, 3
      %v4336 = vpop.permute.xlu0 %4335
      %4337 = vrot.lane.b32.xlu0 %v4181, 3
      %v4338 = vpop.permute.xlu0 %4337
      %4339 = vrot.lane.b32.xlu0 %v4182, 3
      %v4340 = vpop.permute.xlu0 %4339
      %4341 = vrot.lane.b32.xlu0 %v4183, 3
      %v4342 = vpop.permute.xlu0 %4341
      %4343 = vrot.lane.b32.xlu0 %v4184, 3
      %v4344 = vpop.permute.xlu0 %4343
      %4345 = vrot.lane.b32.xlu0 %v4185, 3
      %v4346 = vpop.permute.xlu0 %4345
      %4347 = vrot.lane.b32.xlu0 %v4186, 3
      %v4348 = vpop.permute.xlu0 %4347
      %4349 = vrot.lane.b32.xlu0 %v4187, 3
      %v4350 = vpop.permute.xlu0 %4349
      %4351 = vrot.lane.b32.xlu0 %v4188, 3
      %v4352 = vpop.permute.xlu0 %4351
      %4353 = vrot.lane.b32.xlu0 %v4189, 3
      %v4354 = vpop.permute.xlu0 %4353
      %4355 = vrot.lane.b32.xlu0 %v4190, 3
      %v4356 = vpop.permute.xlu0 %4355
      %4357 = vrot.lane.b32.xlu0 %v4191, 3
      %v4358 = vpop.permute.xlu0 %4357
      %4359 = vrot.lane.b32.xlu0 %v4192, 3
      %v4360 = vpop.permute.xlu0 %4359
      %4361 = vrot.lane.b32.xlu0 %v4193, 3
      %v4362 = vpop.permute.xlu0 %4361
      %4363 = vrot.lane.b32.xlu0 %v4194, 3
      %v4364 = vpop.permute.xlu0 %4363
      %4365 = vrot.lane.b32.xlu0 %v4195, 3
      %v4366 = vpop.permute.xlu0 %4365
      %4367 = vrot.lane.b32.xlu0 %v4196, 3
      %v4368 = vpop.permute.xlu0 %4367
      %4369 = vrot.lane.b32.xlu0 %v4197, 3
      %v4370 = vpop.permute.xlu0 %4369
      %4371 = vrot.lane.b32.xlu0 %v4198, 3
      %v4372 = vpop.permute.xlu0 %4371
      %4373 = vrot.lane.b32.xlu0 %v4199, 3
      %v4374 = vpop.permute.xlu0 %4373
      %4375 = vrot.lane.b32.xlu0 %v4200, 3
      %v4376 = vpop.permute.xlu0 %4375
      %4377 = vrot.lane.b32.xlu0 %v4201, 3
      %v4378 = vpop.permute.xlu0 %4377
      %4379 = vrot.lane.b32.xlu0 %v4202, 3
      %v4380 = vpop.permute.xlu0 %4379
      %4381 = vrot.lane.b32.xlu0 %v4203, 3
      %v4382 = vpop.permute.xlu0 %4381
      %4383 = vrot.lane.b32.xlu0 %v4204, 3
      %v4384 = vpop.permute.xlu0 %4383
      %4385 = vrot.lane.b32.xlu0 %v4205, 3
      %v4386 = vpop.permute.xlu0 %4385
      %4387 = vrot.lane.b32.xlu0 %v4206, 3
      %v4388 = vpop.permute.xlu0 %4387
      %4389 = vrot.lane.b32.xlu0 %v4207, 3
      %v4390 = vpop.permute.xlu0 %4389
      %4391 = vrot.lane.b32.xlu0 %v4208, 3
      %v4392 = vpop.permute.xlu0 %4391
      %4393 = vrot.lane.b32.xlu0 %v4209, 3
      %v4394 = vpop.permute.xlu0 %4393
      %4395 = vrot.lane.b32.xlu0 %v4210, 3
      %v4396 = vpop.permute.xlu0 %4395
      %4397 = vrot.lane.b32.xlu0 %v4211, 3
      %v4398 = vpop.permute.xlu0 %4397
      %4399 = vrot.lane.b32.xlu0 %v4212, 3
      %v4400 = vpop.permute.xlu0 %4399
      %4401 = vrot.lane.b32.xlu0 %v4213, 3
      %v4402 = vpop.permute.xlu0 %4401
      %vm4466 = vcmask 48152
      %4467 = vst.msk [vmem:[%s432] sm:$0xff] %vm4466, %v4278
      %4468 = vst.msk [vmem:[%s432 + $0x8] sm:$0xff] %vm4466, %v4280
      %4469 = vst.msk [vmem:[%s432 + $0x10] sm:$0xff] %vm4466, %v4282
      %4470 = vst.msk [vmem:[%s432 + $0x18] sm:$0xff] %vm4466, %v4284
      %4471 = vst.msk [vmem:[%s432 + $0x20] sm:$0xff] %vm4466, %v4286
      %4472 = vst.msk [vmem:[%s432 + $0x28] sm:$0xff] %vm4466, %v4288
      %4473 = vst.msk [vmem:[%s432 + $0x30] sm:$0xff] %vm4466, %v4290
      %4474 = vst.msk [vmem:[%s432 + $0x38] sm:$0xff] %vm4466, %v4292
      %4475 = vst.msk [vmem:[%s432 + $0x40] sm:$0xff] %vm4466, %v4294
      %4476 = vst.msk [vmem:[%s432 + $0x48] sm:$0xff] %vm4466, %v4296
      %4477 = vst.msk [vmem:[%s432 + $0x50] sm:$0xff] %vm4466, %v4298
      %4478 = vst.msk [vmem:[%s432 + $0x58] sm:$0xff] %vm4466, %v4300
      %4479 = vst.msk [vmem:[%s432 + $0x60] sm:$0xff] %vm4466, %v4302
      %4480 = vst.msk [vmem:[%s432 + $0x68] sm:$0xff] %vm4466, %v4304
      %4481 = vst.msk [vmem:[%s432 + $0x70] sm:$0xff] %vm4466, %v4306
      %4482 = vst.msk [vmem:[%s432 + $0x78] sm:$0xff] %vm4466, %v4308
      %4483 = vst.msk [vmem:[%s432 + $0x80] sm:$0xff] %vm4466, %v4310
      %4484 = vst.msk [vmem:[%s432 + $0x88] sm:$0xff] %vm4466, %v4312
      %4485 = vst.msk [vmem:[%s432 + $0x90] sm:$0xff] %vm4466, %v4314
      %4486 = vst.msk [vmem:[%s432 + $0x98] sm:$0xff] %vm4466, %v4316
      %4487 = vst.msk [vmem:[%s432 + $0xa0] sm:$0xff] %vm4466, %v4318
      %4488 = vst.msk [vmem:[%s432 + $0xa8] sm:$0xff] %vm4466, %v4320
      %4489 = vst.msk [vmem:[%s432 + $0xb0] sm:$0xff] %vm4466, %v4322
      %4490 = vst.msk [vmem:[%s432 + $0xb8] sm:$0xff] %vm4466, %v4324
      %4491 = vst.msk [vmem:[%s432 + $0xc0] sm:$0xff] %vm4466, %v4326
      %4492 = vst.msk [vmem:[%s432 + $0xc8] sm:$0xff] %vm4466, %v4328
      %4493 = vst.msk [vmem:[%s432 + $0xd0] sm:$0xff] %vm4466, %v4330
      %4494 = vst.msk [vmem:[%s432 + $0xd8] sm:$0xff] %vm4466, %v4332
      %4495 = vst.msk [vmem:[%s432 + $0xe0] sm:$0xff] %vm4466, %v4334
      %4496 = vst.msk [vmem:[%s432 + $0xe8] sm:$0xff] %vm4466, %v4336
      %4497 = vst.msk [vmem:[%s432 + $0xf0] sm:$0xff] %vm4466, %v4338
      %4498 = vst.msk [vmem:[%s432 + $0xf8] sm:$0xff] %vm4466, %v4340
      %4499 = vst.msk [vmem:[%s432 + $0x100] sm:$0xff] %vm4466, %v4342
      %4500 = vst.msk [vmem:[%s432 + $0x108] sm:$0xff] %vm4466, %v4344
      %4501 = vst.msk [vmem:[%s432 + $0x110] sm:$0xff] %vm4466, %v4346
      %4502 = vst.msk [vmem:[%s432 + $0x118] sm:$0xff] %vm4466, %v4348
      %4503 = vst.msk [vmem:[%s432 + $0x120] sm:$0xff] %vm4466, %v4350
      %4504 = vst.msk [vmem:[%s432 + $0x128] sm:$0xff] %vm4466, %v4352
      %4505 = vst.msk [vmem:[%s432 + $0x130] sm:$0xff] %vm4466, %v4354
      %4506 = vst.msk [vmem:[%s432 + $0x138] sm:$0xff] %vm4466, %v4356
      %4507 = vst.msk [vmem:[%s432 + $0x140] sm:$0xff] %vm4466, %v4358
      %4508 = vst.msk [vmem:[%s432 + $0x148] sm:$0xff] %vm4466, %v4360
      %4509 = vst.msk [vmem:[%s432 + $0x150] sm:$0xff] %vm4466, %v4362
      %4510 = vst.msk [vmem:[%s432 + $0x158] sm:$0xff] %vm4466, %v4364
      %4511 = vst.msk [vmem:[%s432 + $0x160] sm:$0xff] %vm4466, %v4366
      %4512 = vst.msk [vmem:[%s432 + $0x168] sm:$0xff] %vm4466, %v4368
      %4513 = vst.msk [vmem:[%s432 + $0x170] sm:$0xff] %vm4466, %v4370
      %4514 = vst.msk [vmem:[%s432 + $0x178] sm:$0xff] %vm4466, %v4372
      %4515 = vst.msk [vmem:[%s432 + $0x180] sm:$0xff] %vm4466, %v4374
      %4516 = vst.msk [vmem:[%s432 + $0x188] sm:$0xff] %vm4466, %v4376
      %4517 = vst.msk [vmem:[%s432 + $0x190] sm:$0xff] %vm4466, %v4378
      %4518 = vst.msk [vmem:[%s432 + $0x198] sm:$0xff] %vm4466, %v4380
      %4519 = vst.msk [vmem:[%s432 + $0x1a0] sm:$0xff] %vm4466, %v4382
      %4520 = vst.msk [vmem:[%s432 + $0x1a8] sm:$0xff] %vm4466, %v4384
      %4521 = vst.msk [vmem:[%s432 + $0x1b0] sm:$0xff] %vm4466, %v4386
      %4522 = vst.msk [vmem:[%s432 + $0x1b8] sm:$0xff] %vm4466, %v4388
      %4523 = vst.msk [vmem:[%s432 + $0x1c0] sm:$0xff] %vm4466, %v4390
      %4524 = vst.msk [vmem:[%s432 + $0x1c8] sm:$0xff] %vm4466, %v4392
      %4525 = vst.msk [vmem:[%s432 + $0x1d0] sm:$0xff] %vm4466, %v4394
      %4526 = vst.msk [vmem:[%s432 + $0x1d8] sm:$0xff] %vm4466, %v4396
      %4527 = vst.msk [vmem:[%s432 + $0x1e0] sm:$0xff] %vm4466, %v4398
      %4528 = vst.msk [vmem:[%s432 + $0x1e8] sm:$0xff] %vm4466, %v4400
      %4529 = vst.msk [vmem:[%s432 + $0x1f0] sm:$0xff] %vm4466, %v4402
      %s4530 = smul.u32 63, %s22
      %p4531 = scmp.lt.s32.totalorder %s4530, 125
      %s4532 = scalar_select %p4531, %s4530, 125
      %s4533 = smul.addr %s4532, 8
      %s4534 = scalar_lea.vmem %s11, %s4533
      // Predicated region
      $region65: #{tpu_custom_call.1} parent=63 // pred_check
        %p4535 = pneg %p286
      $region66: #{tpu_custom_call.1} parent=63 // pred_check_branch
        %4537 = sbr.rel (%p4535) target = $region68
      $region67: #{tpu_custom_call.1} parent=63 // pred_region
        %s4538 = smul.u32 63, %s22
      $region68: #{tpu_custom_call.1} parent=63 // pred_fallthru
        _
    $region64: #{tpu_custom_call.1} parent=5 // pred_fallthru
      _
    %p4539 = scmp.le.s32.totalorder 2, %s17
    // Predicated region
    $region69: #{tpu_custom_call.1} parent=5 // pred_check
      %p4540 = pneg %p4539
    $region70: #{tpu_custom_call.1} parent=5 // pred_check_branch
      %4542 = sbr.rel (%p4540) target = $region72
    $region71: #{tpu_custom_call.1} parent=5 // pred_region
      %s4543 = ssub.s32 %s17, 2
      // Predicated region
      $region73: #{tpu_custom_call.1} parent=71 // pred_check
        %p4544 = pneg %p292
      $region74: #{tpu_custom_call.1} parent=71 // pred_check_branch
        %4546 = sbr.rel (%p4544) target = $region76
      $region75: #{tpu_custom_call.1} parent=71 // pred_region
        %s4547 = smul.u32 63, %s23
        %p4548 = scmp.lt.s32.totalorder %s4547, 125
        %s4549 = scalar_select %p4548, %s4547, 125
        %s4550 = smul.addr %s4549, 8
        %s4551 = scalar_lea.vmem %s11, %s4550
      $region76: #{tpu_custom_call.1} parent=71 // pred_fallthru
        _
    $region72: #{tpu_custom_call.1} parent=5 // pred_fallthru
      _
  $region6: #{tpu_custom_call.1} parent=0 // loop_footer
    %s21 = sadd.s32 1, %s17
  $region7: #{tpu_custom_call.1} parent=0 // loop_footer_branch
    %16 = sbr.rel target = $region3
  $region8: #{tpu_custom_call.1} parent=0 // loop_exit
    _

</llo_original>
